<compile_context>
chip_gen: v7x
topology: tpu7x:2x2x1
jax: 0.10.0
libtpu: 0.0.40
codegen_flags: <defaults>
</compile_context>

<pallas_src>
import functools

import jax
import jax.numpy as jnp
from jax.experimental import pallas as pl
from jax.experimental.pallas import tpu as pltpu


# ----------------------------- config ---------------------------------------
class Config:
    vocab_size = 64
    hidden_size = 32
    num_attention_heads = 4
    num_hidden_layers = 2
    intermediate_size = 64
    max_position_embeddings = 16
    layer_norm_eps = 1e-5
    hidden_act = "quick_gelu"      # CLIP text default
    attention_dropout = 0.0        # eval mode -> dropout is identity


F32_MIN = float(jnp.finfo(jnp.float32).min)


# --------------------------- kernel helpers ----------------------------------
def _layer_norm(x, w, b, eps):
    mu = jnp.mean(x, axis=-1, keepdims=True)
    var = jnp.mean((x - mu) ** 2, axis=-1, keepdims=True)
    return (x - mu) * jax.lax.rsqrt(var + eps) * w + b


def _quick_gelu(x):
    return x * jax.nn.sigmoid(1.702 * x)


def _clip_layer(x, mask, slab, wqkv, wo, fc1, fc2, store_attn, ctx_scr,
                *, D, I, H, hd, eps):
    """One CLIP encoder layer on the (S, D) hidden state `x` (f32 value)."""
    # packed per-layer vectors (rows of the (8, W) slab):
    ln1_w, ln1_b = slab[0:1, 0:D], slab[1:2, 0:D]
    ln2_w, ln2_b = slab[2:3, 0:D], slab[3:4, 0:D]
    b_o, fc2_b = slab[4:5, 0:D], slab[5:6, 0:D]
    fc1_b = slab[6:7, 0:I]
    qkv_b = slab[7:8, 0:3 * D]

    # ---- LayerNorm1 + single fused lane-dense QKV projection (scale folded) ----
    h1 = _layer_norm(x, ln1_w, ln1_b, eps)
    qkv = jnp.dot(h1.astype(jnp.bfloat16), wqkv,
                  preferred_element_type=jnp.float32) + qkv_b          # (S, 3D)

    # ---- per-head attention; heads are static lane slices of the fused QKV ----
    for h in range(H):
        q_h = qkv[:, h * hd:(h + 1) * hd]                              # (S, hd)
        k_h = qkv[:, D + h * hd:D + (h + 1) * hd]
        v_h = qkv[:, 2 * D + h * hd:2 * D + (h + 1) * hd]
        logits = jnp.einsum('qe,ke->qk', q_h, k_h,
                            preferred_element_type=jnp.float32) + mask  # (S, S)
        logits = logits - jnp.max(logits, axis=-1, keepdims=True)
        p = jnp.exp(logits)
        p = p / jnp.sum(p, axis=-1, keepdims=True)   # exact divide (torch parity)
        store_attn(h, p)
        # assemble head contexts into (S, D) layout so the out-projection is a
        # single K=D matmul (MXU does the head reduction)
        ctx_scr[:, h * hd:(h + 1) * hd] = jnp.dot(
            p, v_h, preferred_element_type=jnp.float32)

    # ---- single (S,D)@(D,D) output projection + residual ----
    attn_out = jnp.dot(ctx_scr[...].astype(jnp.bfloat16), wo,
                       preferred_element_type=jnp.float32) + b_o
    r1 = x + attn_out

    # ---- LayerNorm2 + MLP (quick_gelu) + residual ----
    h2 = _layer_norm(r1, ln2_w, ln2_b, eps)
    m = jnp.dot(h2.astype(jnp.bfloat16), fc1,
                preferred_element_type=jnp.float32) + fc1_b
    m = _quick_gelu(m)
    m = jnp.dot(m.astype(jnp.bfloat16), fc2,
                preferred_element_type=jnp.float32) + fc2_b
    return r1 + m


# ------------------- path A: everything resident, no layer grid ---------------
def encoder_kernel_resident(x_ref, mask_ref, fln_ref, slab_ref, wqkv_ref, wo_ref,
                            fc1_ref, fc2_ref,
                            hs_ref, attn_ref, out_ref,
                            ctx_scr,
                            *, num_layers, D, I, H, hd, eps):
    h = x_ref[...]
    mask = mask_ref[...]
    for l in range(num_layers):     # static unroll: whole encoder in one grid step
        def store_attn(hh, p, l=l):
            attn_ref[l, hh] = p.astype(attn_ref.dtype)
        h = _clip_layer(h, mask, slab_ref[l], wqkv_ref[l], wo_ref[l],
                        fc1_ref[l], fc2_ref[l], store_attn, ctx_scr,
                        D=D, I=I, H=H, hd=hd, eps=eps)
        hs_ref[l] = h.astype(hs_ref.dtype)
    # final LayerNorm fused into the same kernel
    out_ref[...] = _layer_norm(h, fln_ref[0:1, :], fln_ref[1:2, :], eps)


# ------------- path B: grid=(L,) with per-layer weight streaming --------------
def encoder_kernel_pipelined(x_ref, mask_ref, fln_ref, slab_ref, wqkv_ref, wo_ref,
                             fc1_ref, fc2_ref,
                             hs_ref, attn_ref, out_ref,
                             h_scr, ctx_scr,
                             *, D, I, H, hd, eps):
    layer = pl.program_id(0)

    @pl.when(layer == 0)
    def _():
        h_scr[...] = x_ref[...]     # hidden state stays resident across the grid

    def store_attn(hh, p):
        attn_ref[hh] = p.astype(attn_ref.dtype)

    h_new = _clip_layer(h_scr[...], mask_ref[...], slab_ref[...], wqkv_ref[...],
                        wo_ref[...], fc1_ref[...], fc2_ref[...],
                        store_attn, ctx_scr,
                        D=D, I=I, H=H, hd=hd, eps=eps)
    h_scr[...] = h_new
    hs_ref[...] = h_new.astype(hs_ref.dtype)

    # final LayerNorm folded into the last grid iteration
    @pl.when(layer == pl.num_programs(0) - 1)
    def _():
        out_ref[...] = _layer_norm(h_new, fln_ref[0:1, :], fln_ref[1:2, :], eps)


def run_encoder(x_emb, mask, params, cfg, *, collect_dtype=jnp.float32,
                force_path=None):
    S, D = x_emb.shape
    L = cfg.num_hidden_layers
    H = cfg.num_attention_heads
    hd = D // H
    I = cfg.intermediate_size
    eps = cfg.layer_norm_eps

    weight_names = ("slab", "wqkv", "wo", "fc1_w", "fc2_w")
    weight_bytes = sum(int(params[n].size) * params[n].dtype.itemsize
                       for n in weight_names)
    # Toy / small configs: the whole stack fits in VMEM -> no layer grid (the
    # per-step grid + DMA-setup overhead would dominate).  Real CLIP sizes:
    # per-layer grid so layer i+1 weights stream (Buffered(2)) while layer i
    # computes.  (Review: keep default double-buffering and vmem_limit <= 32MB
    # so the pipeline fits v7x's 64 MiB VMEM.)
    if force_path is None:
        path = "resident" if weight_bytes <= 4 * 1024 * 1024 else "pipelined"
    else:
        path = force_path

    def rep(shape):                 # same block every grid step (stays resident)
        n = len(shape)
        return pl.BlockSpec(tuple(shape), lambda i, n=n: (0,) * n)

    def per_layer(shape):           # leading layer axis selected by the grid index
        n = len(shape)
        return pl.BlockSpec((None,) + tuple(shape[1:]),
                            lambda i, n=n: (i,) + (0,) * (n - 1))

    out_shape = (
        jax.ShapeDtypeStruct((L, S, D), collect_dtype),      # per-layer hidden states
        jax.ShapeDtypeStruct((L, H, S, S), collect_dtype),    # per-layer attn probs
        jax.ShapeDtypeStruct((S, D), jnp.float32),            # final-LN'd last hidden
    )
    operands = (x_emb, mask, params["fln"], params["slab"], params["wqkv"],
                params["wo"], params["fc1_w"], params["fc2_w"])

    # TODO(synk): v7x — add a leading "parallel" batch / query-block grid axis
    # (with per-core scratch) to use the second TensorCore once the pooler is
    # generalized beyond batch=1.
    # TODO(synk): v5e/v6e at real CLIP scale — int8 weights (+ in-kernel dequant)
    # and Buffered(3) on fc1_w/fc2_w against the weight-DMA roofline; keep
    # bf16/fp8 on v7x (its MXU has no integer path).
    if path == "resident":
        kernel = functools.partial(encoder_kernel_resident, num_layers=L,
                                   D=D, I=I, H=H, hd=hd, eps=eps)
        return pl.pallas_call(
            kernel,
            grid=(1,),
            in_specs=[rep(op.shape) for op in operands],
            out_specs=(rep((L, S, D)), rep((L, H, S, S)), rep((S, D))),
            out_shape=out_shape,
            scratch_shapes=[pltpu.VMEM((S, D), jnp.float32)],
            compiler_params=pltpu.CompilerParams(
                dimension_semantics=("arbitrary",),
                vmem_limit_bytes=32 * 1024 * 1024),
        )(*operands)

    kernel = functools.partial(encoder_kernel_pipelined,
                               D=D, I=I, H=H, hd=hd, eps=eps)
    return pl.pallas_call(
        kernel,
        grid=(L,),
        in_specs=[rep(x_emb.shape), rep(mask.shape), rep(params["fln"].shape),
                  per_layer(params["slab"].shape), per_layer(params["wqkv"].shape),
                  per_layer(params["wo"].shape), per_layer(params["fc1_w"].shape),
                  per_layer(params["fc2_w"].shape)],
        out_specs=(per_layer((L, S, D)), per_layer((L, H, S, S)), rep((S, D))),
        out_shape=out_shape,
        scratch_shapes=[pltpu.VMEM((S, D), jnp.float32),   # resident hidden state
                        pltpu.VMEM((S, D), jnp.float32)],  # per-layer ctx assembly
        compiler_params=pltpu.CompilerParams(
            dimension_semantics=("arbitrary",),
            vmem_limit_bytes=32 * 1024 * 1024),
    )(*operands)


# ------------------------------ parameter init --------------------------------
def init_params(cfg, key):
    D, I, L = cfg.hidden_size, cfg.intermediate_size, cfg.num_hidden_layers
    H = cfg.num_attention_heads
    hd = D // H
    scale = hd ** -0.5
    W = max(D, I, 3 * D)                      # padded slab width
    k_tok, k_pos, k_layers = jax.random.split(key, 3)

    params = {
        "token_embedding": 0.02 * jax.random.normal(
            k_tok, (cfg.vocab_size, D), jnp.float32),
        "position_embedding": 0.02 * jax.random.normal(
            k_pos, (cfg.max_position_embeddings, D), jnp.float32),
        "fln": jnp.stack([jnp.ones((D,), jnp.float32),
                          jnp.zeros((D,), jnp.float32)]),            # (2, D)
    }

    def pad_to(v, n):
        return jnp.pad(v, (0, n - v.shape[0]))

    slab, wqkv, wo, fc1_w, fc2_w = [], [], [], [], []
    lkeys = jax.random.split(k_layers, L)
    for li in range(L):
        kk = jax.random.split(lkeys[li], 10)
        # nn.Linear weights stored as (in, out) so kernels compute x @ W + b
        wq = 0.02 * jax.random.normal(kk[0], (D, D), jnp.float32)
        wk = 0.02 * jax.random.normal(kk[1], (D, D), jnp.float32)
        wv = 0.02 * jax.random.normal(kk[2], (D, D), jnp.float32)
        w_o = 0.02 * jax.random.normal(kk[3], (D, D), jnp.float32)
        w1 = 0.02 * jax.random.normal(kk[4], (D, I), jnp.float32)
        w2 = 0.02 * jax.random.normal(kk[5], (I, D), jnp.float32)
        bq = 0.02 * jax.random.normal(kk[6], (D,), jnp.float32)
        bk = 0.02 * jax.random.normal(kk[7], (D,), jnp.float32)
        bv = 0.02 * jax.random.normal(kk[8], (D,), jnp.float32)
        b1 = 0.02 * jax.random.normal(kk[9], (I,), jnp.float32)
        b_o = jnp.zeros((D,), jnp.float32)
        b2 = jnp.zeros((D,), jnp.float32)
        ln1_w = jnp.ones((D,), jnp.float32); ln1_b = jnp.zeros((D,), jnp.float32)
        ln2_w = jnp.ones((D,), jnp.float32); ln2_b = jnp.zeros((D,), jnp.float32)

        # fold the 1/sqrt(head_dim) attention scale into Wq / bq
        wqkv.append(jnp.concatenate([wq * scale, wk, wv], axis=1))   # (D, 3D)
        qkv_b = jnp.concatenate([bq * scale, bk, bv])                # (3D,)
        wo.append(w_o)                                               # (D, D)
        fc1_w.append(w1)
        fc2_w.append(w2)
        # one padded slab row per small vector -> single DMA descriptor / layer
        slab.append(jnp.stack([pad_to(ln1_w, W), pad_to(ln1_b, W),
                               pad_to(ln2_w, W), pad_to(ln2_b, W),
                               pad_to(b_o, W), pad_to(b2, W),
                               pad_to(b1, W), pad_to(qkv_b, W)]))     # (8, W)

    params.update(
        slab=jnp.stack(slab),                                        # (L, 8, W) f32
        wqkv=jnp.stack(wqkv).astype(jnp.bfloat16),                   # (L, D, 3D)
        wo=jnp.stack(wo).astype(jnp.bfloat16),                       # (L, D, D)
        fc1_w=jnp.stack(fc1_w).astype(jnp.bfloat16),                 # (L, D, I)
        fc2_w=jnp.stack(fc2_w).astype(jnp.bfloat16),                 # (L, I, D)
    )
    return params


# ------------------------------ full forward ----------------------------------
def clip_text_transformer(params, cfg, input_ids, attention_mask=None, *,
                          force_path=None):
    """input_ids: (1, S) int32.  Mirrors BaseModelOutputWithPooling
    (output_attentions=True, output_hidden_states=True as in the torch module)."""
    bsz, seq_len = input_ids.shape
    assert bsz == 1, "pooler in reference module uses squeeze(0); batch=1 expected"

    # ---- embeddings (gathers -> plain JAX glue) ----
    tok = params["token_embedding"][input_ids[0]]                    # (S, D)
    pos = params["position_embedding"][jnp.arange(seq_len)]          # (S, D)
    emb = (tok + pos).astype(jnp.float32)

    # ---- layer-invariant causal + padding mask, built once in the wrapper ----
    rows = jnp.arange(seq_len)[:, None]
    cols = jnp.arange(seq_len)[None, :]
    mask = jnp.where(cols <= rows, 0.0, F32_MIN).astype(jnp.float32)  # (S, S)
    if attention_mask is not None:
        pad = jnp.where(attention_mask[0] > 0, 0.0, F32_MIN).astype(jnp.float32)
        mask = mask + pad[None, :]
    mask = jnp.maximum(mask, F32_MIN)   # avoid -inf where causal & padding overlap

    # ---- fused encoder + final LayerNorm (Pallas) ----
    hs, attn, final = run_encoder(emb, mask, params, cfg, force_path=force_path)

    last_hidden_state = final[None]                                  # (1, S, D)
    hidden_states = (emb[None],) + tuple(
        hs[l][None].astype(jnp.float32) for l in range(cfg.num_hidden_layers))
    attentions = tuple(
        attn[l][None].astype(jnp.float32) for l in range(cfg.num_hidden_layers))

    # ---- pooled output: token at argmax(input_ids) per sequence ----
    eos_idx = jnp.argmax(input_ids.astype(jnp.int32), axis=-1)       # (1,)
    pooled_output = final[eos_idx]                                   # (1, D)

    return dict(
        last_hidden_state=last_hidden_state,
        pooler_output=pooled_output,
        hidden_states=hidden_states,
        attentions=attentions,
    )


# ----------------------------------- main -------------------------------------
if __name__ == "__main__":
    cfg = Config()
    key = jax.random.PRNGKey(0)
    pkey, ikey = jax.random.split(key)

    params = init_params(cfg, pkey)

    seq_len = 8
    input_ids = jax.random.randint(ikey, (1, seq_len), 0, cfg.vocab_size,
                                   dtype=jnp.int32)
    attention_mask = jnp.ones((1, seq_len), dtype=jnp.float32)

    # default path: auto -> "resident" (toy config fits entirely in VMEM)
    out = clip_text_transformer(params, cfg, input_ids, attention_mask)
    jax.block_until_ready(out["last_hidden_state"])
    jax.block_until_ready(out["pooler_output"])

    # also exercise the per-layer-grid path used at real CLIP sizes
    out_pipe = clip_text_transformer(params, cfg, input_ids, attention_mask,
                                     force_path="pipelined")
    jax.block_until_ready(out_pipe["last_hidden_state"])

    assert out["last_hidden_state"].shape == (1, seq_len, cfg.hidden_size)
    assert out["pooler_output"].shape == (1, cfg.hidden_size)
    assert len(out["hidden_states"]) == cfg.num_hidden_layers + 1
    assert len(out["attentions"]) == cfg.num_hidden_layers
    assert out["attentions"][0].shape == (1, cfg.num_attention_heads, seq_len, seq_len)
    assert bool(jnp.all(jnp.isfinite(out["last_hidden_state"])))
    assert bool(jnp.allclose(out["last_hidden_state"], out_pipe["last_hidden_state"],
                             atol=1e-3, rtol=1e-3))
    assert bool(jnp.allclose(out["pooler_output"], out_pipe["pooler_output"],
                             atol=1e-3, rtol=1e-3))

    print("KERNEL_OK")
</pallas_src>

<mosaic_0001>
module attributes {stable_mosaic.version = 11 : i64} {
  func.func @encoder_kernel_resident(%arg0: i32, %arg1: memref<8x32xf32, #tpu.memory_space<vmem>>, %arg2: memref<8x8xf32, #tpu.memory_space<vmem>>, %arg3: memref<2x32xf32, #tpu.memory_space<vmem>>, %arg4: memref<2x8x96xf32, #tpu.memory_space<vmem>>, %arg5: memref<2x32x96xbf16, #tpu.memory_space<vmem>>, %arg6: memref<2x32x32xbf16, #tpu.memory_space<vmem>>, %arg7: memref<2x32x64xbf16, #tpu.memory_space<vmem>>, %arg8: memref<2x64x32xbf16, #tpu.memory_space<vmem>>, %arg9: memref<2x8x32xf32, #tpu.memory_space<vmem>>, %arg10: memref<2x4x8x8xf32, #tpu.memory_space<vmem>>, %arg11: memref<8x32xf32, #tpu.memory_space<vmem>>, %arg12: memref<8x32xf32, #tpu.memory_space<vmem>>) attributes {dimension_semantics = [#tpu.dimension_semantics<arbitrary>], iteration_bounds = array<i64: 1>, scalar_prefetch = 0 : i64, scratch_operands = 1 : i64, tpu.core_type = #tpu.core_type<tc>, window_params = [{pipeline_mode = #tpu.pipeline_mode<synchronous>, transform_indices = @transform_0, window_bounds = array<i64: 8, 32>}, {pipeline_mode = #tpu.pipeline_mode<synchronous>, transform_indices = @transform_1, window_bounds = array<i64: 8, 8>}, {pipeline_mode = #tpu.pipeline_mode<synchronous>, transform_indices = @transform_2, window_bounds = array<i64: 2, 32>}, {pipeline_mode = #tpu.pipeline_mode<synchronous>, transform_indices = @transform_3, window_bounds = array<i64: 2, 8, 96>}, {pipeline_mode = #tpu.pipeline_mode<synchronous>, transform_indices = @transform_4, window_bounds = array<i64: 2, 32, 96>}, {pipeline_mode = #tpu.pipeline_mode<synchronous>, transform_indices = @transform_5, window_bounds = array<i64: 2, 32, 32>}, {pipeline_mode = #tpu.pipeline_mode<synchronous>, transform_indices = @transform_6, window_bounds = array<i64: 2, 32, 64>}, {pipeline_mode = #tpu.pipeline_mode<synchronous>, transform_indices = @transform_7, window_bounds = array<i64: 2, 64, 32>}, {pipeline_mode = #tpu.pipeline_mode<synchronous>, transform_indices = @transform_8, window_bounds = array<i64: 2, 8, 32>}, {pipeline_mode = #tpu.pipeline_mode<synchronous>, transform_indices = @transform_9, window_bounds = array<i64: 2, 4, 8, 8>}, {pipeline_mode = #tpu.pipeline_mode<synchronous>, transform_indices = @transform_10, window_bounds = array<i64: 8, 32>}]} {
    %c0 = arith.constant 0 : index
    %c0_0 = arith.constant 0 : index
    %0 = vector.load %arg1[%c0, %c0_0] : memref<8x32xf32, #tpu.memory_space<vmem>>, vector<8x32xf32>
    %c0_1 = arith.constant 0 : index
    %c0_2 = arith.constant 0 : index
    %1 = vector.load %arg2[%c0_1, %c0_2] : memref<8x8xf32, #tpu.memory_space<vmem>>, vector<8x8xf32>
    %c0_3 = arith.constant 0 : index
    %c0_4 = arith.constant 0 : index
    %c0_5 = arith.constant 0 : index
    %2 = vector.load %arg4[%c0_3, %c0_4, %c0_5] : memref<2x8x96xf32, #tpu.memory_space<vmem>>, vector<1x8x96xf32>
    %3 = vector.shape_cast %2 : vector<1x8x96xf32> to vector<8x96xf32>
    %c0_6 = arith.constant 0 : index
    %c0_7 = arith.constant 0 : index
    %c0_8 = arith.constant 0 : index
    %4 = vector.load %arg5[%c0_6, %c0_7, %c0_8] : memref<2x32x96xbf16, #tpu.memory_space<vmem>>, vector<1x32x96xbf16>
    %5 = vector.shape_cast %4 : vector<1x32x96xbf16> to vector<32x96xbf16>
    %c0_9 = arith.constant 0 : index
    %c0_10 = arith.constant 0 : index
    %c0_11 = arith.constant 0 : index
    %6 = vector.load %arg6[%c0_9, %c0_10, %c0_11] : memref<2x32x32xbf16, #tpu.memory_space<vmem>>, vector<1x32x32xbf16>
    %7 = vector.shape_cast %6 : vector<1x32x32xbf16> to vector<32x32xbf16>
    %c0_12 = arith.constant 0 : index
    %c0_13 = arith.constant 0 : index
    %c0_14 = arith.constant 0 : index
    %8 = vector.load %arg7[%c0_12, %c0_13, %c0_14] : memref<2x32x64xbf16, #tpu.memory_space<vmem>>, vector<1x32x64xbf16>
    %9 = vector.shape_cast %8 : vector<1x32x64xbf16> to vector<32x64xbf16>
    %c0_15 = arith.constant 0 : index
    %c0_16 = arith.constant 0 : index
    %c0_17 = arith.constant 0 : index
    %10 = vector.load %arg8[%c0_15, %c0_16, %c0_17] : memref<2x64x32xbf16, #tpu.memory_space<vmem>>, vector<1x64x32xbf16>
    %11 = vector.shape_cast %10 : vector<1x64x32xbf16> to vector<64x32xbf16>
    %12 = vector.extract_strided_slice %3 {offsets = [0, 0], sizes = [1, 32], strides = [1, 1]} : vector<8x96xf32> to vector<1x32xf32>
    %13 = vector.extract_strided_slice %3 {offsets = [1, 0], sizes = [1, 32], strides = [1, 1]} : vector<8x96xf32> to vector<1x32xf32>
    %14 = vector.extract_strided_slice %3 {offsets = [2, 0], sizes = [1, 32], strides = [1, 1]} : vector<8x96xf32> to vector<1x32xf32>
    %15 = vector.extract_strided_slice %3 {offsets = [3, 0], sizes = [1, 32], strides = [1, 1]} : vector<8x96xf32> to vector<1x32xf32>
    %16 = vector.extract_strided_slice %3 {offsets = [4, 0], sizes = [1, 32], strides = [1, 1]} : vector<8x96xf32> to vector<1x32xf32>
    %17 = vector.extract_strided_slice %3 {offsets = [5, 0], sizes = [1, 32], strides = [1, 1]} : vector<8x96xf32> to vector<1x32xf32>
    %18 = vector.extract_strided_slice %3 {offsets = [6, 0], sizes = [1, 64], strides = [1, 1]} : vector<8x96xf32> to vector<1x64xf32>
    %19 = vector.extract_strided_slice %3 {offsets = [7, 0], sizes = [1, 96], strides = [1, 1]} : vector<8x96xf32> to vector<1x96xf32>
    %cst = arith.constant dense<0.000000e+00> : vector<8xf32>
    %20 = vector.multi_reduction <add>, %0, %cst [1] : vector<8x32xf32> to vector<8xf32>
    %21 = vector.shape_cast %20 : vector<8xf32> to vector<8x1xf32>
    %cst_18 = arith.constant 3.200000e+01 : f32
    %22 = vector.broadcast %cst_18 : f32 to vector<8x1xf32>
    %23 = arith.divf %21, %22 : vector<8x1xf32>
    %24 = vector.broadcast %23 : vector<8x1xf32> to vector<8x32xf32>
    %25 = arith.subf %0, %24 : vector<8x32xf32>
    %26 = arith.mulf %25, %25 : vector<8x32xf32>
    %cst_19 = arith.constant dense<0.000000e+00> : vector<8xf32>
    %27 = vector.multi_reduction <add>, %26, %cst_19 [1] : vector<8x32xf32> to vector<8xf32>
    %28 = vector.shape_cast %27 : vector<8xf32> to vector<8x1xf32>
    %cst_20 = arith.constant 3.200000e+01 : f32
    %29 = vector.broadcast %cst_20 : f32 to vector<8x1xf32>
    %30 = arith.divf %28, %29 : vector<8x1xf32>
    %31 = vector.broadcast %23 : vector<8x1xf32> to vector<8x32xf32>
    %32 = arith.subf %0, %31 : vector<8x32xf32>
    %cst_21 = arith.constant 9.99999974E-6 : f32
    %33 = vector.broadcast %cst_21 : f32 to vector<8x1xf32>
    %34 = arith.addf %30, %33 : vector<8x1xf32>
    %35 = math.rsqrt %34 : vector<8x1xf32>
    %36 = vector.broadcast %35 : vector<8x1xf32> to vector<8x32xf32>
    %37 = arith.mulf %32, %36 : vector<8x32xf32>
    %38 = vector.broadcast %12 : vector<1x32xf32> to vector<8x32xf32>
    %39 = arith.mulf %37, %38 : vector<8x32xf32>
    %40 = vector.broadcast %13 : vector<1x32xf32> to vector<8x32xf32>
    %41 = arith.addf %39, %40 : vector<8x32xf32>
    %42 = arith.truncf %41 : vector<8x32xf32> to vector<8x32xbf16>
    %cst_22 = arith.constant dense<0.000000e+00> : vector<8x96xf32>
    %43 = tpu.matmul %42, %5, %cst_22 {dimension_numbers = #tpu.dot_dimension_numbers<[1], [0], [0], [1], [0, 0, 1, 1], [], []>} : vector<8x32xbf16>, vector<32x96xbf16>, vector<8x96xf32> -> vector<8x96xf32>
    %44 = vector.broadcast %19 : vector<1x96xf32> to vector<8x96xf32>
    %45 = arith.addf %43, %44 : vector<8x96xf32>
    %46 = vector.extract_strided_slice %45 {offsets = [0, 0], sizes = [8, 8], strides = [1, 1]} : vector<8x96xf32> to vector<8x8xf32>
    %47 = vector.extract_strided_slice %45 {offsets = [0, 32], sizes = [8, 8], strides = [1, 1]} : vector<8x96xf32> to vector<8x8xf32>
    %48 = vector.extract_strided_slice %45 {offsets = [0, 64], sizes = [8, 8], strides = [1, 1]} : vector<8x96xf32> to vector<8x8xf32>
    "tpu.trace_start"() <{level = 10 : i32, message = "qe,ke->qk"}> : () -> ()
    %cst_23 = arith.constant dense<0.000000e+00> : vector<8x8xf32>
    %49 = tpu.matmul %46, %47, %cst_23 {dimension_numbers = #tpu.dot_dimension_numbers<[1], [1], [0], [0], [0, 0, 1, 0], [], []>} : vector<8x8xf32>, vector<8x8xf32>, vector<8x8xf32> -> vector<8x8xf32>
    "tpu.trace_stop"() : () -> ()
    %50 = arith.addf %49, %1 : vector<8x8xf32>
    %cst_24 = arith.constant dense<0xFF800000> : vector<8xf32>
    %51 = vector.multi_reduction <maximumf>, %50, %cst_24 [1] : vector<8x8xf32> to vector<8xf32>
    %52 = vector.shape_cast %51 : vector<8xf32> to vector<8x1xf32>
    %53 = vector.broadcast %52 : vector<8x1xf32> to vector<8x8xf32>
    %54 = arith.subf %50, %53 : vector<8x8xf32>
    %55 = math.exp %54 : vector<8x8xf32>
    %cst_25 = arith.constant dense<0.000000e+00> : vector<8xf32>
    %56 = vector.multi_reduction <add>, %55, %cst_25 [1] : vector<8x8xf32> to vector<8xf32>
    %57 = vector.shape_cast %56 : vector<8xf32> to vector<8x1xf32>
    %58 = vector.broadcast %57 : vector<8x1xf32> to vector<8x8xf32>
    %59 = arith.divf %55, %58 : vector<8x8xf32>
    %c0_26 = arith.constant 0 : index
    %c0_27 = arith.constant 0 : index
    %c0_28 = arith.constant 0 : index
    %c0_29 = arith.constant 0 : index
    %60 = vector.load %arg10[%c0_26, %c0_27, %c0_28, %c0_29] : memref<2x4x8x8xf32, #tpu.memory_space<vmem>>, vector<1x1x8x8xf32>
    %61 = vector.shape_cast %60 : vector<1x1x8x8xf32> to vector<8x8xf32>
    %62 = vector.shape_cast %59 : vector<8x8xf32> to vector<1x1x8x8xf32>
    tpu.vector_store %arg10[%c0_26, %c0_27, %c0_28, %c0_29], %62 {strides = array<i32>} : memref<2x4x8x8xf32, #tpu.memory_space<vmem>>, vector<1x1x8x8xf32>,
    %cst_30 = arith.constant dense<0.000000e+00> : vector<8x8xf32>
    %63 = tpu.matmul %59, %48, %cst_30 {dimension_numbers = #tpu.dot_dimension_numbers<[1], [0], [0], [1], [0, 0, 1, 1], [], []>} : vector<8x8xf32>, vector<8x8xf32>, vector<8x8xf32> -> vector<8x8xf32>
    %c0_31 = arith.constant 0 : index
    %c0_32 = arith.constant 0 : index
    %64 = vector.load %arg12[%c0_31, %c0_32] : memref<8x32xf32, #tpu.memory_space<vmem>>, vector<8x8xf32>
    tpu.vector_store %arg12[%c0_31, %c0_32], %63 {strides = array<i32>} : memref<8x32xf32, #tpu.memory_space<vmem>>, vector<8x8xf32>,
    %65 = vector.extract_strided_slice %45 {offsets = [0, 8], sizes = [8, 8], strides = [1, 1]} : vector<8x96xf32> to vector<8x8xf32>
    %66 = vector.extract_strided_slice %45 {offsets = [0, 40], sizes = [8, 8], strides = [1, 1]} : vector<8x96xf32> to vector<8x8xf32>
    %67 = vector.extract_strided_slice %45 {offsets = [0, 72], sizes = [8, 8], strides = [1, 1]} : vector<8x96xf32> to vector<8x8xf32>
    "tpu.trace_start"() <{level = 10 : i32, message = "qe,ke->qk"}> : () -> ()
    %cst_33 = arith.constant dense<0.000000e+00> : vector<8x8xf32>
    %68 = tpu.matmul %65, %66, %cst_33 {dimension_numbers = #tpu.dot_dimension_numbers<[1], [1], [0], [0], [0, 0, 1, 0], [], []>} : vector<8x8xf32>, vector<8x8xf32>, vector<8x8xf32> -> vector<8x8xf32>
    "tpu.trace_stop"() : () -> ()
    %69 = arith.addf %68, %1 : vector<8x8xf32>
    %cst_34 = arith.constant dense<0xFF800000> : vector<8xf32>
    %70 = vector.multi_reduction <maximumf>, %69, %cst_34 [1] : vector<8x8xf32> to vector<8xf32>
    %71 = vector.shape_cast %70 : vector<8xf32> to vector<8x1xf32>
    %72 = vector.broadcast %71 : vector<8x1xf32> to vector<8x8xf32>
    %73 = arith.subf %69, %72 : vector<8x8xf32>
    %74 = math.exp %73 : vector<8x8xf32>
    %cst_35 = arith.constant dense<0.000000e+00> : vector<8xf32>
    %75 = vector.multi_reduction <add>, %74, %cst_35 [1] : vector<8x8xf32> to vector<8xf32>
    %76 = vector.shape_cast %75 : vector<8xf32> to vector<8x1xf32>
    %77 = vector.broadcast %76 : vector<8x1xf32> to vector<8x8xf32>
    %78 = arith.divf %74, %77 : vector<8x8xf32>
    %c0_36 = arith.constant 0 : index
    %c1 = arith.constant 1 : index
    %c0_37 = arith.constant 0 : index
    %c0_38 = arith.constant 0 : index
    %79 = vector.load %arg10[%c0_36, %c1, %c0_37, %c0_38] : memref<2x4x8x8xf32, #tpu.memory_space<vmem>>, vector<1x1x8x8xf32>
    %80 = vector.shape_cast %79 : vector<1x1x8x8xf32> to vector<8x8xf32>
    %81 = vector.shape_cast %78 : vector<8x8xf32> to vector<1x1x8x8xf32>
    tpu.vector_store %arg10[%c0_36, %c1, %c0_37, %c0_38], %81 {strides = array<i32>} : memref<2x4x8x8xf32, #tpu.memory_space<vmem>>, vector<1x1x8x8xf32>,
    %cst_39 = arith.constant dense<0.000000e+00> : vector<8x8xf32>
    %82 = tpu.matmul %78, %67, %cst_39 {dimension_numbers = #tpu.dot_dimension_numbers<[1], [0], [0], [1], [0, 0, 1, 1], [], []>} : vector<8x8xf32>, vector<8x8xf32>, vector<8x8xf32> -> vector<8x8xf32>
    %c0_40 = arith.constant 0 : index
    %c8 = arith.constant 8 : index
    %83 = vector.load %arg12[%c0_40, %c8] : memref<8x32xf32, #tpu.memory_space<vmem>>, vector<8x8xf32>
    tpu.vector_store %arg12[%c0_40, %c8], %82 {strides = array<i32>} : memref<8x32xf32, #tpu.memory_space<vmem>>, vector<8x8xf32>,
    %84 = vector.extract_strided_slice %45 {offsets = [0, 16], sizes = [8, 8], strides = [1, 1]} : vector<8x96xf32> to vector<8x8xf32>
    %85 = vector.extract_strided_slice %45 {offsets = [0, 48], sizes = [8, 8], strides = [1, 1]} : vector<8x96xf32> to vector<8x8xf32>
    %86 = vector.extract_strided_slice %45 {offsets = [0, 80], sizes = [8, 8], strides = [1, 1]} : vector<8x96xf32> to vector<8x8xf32>
    "tpu.trace_start"() <{level = 10 : i32, message = "qe,ke->qk"}> : () -> ()
    %cst_41 = arith.constant dense<0.000000e+00> : vector<8x8xf32>
    %87 = tpu.matmul %84, %85, %cst_41 {dimension_numbers = #tpu.dot_dimension_numbers<[1], [1], [0], [0], [0, 0, 1, 0], [], []>} : vector<8x8xf32>, vector<8x8xf32>, vector<8x8xf32> -> vector<8x8xf32>
    "tpu.trace_stop"() : () -> ()
    %88 = arith.addf %87, %1 : vector<8x8xf32>
    %cst_42 = arith.constant dense<0xFF800000> : vector<8xf32>
    %89 = vector.multi_reduction <maximumf>, %88, %cst_42 [1] : vector<8x8xf32> to vector<8xf32>
    %90 = vector.shape_cast %89 : vector<8xf32> to vector<8x1xf32>
    %91 = vector.broadcast %90 : vector<8x1xf32> to vector<8x8xf32>
    %92 = arith.subf %88, %91 : vector<8x8xf32>
    %93 = math.exp %92 : vector<8x8xf32>
    %cst_43 = arith.constant dense<0.000000e+00> : vector<8xf32>
    %94 = vector.multi_reduction <add>, %93, %cst_43 [1] : vector<8x8xf32> to vector<8xf32>
    %95 = vector.shape_cast %94 : vector<8xf32> to vector<8x1xf32>
    %96 = vector.broadcast %95 : vector<8x1xf32> to vector<8x8xf32>
    %97 = arith.divf %93, %96 : vector<8x8xf32>
    %c0_44 = arith.constant 0 : index
    %c2 = arith.constant 2 : index
    %c0_45 = arith.constant 0 : index
    %c0_46 = arith.constant 0 : index
    %98 = vector.load %arg10[%c0_44, %c2, %c0_45, %c0_46] : memref<2x4x8x8xf32, #tpu.memory_space<vmem>>, vector<1x1x8x8xf32>
    %99 = vector.shape_cast %98 : vector<1x1x8x8xf32> to vector<8x8xf32>
    %100 = vector.shape_cast %97 : vector<8x8xf32> to vector<1x1x8x8xf32>
    tpu.vector_store %arg10[%c0_44, %c2, %c0_45, %c0_46], %100 {strides = array<i32>} : memref<2x4x8x8xf32, #tpu.memory_space<vmem>>, vector<1x1x8x8xf32>,
    %cst_47 = arith.constant dense<0.000000e+00> : vector<8x8xf32>
    %101 = tpu.matmul %97, %86, %cst_47 {dimension_numbers = #tpu.dot_dimension_numbers<[1], [0], [0], [1], [0, 0, 1, 1], [], []>} : vector<8x8xf32>, vector<8x8xf32>, vector<8x8xf32> -> vector<8x8xf32>
    %c0_48 = arith.constant 0 : index
    %c16 = arith.constant 16 : index
    %102 = vector.load %arg12[%c0_48, %c16] : memref<8x32xf32, #tpu.memory_space<vmem>>, vector<8x8xf32>
    tpu.vector_store %arg12[%c0_48, %c16], %101 {strides = array<i32>} : memref<8x32xf32, #tpu.memory_space<vmem>>, vector<8x8xf32>,
    %103 = vector.extract_strided_slice %45 {offsets = [0, 24], sizes = [8, 8], strides = [1, 1]} : vector<8x96xf32> to vector<8x8xf32>
    %104 = vector.extract_strided_slice %45 {offsets = [0, 56], sizes = [8, 8], strides = [1, 1]} : vector<8x96xf32> to vector<8x8xf32>
    %105 = vector.extract_strided_slice %45 {offsets = [0, 88], sizes = [8, 8], strides = [1, 1]} : vector<8x96xf32> to vector<8x8xf32>
    "tpu.trace_start"() <{level = 10 : i32, message = "qe,ke->qk"}> : () -> ()
    %cst_49 = arith.constant dense<0.000000e+00> : vector<8x8xf32>
    %106 = tpu.matmul %103, %104, %cst_49 {dimension_numbers = #tpu.dot_dimension_numbers<[1], [1], [0], [0], [0, 0, 1, 0], [], []>} : vector<8x8xf32>, vector<8x8xf32>, vector<8x8xf32> -> vector<8x8xf32>
    "tpu.trace_stop"() : () -> ()
    %107 = arith.addf %106, %1 : vector<8x8xf32>
    %cst_50 = arith.constant dense<0xFF800000> : vector<8xf32>
    %108 = vector.multi_reduction <maximumf>, %107, %cst_50 [1] : vector<8x8xf32> to vector<8xf32>
    %109 = vector.shape_cast %108 : vector<8xf32> to vector<8x1xf32>
    %110 = vector.broadcast %109 : vector<8x1xf32> to vector<8x8xf32>
    %111 = arith.subf %107, %110 : vector<8x8xf32>
    %112 = math.exp %111 : vector<8x8xf32>
    %cst_51 = arith.constant dense<0.000000e+00> : vector<8xf32>
    %113 = vector.multi_reduction <add>, %112, %cst_51 [1] : vector<8x8xf32> to vector<8xf32>
    %114 = vector.shape_cast %113 : vector<8xf32> to vector<8x1xf32>
    %115 = vector.broadcast %114 : vector<8x1xf32> to vector<8x8xf32>
    %116 = arith.divf %112, %115 : vector<8x8xf32>
    %c0_52 = arith.constant 0 : index
    %c3 = arith.constant 3 : index
    %c0_53 = arith.constant 0 : index
    %c0_54 = arith.constant 0 : index
    %117 = vector.load %arg10[%c0_52, %c3, %c0_53, %c0_54] : memref<2x4x8x8xf32, #tpu.memory_space<vmem>>, vector<1x1x8x8xf32>
    %118 = vector.shape_cast %117 : vector<1x1x8x8xf32> to vector<8x8xf32>
    %119 = vector.shape_cast %116 : vector<8x8xf32> to vector<1x1x8x8xf32>
    tpu.vector_store %arg10[%c0_52, %c3, %c0_53, %c0_54], %119 {strides = array<i32>} : memref<2x4x8x8xf32, #tpu.memory_space<vmem>>, vector<1x1x8x8xf32>,
    %cst_55 = arith.constant dense<0.000000e+00> : vector<8x8xf32>
    %120 = tpu.matmul %116, %105, %cst_55 {dimension_numbers = #tpu.dot_dimension_numbers<[1], [0], [0], [1], [0, 0, 1, 1], [], []>} : vector<8x8xf32>, vector<8x8xf32>, vector<8x8xf32> -> vector<8x8xf32>
    %c0_56 = arith.constant 0 : index
    %c24 = arith.constant 24 : index
    %121 = vector.load %arg12[%c0_56, %c24] : memref<8x32xf32, #tpu.memory_space<vmem>>, vector<8x8xf32>
    tpu.vector_store %arg12[%c0_56, %c24], %120 {strides = array<i32>} : memref<8x32xf32, #tpu.memory_space<vmem>>, vector<8x8xf32>,
    %c0_57 = arith.constant 0 : index
    %c0_58 = arith.constant 0 : index
    %122 = vector.load %arg12[%c0_57, %c0_58] : memref<8x32xf32, #tpu.memory_space<vmem>>, vector<8x32xf32>
    %123 = arith.truncf %122 : vector<8x32xf32> to vector<8x32xbf16>
    %cst_59 = arith.constant dense<0.000000e+00> : vector<8x32xf32>
    %124 = tpu.matmul %123, %7, %cst_59 {dimension_numbers = #tpu.dot_dimension_numbers<[1], [0], [0], [1], [0, 0, 1, 1], [], []>} : vector<8x32xbf16>, vector<32x32xbf16>, vector<8x32xf32> -> vector<8x32xf32>
    %125 = vector.broadcast %16 : vector<1x32xf32> to vector<8x32xf32>
    %126 = arith.addf %124, %125 : vector<8x32xf32>
    %127 = arith.addf %0, %126 : vector<8x32xf32>
    %cst_60 = arith.constant dense<0.000000e+00> : vector<8xf32>
    %128 = vector.multi_reduction <add>, %127, %cst_60 [1] : vector<8x32xf32> to vector<8xf32>
    %129 = vector.shape_cast %128 : vector<8xf32> to vector<8x1xf32>
    %cst_61 = arith.constant 3.200000e+01 : f32
    %130 = vector.broadcast %cst_61 : f32 to vector<8x1xf32>
    %131 = arith.divf %129, %130 : vector<8x1xf32>
    %132 = vector.broadcast %131 : vector<8x1xf32> to vector<8x32xf32>
    %133 = arith.subf %127, %132 : vector<8x32xf32>
    %134 = arith.mulf %133, %133 : vector<8x32xf32>
    %cst_62 = arith.constant dense<0.000000e+00> : vector<8xf32>
    %135 = vector.multi_reduction <add>, %134, %cst_62 [1] : vector<8x32xf32> to vector<8xf32>
    %136 = vector.shape_cast %135 : vector<8xf32> to vector<8x1xf32>
    %cst_63 = arith.constant 3.200000e+01 : f32
    %137 = vector.broadcast %cst_63 : f32 to vector<8x1xf32>
    %138 = arith.divf %136, %137 : vector<8x1xf32>
    %139 = vector.broadcast %131 : vector<8x1xf32> to vector<8x32xf32>
    %140 = arith.subf %127, %139 : vector<8x32xf32>
    %cst_64 = arith.constant 9.99999974E-6 : f32
    %141 = vector.broadcast %cst_64 : f32 to vector<8x1xf32>
    %142 = arith.addf %138, %141 : vector<8x1xf32>
    %143 = math.rsqrt %142 : vector<8x1xf32>
    %144 = vector.broadcast %143 : vector<8x1xf32> to vector<8x32xf32>
    %145 = arith.mulf %140, %144 : vector<8x32xf32>
    %146 = vector.broadcast %14 : vector<1x32xf32> to vector<8x32xf32>
    %147 = arith.mulf %145, %146 : vector<8x32xf32>
    %148 = vector.broadcast %15 : vector<1x32xf32> to vector<8x32xf32>
    %149 = arith.addf %147, %148 : vector<8x32xf32>
    %150 = arith.truncf %149 : vector<8x32xf32> to vector<8x32xbf16>
    %cst_65 = arith.constant dense<0.000000e+00> : vector<8x64xf32>
    %151 = tpu.matmul %150, %9, %cst_65 {dimension_numbers = #tpu.dot_dimension_numbers<[1], [0], [0], [1], [0, 0, 1, 1], [], []>} : vector<8x32xbf16>, vector<32x64xbf16>, vector<8x64xf32> -> vector<8x64xf32>
    %152 = vector.broadcast %18 : vector<1x64xf32> to vector<8x64xf32>
    %153 = arith.addf %151, %152 : vector<8x64xf32>
    %cst_66 = arith.constant 1.702000e+00 : f32
    %154 = vector.broadcast %cst_66 : f32 to vector<8x64xf32>
    %155 = arith.mulf %154, %153 : vector<8x64xf32>
    %156 = arith.negf %155 : vector<8x64xf32>
    %157 = math.exp %156 : vector<8x64xf32>
    %cst_67 = arith.constant 1.000000e+00 : f32
    %158 = vector.broadcast %cst_67 : f32 to vector<8x64xf32>
    %159 = arith.addf %158, %157 : vector<8x64xf32>
    %160 = arith.divf %158, %159 : vector<8x64xf32>
    %161 = arith.mulf %153, %160 : vector<8x64xf32>
    %162 = arith.truncf %161 : vector<8x64xf32> to vector<8x64xbf16>
    %cst_68 = arith.constant dense<0.000000e+00> : vector<8x32xf32>
    %163 = tpu.matmul %162, %11, %cst_68 {dimension_numbers = #tpu.dot_dimension_numbers<[1], [0], [0], [1], [0, 0, 1, 1], [], []>} : vector<8x64xbf16>, vector<64x32xbf16>, vector<8x32xf32> -> vector<8x32xf32>
    %164 = vector.broadcast %17 : vector<1x32xf32> to vector<8x32xf32>
    %165 = arith.addf %163, %164 : vector<8x32xf32>
    %166 = arith.addf %127, %165 : vector<8x32xf32>
    %c0_69 = arith.constant 0 : index
    %c0_70 = arith.constant 0 : index
    %c0_71 = arith.constant 0 : index
    %167 = vector.load %arg9[%c0_69, %c0_70, %c0_71] : memref<2x8x32xf32, #tpu.memory_space<vmem>>, vector<1x8x32xf32>
    %168 = vector.shape_cast %167 : vector<1x8x32xf32> to vector<8x32xf32>
    %169 = vector.shape_cast %166 : vector<8x32xf32> to vector<1x8x32xf32>
    tpu.vector_store %arg9[%c0_69, %c0_70, %c0_71], %169 {strides = array<i32>} : memref<2x8x32xf32, #tpu.memory_space<vmem>>, vector<1x8x32xf32>,
    %c1_72 = arith.constant 1 : index
    %c0_73 = arith.constant 0 : index
    %c0_74 = arith.constant 0 : index
    %170 = vector.load %arg4[%c1_72, %c0_73, %c0_74] : memref<2x8x96xf32, #tpu.memory_space<vmem>>, vector<1x8x96xf32>
    %171 = vector.shape_cast %170 : vector<1x8x96xf32> to vector<8x96xf32>
    %c1_75 = arith.constant 1 : index
    %c0_76 = arith.constant 0 : index
    %c0_77 = arith.constant 0 : index
    %172 = vector.load %arg5[%c1_75, %c0_76, %c0_77] : memref<2x32x96xbf16, #tpu.memory_space<vmem>>, vector<1x32x96xbf16>
    %173 = vector.shape_cast %172 : vector<1x32x96xbf16> to vector<32x96xbf16>
    %c1_78 = arith.constant 1 : index
    %c0_79 = arith.constant 0 : index
    %c0_80 = arith.constant 0 : index
    %174 = vector.load %arg6[%c1_78, %c0_79, %c0_80] : memref<2x32x32xbf16, #tpu.memory_space<vmem>>, vector<1x32x32xbf16>
    %175 = vector.shape_cast %174 : vector<1x32x32xbf16> to vector<32x32xbf16>
    %c1_81 = arith.constant 1 : index
    %c0_82 = arith.constant 0 : index
    %c0_83 = arith.constant 0 : index
    %176 = vector.load %arg7[%c1_81, %c0_82, %c0_83] : memref<2x32x64xbf16, #tpu.memory_space<vmem>>, vector<1x32x64xbf16>
    %177 = vector.shape_cast %176 : vector<1x32x64xbf16> to vector<32x64xbf16>
    %c1_84 = arith.constant 1 : index
    %c0_85 = arith.constant 0 : index
    %c0_86 = arith.constant 0 : index
    %178 = vector.load %arg8[%c1_84, %c0_85, %c0_86] : memref<2x64x32xbf16, #tpu.memory_space<vmem>>, vector<1x64x32xbf16>
    %179 = vector.shape_cast %178 : vector<1x64x32xbf16> to vector<64x32xbf16>
    %180 = vector.extract_strided_slice %171 {offsets = [0, 0], sizes = [1, 32], strides = [1, 1]} : vector<8x96xf32> to vector<1x32xf32>
    %181 = vector.extract_strided_slice %171 {offsets = [1, 0], sizes = [1, 32], strides = [1, 1]} : vector<8x96xf32> to vector<1x32xf32>
    %182 = vector.extract_strided_slice %171 {offsets = [2, 0], sizes = [1, 32], strides = [1, 1]} : vector<8x96xf32> to vector<1x32xf32>
    %183 = vector.extract_strided_slice %171 {offsets = [3, 0], sizes = [1, 32], strides = [1, 1]} : vector<8x96xf32> to vector<1x32xf32>
    %184 = vector.extract_strided_slice %171 {offsets = [4, 0], sizes = [1, 32], strides = [1, 1]} : vector<8x96xf32> to vector<1x32xf32>
    %185 = vector.extract_strided_slice %171 {offsets = [5, 0], sizes = [1, 32], strides = [1, 1]} : vector<8x96xf32> to vector<1x32xf32>
    %186 = vector.extract_strided_slice %171 {offsets = [6, 0], sizes = [1, 64], strides = [1, 1]} : vector<8x96xf32> to vector<1x64xf32>
    %187 = vector.extract_strided_slice %171 {offsets = [7, 0], sizes = [1, 96], strides = [1, 1]} : vector<8x96xf32> to vector<1x96xf32>
    %cst_87 = arith.constant dense<0.000000e+00> : vector<8xf32>
    %188 = vector.multi_reduction <add>, %166, %cst_87 [1] : vector<8x32xf32> to vector<8xf32>
    %189 = vector.shape_cast %188 : vector<8xf32> to vector<8x1xf32>
    %cst_88 = arith.constant 3.200000e+01 : f32
    %190 = vector.broadcast %cst_88 : f32 to vector<8x1xf32>
    %191 = arith.divf %189, %190 : vector<8x1xf32>
    %192 = vector.broadcast %191 : vector<8x1xf32> to vector<8x32xf32>
    %193 = arith.subf %166, %192 : vector<8x32xf32>
    %194 = arith.mulf %193, %193 : vector<8x32xf32>
    %cst_89 = arith.constant dense<0.000000e+00> : vector<8xf32>
    %195 = vector.multi_reduction <add>, %194, %cst_89 [1] : vector<8x32xf32> to vector<8xf32>
    %196 = vector.shape_cast %195 : vector<8xf32> to vector<8x1xf32>
    %cst_90 = arith.constant 3.200000e+01 : f32
    %197 = vector.broadcast %cst_90 : f32 to vector<8x1xf32>
    %198 = arith.divf %196, %197 : vector<8x1xf32>
    %199 = vector.broadcast %191 : vector<8x1xf32> to vector<8x32xf32>
    %200 = arith.subf %166, %199 : vector<8x32xf32>
    %cst_91 = arith.constant 9.99999974E-6 : f32
    %201 = vector.broadcast %cst_91 : f32 to vector<8x1xf32>
    %202 = arith.addf %198, %201 : vector<8x1xf32>
    %203 = math.rsqrt %202 : vector<8x1xf32>
    %204 = vector.broadcast %203 : vector<8x1xf32> to vector<8x32xf32>
    %205 = arith.mulf %200, %204 : vector<8x32xf32>
    %206 = vector.broadcast %180 : vector<1x32xf32> to vector<8x32xf32>
    %207 = arith.mulf %205, %206 : vector<8x32xf32>
    %208 = vector.broadcast %181 : vector<1x32xf32> to vector<8x32xf32>
    %209 = arith.addf %207, %208 : vector<8x32xf32>
    %210 = arith.truncf %209 : vector<8x32xf32> to vector<8x32xbf16>
    %cst_92 = arith.constant dense<0.000000e+00> : vector<8x96xf32>
    %211 = tpu.matmul %210, %173, %cst_92 {dimension_numbers = #tpu.dot_dimension_numbers<[1], [0], [0], [1], [0, 0, 1, 1], [], []>} : vector<8x32xbf16>, vector<32x96xbf16>, vector<8x96xf32> -> vector<8x96xf32>
    %212 = vector.broadcast %187 : vector<1x96xf32> to vector<8x96xf32>
    %213 = arith.addf %211, %212 : vector<8x96xf32>
    %214 = vector.extract_strided_slice %213 {offsets = [0, 0], sizes = [8, 8], strides = [1, 1]} : vector<8x96xf32> to vector<8x8xf32>
    %215 = vector.extract_strided_slice %213 {offsets = [0, 32], sizes = [8, 8], strides = [1, 1]} : vector<8x96xf32> to vector<8x8xf32>
    %216 = vector.extract_strided_slice %213 {offsets = [0, 64], sizes = [8, 8], strides = [1, 1]} : vector<8x96xf32> to vector<8x8xf32>
    "tpu.trace_start"() <{level = 10 : i32, message = "qe,ke->qk"}> : () -> ()
    %cst_93 = arith.constant dense<0.000000e+00> : vector<8x8xf32>
    %217 = tpu.matmul %214, %215, %cst_93 {dimension_numbers = #tpu.dot_dimension_numbers<[1], [1], [0], [0], [0, 0, 1, 0], [], []>} : vector<8x8xf32>, vector<8x8xf32>, vector<8x8xf32> -> vector<8x8xf32>
    "tpu.trace_stop"() : () -> ()
    %218 = arith.addf %217, %1 : vector<8x8xf32>
    %cst_94 = arith.constant dense<0xFF800000> : vector<8xf32>
    %219 = vector.multi_reduction <maximumf>, %218, %cst_94 [1] : vector<8x8xf32> to vector<8xf32>
    %220 = vector.shape_cast %219 : vector<8xf32> to vector<8x1xf32>
    %221 = vector.broadcast %220 : vector<8x1xf32> to vector<8x8xf32>
    %222 = arith.subf %218, %221 : vector<8x8xf32>
    %223 = math.exp %222 : vector<8x8xf32>
    %cst_95 = arith.constant dense<0.000000e+00> : vector<8xf32>
    %224 = vector.multi_reduction <add>, %223, %cst_95 [1] : vector<8x8xf32> to vector<8xf32>
    %225 = vector.shape_cast %224 : vector<8xf32> to vector<8x1xf32>
    %226 = vector.broadcast %225 : vector<8x1xf32> to vector<8x8xf32>
    %227 = arith.divf %223, %226 : vector<8x8xf32>
    %c1_96 = arith.constant 1 : index
    %c0_97 = arith.constant 0 : index
    %c0_98 = arith.constant 0 : index
    %c0_99 = arith.constant 0 : index
    %228 = vector.load %arg10[%c1_96, %c0_97, %c0_98, %c0_99] : memref<2x4x8x8xf32, #tpu.memory_space<vmem>>, vector<1x1x8x8xf32>
    %229 = vector.shape_cast %228 : vector<1x1x8x8xf32> to vector<8x8xf32>
    %230 = vector.shape_cast %227 : vector<8x8xf32> to vector<1x1x8x8xf32>
    tpu.vector_store %arg10[%c1_96, %c0_97, %c0_98, %c0_99], %230 {strides = array<i32>} : memref<2x4x8x8xf32, #tpu.memory_space<vmem>>, vector<1x1x8x8xf32>,
    %cst_100 = arith.constant dense<0.000000e+00> : vector<8x8xf32>
    %231 = tpu.matmul %227, %216, %cst_100 {dimension_numbers = #tpu.dot_dimension_numbers<[1], [0], [0], [1], [0, 0, 1, 1], [], []>} : vector<8x8xf32>, vector<8x8xf32>, vector<8x8xf32> -> vector<8x8xf32>
    %c0_101 = arith.constant 0 : index
    %c0_102 = arith.constant 0 : index
    %232 = vector.load %arg12[%c0_101, %c0_102] : memref<8x32xf32, #tpu.memory_space<vmem>>, vector<8x8xf32>
    tpu.vector_store %arg12[%c0_101, %c0_102], %231 {strides = array<i32>} : memref<8x32xf32, #tpu.memory_space<vmem>>, vector<8x8xf32>,
    %233 = vector.extract_strided_slice %213 {offsets = [0, 8], sizes = [8, 8], strides = [1, 1]} : vector<8x96xf32> to vector<8x8xf32>
    %234 = vector.extract_strided_slice %213 {offsets = [0, 40], sizes = [8, 8], strides = [1, 1]} : vector<8x96xf32> to vector<8x8xf32>
    %235 = vector.extract_strided_slice %213 {offsets = [0, 72], sizes = [8, 8], strides = [1, 1]} : vector<8x96xf32> to vector<8x8xf32>
    "tpu.trace_start"() <{level = 10 : i32, message = "qe,ke->qk"}> : () -> ()
    %cst_103 = arith.constant dense<0.000000e+00> : vector<8x8xf32>
    %236 = tpu.matmul %233, %234, %cst_103 {dimension_numbers = #tpu.dot_dimension_numbers<[1], [1], [0], [0], [0, 0, 1, 0], [], []>} : vector<8x8xf32>, vector<8x8xf32>, vector<8x8xf32> -> vector<8x8xf32>
    "tpu.trace_stop"() : () -> ()
    %237 = arith.addf %236, %1 : vector<8x8xf32>
    %cst_104 = arith.constant dense<0xFF800000> : vector<8xf32>
    %238 = vector.multi_reduction <maximumf>, %237, %cst_104 [1] : vector<8x8xf32> to vector<8xf32>
    %239 = vector.shape_cast %238 : vector<8xf32> to vector<8x1xf32>
    %240 = vector.broadcast %239 : vector<8x1xf32> to vector<8x8xf32>
    %241 = arith.subf %237, %240 : vector<8x8xf32>
    %242 = math.exp %241 : vector<8x8xf32>
    %cst_105 = arith.constant dense<0.000000e+00> : vector<8xf32>
    %243 = vector.multi_reduction <add>, %242, %cst_105 [1] : vector<8x8xf32> to vector<8xf32>
    %244 = vector.shape_cast %243 : vector<8xf32> to vector<8x1xf32>
    %245 = vector.broadcast %244 : vector<8x1xf32> to vector<8x8xf32>
    %246 = arith.divf %242, %245 : vector<8x8xf32>
    %c1_106 = arith.constant 1 : index
    %c1_107 = arith.constant 1 : index
    %c0_108 = arith.constant 0 : index
    %c0_109 = arith.constant 0 : index
    %247 = vector.load %arg10[%c1_106, %c1_107, %c0_108, %c0_109] : memref<2x4x8x8xf32, #tpu.memory_space<vmem>>, vector<1x1x8x8xf32>
    %248 = vector.shape_cast %247 : vector<1x1x8x8xf32> to vector<8x8xf32>
    %249 = vector.shape_cast %246 : vector<8x8xf32> to vector<1x1x8x8xf32>
    tpu.vector_store %arg10[%c1_106, %c1_107, %c0_108, %c0_109], %249 {strides = array<i32>} : memref<2x4x8x8xf32, #tpu.memory_space<vmem>>, vector<1x1x8x8xf32>,
    %cst_110 = arith.constant dense<0.000000e+00> : vector<8x8xf32>
    %250 = tpu.matmul %246, %235, %cst_110 {dimension_numbers = #tpu.dot_dimension_numbers<[1], [0], [0], [1], [0, 0, 1, 1], [], []>} : vector<8x8xf32>, vector<8x8xf32>, vector<8x8xf32> -> vector<8x8xf32>
    %c0_111 = arith.constant 0 : index
    %c8_112 = arith.constant 8 : index
    %251 = vector.load %arg12[%c0_111, %c8_112] : memref<8x32xf32, #tpu.memory_space<vmem>>, vector<8x8xf32>
    tpu.vector_store %arg12[%c0_111, %c8_112], %250 {strides = array<i32>} : memref<8x32xf32, #tpu.memory_space<vmem>>, vector<8x8xf32>,
    %252 = vector.extract_strided_slice %213 {offsets = [0, 16], sizes = [8, 8], strides = [1, 1]} : vector<8x96xf32> to vector<8x8xf32>
    %253 = vector.extract_strided_slice %213 {offsets = [0, 48], sizes = [8, 8], strides = [1, 1]} : vector<8x96xf32> to vector<8x8xf32>
    %254 = vector.extract_strided_slice %213 {offsets = [0, 80], sizes = [8, 8], strides = [1, 1]} : vector<8x96xf32> to vector<8x8xf32>
    "tpu.trace_start"() <{level = 10 : i32, message = "qe,ke->qk"}> : () -> ()
    %cst_113 = arith.constant dense<0.000000e+00> : vector<8x8xf32>
    %255 = tpu.matmul %252, %253, %cst_113 {dimension_numbers = #tpu.dot_dimension_numbers<[1], [1], [0], [0], [0, 0, 1, 0], [], []>} : vector<8x8xf32>, vector<8x8xf32>, vector<8x8xf32> -> vector<8x8xf32>
    "tpu.trace_stop"() : () -> ()
    %256 = arith.addf %255, %1 : vector<8x8xf32>
    %cst_114 = arith.constant dense<0xFF800000> : vector<8xf32>
    %257 = vector.multi_reduction <maximumf>, %256, %cst_114 [1] : vector<8x8xf32> to vector<8xf32>
    %258 = vector.shape_cast %257 : vector<8xf32> to vector<8x1xf32>
    %259 = vector.broadcast %258 : vector<8x1xf32> to vector<8x8xf32>
    %260 = arith.subf %256, %259 : vector<8x8xf32>
    %261 = math.exp %260 : vector<8x8xf32>
    %cst_115 = arith.constant dense<0.000000e+00> : vector<8xf32>
    %262 = vector.multi_reduction <add>, %261, %cst_115 [1] : vector<8x8xf32> to vector<8xf32>
    %263 = vector.shape_cast %262 : vector<8xf32> to vector<8x1xf32>
    %264 = vector.broadcast %263 : vector<8x1xf32> to vector<8x8xf32>
    %265 = arith.divf %261, %264 : vector<8x8xf32>
    %c1_116 = arith.constant 1 : index
    %c2_117 = arith.constant 2 : index
    %c0_118 = arith.constant 0 : index
    %c0_119 = arith.constant 0 : index
    %266 = vector.load %arg10[%c1_116, %c2_117, %c0_118, %c0_119] : memref<2x4x8x8xf32, #tpu.memory_space<vmem>>, vector<1x1x8x8xf32>
    %267 = vector.shape_cast %266 : vector<1x1x8x8xf32> to vector<8x8xf32>
    %268 = vector.shape_cast %265 : vector<8x8xf32> to vector<1x1x8x8xf32>
    tpu.vector_store %arg10[%c1_116, %c2_117, %c0_118, %c0_119], %268 {strides = array<i32>} : memref<2x4x8x8xf32, #tpu.memory_space<vmem>>, vector<1x1x8x8xf32>,
    %cst_120 = arith.constant dense<0.000000e+00> : vector<8x8xf32>
    %269 = tpu.matmul %265, %254, %cst_120 {dimension_numbers = #tpu.dot_dimension_numbers<[1], [0], [0], [1], [0, 0, 1, 1], [], []>} : vector<8x8xf32>, vector<8x8xf32>, vector<8x8xf32> -> vector<8x8xf32>
    %c0_121 = arith.constant 0 : index
    %c16_122 = arith.constant 16 : index
    %270 = vector.load %arg12[%c0_121, %c16_122] : memref<8x32xf32, #tpu.memory_space<vmem>>, vector<8x8xf32>
    tpu.vector_store %arg12[%c0_121, %c16_122], %269 {strides = array<i32>} : memref<8x32xf32, #tpu.memory_space<vmem>>, vector<8x8xf32>,
    %271 = vector.extract_strided_slice %213 {offsets = [0, 24], sizes = [8, 8], strides = [1, 1]} : vector<8x96xf32> to vector<8x8xf32>
    %272 = vector.extract_strided_slice %213 {offsets = [0, 56], sizes = [8, 8], strides = [1, 1]} : vector<8x96xf32> to vector<8x8xf32>
    %273 = vector.extract_strided_slice %213 {offsets = [0, 88], sizes = [8, 8], strides = [1, 1]} : vector<8x96xf32> to vector<8x8xf32>
    "tpu.trace_start"() <{level = 10 : i32, message = "qe,ke->qk"}> : () -> ()
    %cst_123 = arith.constant dense<0.000000e+00> : vector<8x8xf32>
    %274 = tpu.matmul %271, %272, %cst_123 {dimension_numbers = #tpu.dot_dimension_numbers<[1], [1], [0], [0], [0, 0, 1, 0], [], []>} : vector<8x8xf32>, vector<8x8xf32>, vector<8x8xf32> -> vector<8x8xf32>
    "tpu.trace_stop"() : () -> ()
    %275 = arith.addf %274, %1 : vector<8x8xf32>
    %cst_124 = arith.constant dense<0xFF800000> : vector<8xf32>
    %276 = vector.multi_reduction <maximumf>, %275, %cst_124 [1] : vector<8x8xf32> to vector<8xf32>
    %277 = vector.shape_cast %276 : vector<8xf32> to vector<8x1xf32>
    %278 = vector.broadcast %277 : vector<8x1xf32> to vector<8x8xf32>
    %279 = arith.subf %275, %278 : vector<8x8xf32>
    %280 = math.exp %279 : vector<8x8xf32>
    %cst_125 = arith.constant dense<0.000000e+00> : vector<8xf32>
    %281 = vector.multi_reduction <add>, %280, %cst_125 [1] : vector<8x8xf32> to vector<8xf32>
    %282 = vector.shape_cast %281 : vector<8xf32> to vector<8x1xf32>
    %283 = vector.broadcast %282 : vector<8x1xf32> to vector<8x8xf32>
    %284 = arith.divf %280, %283 : vector<8x8xf32>
    %c1_126 = arith.constant 1 : index
    %c3_127 = arith.constant 3 : index
    %c0_128 = arith.constant 0 : index
    %c0_129 = arith.constant 0 : index
    %285 = vector.load %arg10[%c1_126, %c3_127, %c0_128, %c0_129] : memref<2x4x8x8xf32, #tpu.memory_space<vmem>>, vector<1x1x8x8xf32>
    %286 = vector.shape_cast %285 : vector<1x1x8x8xf32> to vector<8x8xf32>
    %287 = vector.shape_cast %284 : vector<8x8xf32> to vector<1x1x8x8xf32>
    tpu.vector_store %arg10[%c1_126, %c3_127, %c0_128, %c0_129], %287 {strides = array<i32>} : memref<2x4x8x8xf32, #tpu.memory_space<vmem>>, vector<1x1x8x8xf32>,
    %cst_130 = arith.constant dense<0.000000e+00> : vector<8x8xf32>
    %288 = tpu.matmul %284, %273, %cst_130 {dimension_numbers = #tpu.dot_dimension_numbers<[1], [0], [0], [1], [0, 0, 1, 1], [], []>} : vector<8x8xf32>, vector<8x8xf32>, vector<8x8xf32> -> vector<8x8xf32>
    %c0_131 = arith.constant 0 : index
    %c24_132 = arith.constant 24 : index
    %289 = vector.load %arg12[%c0_131, %c24_132] : memref<8x32xf32, #tpu.memory_space<vmem>>, vector<8x8xf32>
    tpu.vector_store %arg12[%c0_131, %c24_132], %288 {strides = array<i32>} : memref<8x32xf32, #tpu.memory_space<vmem>>, vector<8x8xf32>,
    %c0_133 = arith.constant 0 : index
    %c0_134 = arith.constant 0 : index
    %290 = vector.load %arg12[%c0_133, %c0_134] : memref<8x32xf32, #tpu.memory_space<vmem>>, vector<8x32xf32>
    %291 = arith.truncf %290 : vector<8x32xf32> to vector<8x32xbf16>
    %cst_135 = arith.constant dense<0.000000e+00> : vector<8x32xf32>
    %292 = tpu.matmul %291, %175, %cst_135 {dimension_numbers = #tpu.dot_dimension_numbers<[1], [0], [0], [1], [0, 0, 1, 1], [], []>} : vector<8x32xbf16>, vector<32x32xbf16>, vector<8x32xf32> -> vector<8x32xf32>
    %293 = vector.broadcast %184 : vector<1x32xf32> to vector<8x32xf32>
    %294 = arith.addf %292, %293 : vector<8x32xf32>
    %295 = arith.addf %166, %294 : vector<8x32xf32>
    %cst_136 = arith.constant dense<0.000000e+00> : vector<8xf32>
    %296 = vector.multi_reduction <add>, %295, %cst_136 [1] : vector<8x32xf32> to vector<8xf32>
    %297 = vector.shape_cast %296 : vector<8xf32> to vector<8x1xf32>
    %cst_137 = arith.constant 3.200000e+01 : f32
    %298 = vector.broadcast %cst_137 : f32 to vector<8x1xf32>
    %299 = arith.divf %297, %298 : vector<8x1xf32>
    %300 = vector.broadcast %299 : vector<8x1xf32> to vector<8x32xf32>
    %301 = arith.subf %295, %300 : vector<8x32xf32>
    %302 = arith.mulf %301, %301 : vector<8x32xf32>
    %cst_138 = arith.constant dense<0.000000e+00> : vector<8xf32>
    %303 = vector.multi_reduction <add>, %302, %cst_138 [1] : vector<8x32xf32> to vector<8xf32>
    %304 = vector.shape_cast %303 : vector<8xf32> to vector<8x1xf32>
    %cst_139 = arith.constant 3.200000e+01 : f32
    %305 = vector.broadcast %cst_139 : f32 to vector<8x1xf32>
    %306 = arith.divf %304, %305 : vector<8x1xf32>
    %307 = vector.broadcast %299 : vector<8x1xf32> to vector<8x32xf32>
    %308 = arith.subf %295, %307 : vector<8x32xf32>
    %cst_140 = arith.constant 9.99999974E-6 : f32
    %309 = vector.broadcast %cst_140 : f32 to vector<8x1xf32>
    %310 = arith.addf %306, %309 : vector<8x1xf32>
    %311 = math.rsqrt %310 : vector<8x1xf32>
    %312 = vector.broadcast %311 : vector<8x1xf32> to vector<8x32xf32>
    %313 = arith.mulf %308, %312 : vector<8x32xf32>
    %314 = vector.broadcast %182 : vector<1x32xf32> to vector<8x32xf32>
    %315 = arith.mulf %313, %314 : vector<8x32xf32>
    %316 = vector.broadcast %183 : vector<1x32xf32> to vector<8x32xf32>
    %317 = arith.addf %315, %316 : vector<8x32xf32>
    %318 = arith.truncf %317 : vector<8x32xf32> to vector<8x32xbf16>
    %cst_141 = arith.constant dense<0.000000e+00> : vector<8x64xf32>
    %319 = tpu.matmul %318, %177, %cst_141 {dimension_numbers = #tpu.dot_dimension_numbers<[1], [0], [0], [1], [0, 0, 1, 1], [], []>} : vector<8x32xbf16>, vector<32x64xbf16>, vector<8x64xf32> -> vector<8x64xf32>
    %320 = vector.broadcast %186 : vector<1x64xf32> to vector<8x64xf32>
    %321 = arith.addf %319, %320 : vector<8x64xf32>
    %cst_142 = arith.constant 1.702000e+00 : f32
    %322 = vector.broadcast %cst_142 : f32 to vector<8x64xf32>
    %323 = arith.mulf %322, %321 : vector<8x64xf32>
    %324 = arith.negf %323 : vector<8x64xf32>
    %325 = math.exp %324 : vector<8x64xf32>
    %cst_143 = arith.constant 1.000000e+00 : f32
    %326 = vector.broadcast %cst_143 : f32 to vector<8x64xf32>
    %327 = arith.addf %326, %325 : vector<8x64xf32>
    %328 = arith.divf %326, %327 : vector<8x64xf32>
    %329 = arith.mulf %321, %328 : vector<8x64xf32>
    %330 = arith.truncf %329 : vector<8x64xf32> to vector<8x64xbf16>
    %cst_144 = arith.constant dense<0.000000e+00> : vector<8x32xf32>
    %331 = tpu.matmul %330, %179, %cst_144 {dimension_numbers = #tpu.dot_dimension_numbers<[1], [0], [0], [1], [0, 0, 1, 1], [], []>} : vector<8x64xbf16>, vector<64x32xbf16>, vector<8x32xf32> -> vector<8x32xf32>
    %332 = vector.broadcast %185 : vector<1x32xf32> to vector<8x32xf32>
    %333 = arith.addf %331, %332 : vector<8x32xf32>
    %334 = arith.addf %295, %333 : vector<8x32xf32>
    %c1_145 = arith.constant 1 : index
    %c0_146 = arith.constant 0 : index
    %c0_147 = arith.constant 0 : index
    %335 = vector.load %arg9[%c1_145, %c0_146, %c0_147] : memref<2x8x32xf32, #tpu.memory_space<vmem>>, vector<1x8x32xf32>
    %336 = vector.shape_cast %335 : vector<1x8x32xf32> to vector<8x32xf32>
    %337 = vector.shape_cast %334 : vector<8x32xf32> to vector<1x8x32xf32>
    tpu.vector_store %arg9[%c1_145, %c0_146, %c0_147], %337 {strides = array<i32>} : memref<2x8x32xf32, #tpu.memory_space<vmem>>, vector<1x8x32xf32>,
    %c0_148 = arith.constant 0 : index
    %c0_149 = arith.constant 0 : index
    %338 = vector.load %arg3[%c0_148, %c0_149] : memref<2x32xf32, #tpu.memory_space<vmem>>, vector<1x32xf32>
    %c1_150 = arith.constant 1 : index
    %c0_151 = arith.constant 0 : index
    %339 = vector.load %arg3[%c1_150, %c0_151] : memref<2x32xf32, #tpu.memory_space<vmem>>, vector<1x32xf32>
    %cst_152 = arith.constant dense<0.000000e+00> : vector<8xf32>
    %340 = vector.multi_reduction <add>, %334, %cst_152 [1] : vector<8x32xf32> to vector<8xf32>
    %341 = vector.shape_cast %340 : vector<8xf32> to vector<8x1xf32>
    %cst_153 = arith.constant 3.200000e+01 : f32
    %342 = vector.broadcast %cst_153 : f32 to vector<8x1xf32>
    %343 = arith.divf %341, %342 : vector<8x1xf32>
    %344 = vector.broadcast %343 : vector<8x1xf32> to vector<8x32xf32>
    %345 = arith.subf %334, %344 : vector<8x32xf32>
    %346 = arith.mulf %345, %345 : vector<8x32xf32>
    %cst_154 = arith.constant dense<0.000000e+00> : vector<8xf32>
    %347 = vector.multi_reduction <add>, %346, %cst_154 [1] : vector<8x32xf32> to vector<8xf32>
    %348 = vector.shape_cast %347 : vector<8xf32> to vector<8x1xf32>
    %cst_155 = arith.constant 3.200000e+01 : f32
    %349 = vector.broadcast %cst_155 : f32 to vector<8x1xf32>
    %350 = arith.divf %348, %349 : vector<8x1xf32>
    %351 = vector.broadcast %343 : vector<8x1xf32> to vector<8x32xf32>
    %352 = arith.subf %334, %351 : vector<8x32xf32>
    %cst_156 = arith.constant 9.99999974E-6 : f32
    %353 = vector.broadcast %cst_156 : f32 to vector<8x1xf32>
    %354 = arith.addf %350, %353 : vector<8x1xf32>
    %355 = math.rsqrt %354 : vector<8x1xf32>
    %356 = vector.broadcast %355 : vector<8x1xf32> to vector<8x32xf32>
    %357 = arith.mulf %352, %356 : vector<8x32xf32>
    %358 = vector.broadcast %338 : vector<1x32xf32> to vector<8x32xf32>
    %359 = arith.mulf %357, %358 : vector<8x32xf32>
    %360 = vector.broadcast %339 : vector<1x32xf32> to vector<8x32xf32>
    %361 = arith.addf %359, %360 : vector<8x32xf32>
    %c0_157 = arith.constant 0 : index
    %c0_158 = arith.constant 0 : index
    %362 = vector.load %arg11[%c0_157, %c0_158] : memref<8x32xf32, #tpu.memory_space<vmem>>, vector<8x32xf32>
    tpu.vector_store %arg11[%c0_157, %c0_158], %361 {strides = array<i32>} : memref<8x32xf32, #tpu.memory_space<vmem>>, vector<8x32xf32>,
    return
  }
  func.func @transform_0(%arg0: i32) -> (i32, i32) {
    %c0_i32 = arith.constant 0 : i32
    %c0_i32_0 = arith.constant 0 : i32
    %c0_i32_1 = arith.constant 0 : i32
    return %c0_i32, %c0_i32_0 : i32, i32
  }
  func.func @transform_1(%arg0: i32) -> (i32, i32) {
    %c0_i32 = arith.constant 0 : i32
    %c0_i32_0 = arith.constant 0 : i32
    %c0_i32_1 = arith.constant 0 : i32
    return %c0_i32, %c0_i32_0 : i32, i32
  }
  func.func @transform_2(%arg0: i32) -> (i32, i32) {
    %c0_i32 = arith.constant 0 : i32
    %c0_i32_0 = arith.constant 0 : i32
    %c0_i32_1 = arith.constant 0 : i32
    return %c0_i32, %c0_i32_0 : i32, i32
  }
  func.func @transform_3(%arg0: i32) -> (i32, i32, i32) {
    %c0_i32 = arith.constant 0 : i32
    %c0_i32_0 = arith.constant 0 : i32
    %c0_i32_1 = arith.constant 0 : i32
    %c0_i32_2 = arith.constant 0 : i32
    return %c0_i32, %c0_i32_0, %c0_i32_1 : i32, i32, i32
  }
  func.func @transform_4(%arg0: i32) -> (i32, i32, i32) {
    %c0_i32 = arith.constant 0 : i32
    %c0_i32_0 = arith.constant 0 : i32
    %c0_i32_1 = arith.constant 0 : i32
    %c0_i32_2 = arith.constant 0 : i32
    return %c0_i32, %c0_i32_0, %c0_i32_1 : i32, i32, i32
  }
  func.func @transform_5(%arg0: i32) -> (i32, i32, i32) {
    %c0_i32 = arith.constant 0 : i32
    %c0_i32_0 = arith.constant 0 : i32
    %c0_i32_1 = arith.constant 0 : i32
    %c0_i32_2 = arith.constant 0 : i32
    return %c0_i32, %c0_i32_0, %c0_i32_1 : i32, i32, i32
  }
  func.func @transform_6(%arg0: i32) -> (i32, i32, i32) {
    %c0_i32 = arith.constant 0 : i32
    %c0_i32_0 = arith.constant 0 : i32
    %c0_i32_1 = arith.constant 0 : i32
    %c0_i32_2 = arith.constant 0 : i32
    return %c0_i32, %c0_i32_0, %c0_i32_1 : i32, i32, i32
  }
  func.func @transform_7(%arg0: i32) -> (i32, i32, i32) {
    %c0_i32 = arith.constant 0 : i32
    %c0_i32_0 = arith.constant 0 : i32
    %c0_i32_1 = arith.constant 0 : i32
    %c0_i32_2 = arith.constant 0 : i32
    return %c0_i32, %c0_i32_0, %c0_i32_1 : i32, i32, i32
  }
  func.func @transform_8(%arg0: i32) -> (i32, i32, i32) {
    %c0_i32 = arith.constant 0 : i32
    %c0_i32_0 = arith.constant 0 : i32
    %c0_i32_1 = arith.constant 0 : i32
    %c0_i32_2 = arith.constant 0 : i32
    return %c0_i32, %c0_i32_0, %c0_i32_1 : i32, i32, i32
  }
  func.func @transform_9(%arg0: i32) -> (i32, i32, i32, i32) {
    %c0_i32 = arith.constant 0 : i32
    %c0_i32_0 = arith.constant 0 : i32
    %c0_i32_1 = arith.constant 0 : i32
    %c0_i32_2 = arith.constant 0 : i32
    %c0_i32_3 = arith.constant 0 : i32
    return %c0_i32, %c0_i32_0, %c0_i32_1, %c0_i32_2 : i32, i32, i32, i32
  }
  func.func @transform_10(%arg0: i32) -> (i32, i32) {
    %c0_i32 = arith.constant 0 : i32
    %c0_i32_0 = arith.constant 0 : i32
    %c0_i32_1 = arith.constant 0 : i32
    return %c0_i32, %c0_i32_0 : i32, i32
  }
}

</mosaic_0001>

<llo_original>
// kernel: tpu_custom_call.1
$region0: #{tpu_custom_call.1}
  #allocation0 [shape = 'u32[]', space=smem, size = 0x4, offset = 0x4, fixed_abs, tag = 'smem constant byte address 0x4 - core index']
  #allocation1 [shape = 'u32[144,128]{1,0:T(1,128)}', space=vmem, size = 0x12000, scoped, tag = 'internal scratch']
  #allocation2 [shape = 'f32[8,32]{1,0:T(8,128)}', space=vmem, size = 0x1000, scoped, tag = 'scratch operand']
  %s0 = inlined_call_operand.hbm [shape: f32[8,32], index: 0, kind: input, shape index: {}]
  %s1 = inlined_call_operand.hbm [shape: f32[8,8], index: 1, kind: input, shape index: {}]
  %s2 = inlined_call_operand.vmem [shape: f32[2,32], index: 2, kind: input, shape index: {}]
  %s3 = inlined_call_operand.hbm [shape: f32[2,8,96], index: 3, kind: input, shape index: {}]
  %s4 = inlined_call_operand.vmem [shape: bf16[2,32,96], index: 4, kind: input, shape index: {}]
  %s5 = inlined_call_operand.vmem [shape: bf16[2,32,32], index: 5, kind: input, shape index: {}]
  %s6 = inlined_call_operand.vmem [shape: bf16[2,32,64], index: 6, kind: input, shape index: {}]
  %s7 = inlined_call_operand.vmem [shape: bf16[2,64,32], index: 7, kind: input, shape index: {}]
  %s8 = inlined_call_operand.hbm [shape: f32[2,8,32], index: 8, kind: output, shape index: {0}]
  %s9 = inlined_call_operand.hbm [shape: f32[2,4,8,8], index: 9, kind: output, shape index: {1}]
  %s10 = inlined_call_operand.hbm [shape: f32[8,32], index: 10, kind: output, shape index: {2}]
  %11 = xla_tuple %s8, %s9, %s10
  %s12 = sld [smem:[#allocation0]]
  $region70: #{tpu_custom_call.1} parent=0
    _
  %s14 = ssub.s32 1, %s12
  %s15 = scalar_select 0, %s14, %s12
  $region1: #{tpu_custom_call.1} parent=0
    #allocation3 [shape = 'u8[4096]{0}', space=vmem, size = 0x1000, scoped, tag = 'input window, operand 0, single buffered']
    #allocation4 [shape = 's32[1]{0}', space=sflag, size = 0x4, scoped, tag = 'scoped memory for tpu_custom_call.1']
    #allocation5 [shape = 's32[1]{0}', space=sflag, size = 0x4, scoped, tag = 'scoped memory for tpu_custom_call.1']
    #allocation6 [shape = 'u8[4096]{0}', space=vmem, size = 0x1000, scoped, tag = 'input window, operand 1, single buffered']
    #allocation7 [shape = 's32[1]{0}', space=sflag, size = 0x4, scoped, tag = 'scoped memory for tpu_custom_call.1']
    #allocation8 [shape = 'u8[8192]{0}', space=vmem, size = 0x2000, scoped, tag = 'input window, operand 3, single buffered']
    #allocation9 [shape = 'u8[8192]{0}', space=vmem, size = 0x2000, scoped, tag = 'output window, operand 0, single buffered']
    #allocation10 [shape = 'u8[32768]{0}', space=vmem, size = 0x8000, scoped, tag = 'output window, operand 1, single buffered']
    #allocation11 [shape = 's32[1]{0}', space=sflag, size = 0x4, scoped, tag = 'scoped memory for tpu_custom_call.1']
    #allocation12 [shape = 'u8[4096]{0}', space=vmem, size = 0x1000, scoped, tag = 'output window, operand 2, single buffered']
    %16 = vsyncpa [#allocation4], 0
    %17 = vsyncpa [#allocation7], 0
    %18 = vsyncpa [#allocation5], 0
    %19 = vsyncpa [#allocation11], 0
    // Predicated region
    $region2: #{tpu_custom_call.1} parent=1 // pred_check
      _
    $region3: #{tpu_custom_call.1} parent=1 // pred_check_branch
      %21 = sbr.rel (0) target = $region5
    $region4: #{tpu_custom_call.1} parent=1 // pred_region
      %s23 = ssub.s32 128, 128
      %24 = vsyncadd [#allocation4], %s23
      %s26 = sshll.u32 [#allocation3], 4
      %s27 = int_to_ptr.vmem [resolvable:$true] %s26
      %29 = dma.hbm_to_vmem [thread:$0]  %s0, 128, %s27, [#allocation4]
    $region5: #{tpu_custom_call.1} parent=1 // pred_fallthru
      _
    // Predicated region
    $region6: #{tpu_custom_call.1} parent=1 // pred_check
      _
    $region7: #{tpu_custom_call.1} parent=1 // pred_check_branch
      %31 = sbr.rel (0) target = $region9
    $region8: #{tpu_custom_call.1} parent=1 // pred_region
      %s33 = ssub.s32 128, 128
      %34 = vsyncadd [#allocation7], %s33
      %s36 = sshll.u32 [#allocation6], 4
      %s37 = int_to_ptr.vmem [resolvable:$true] %s36
      %39 = dma.hbm_to_vmem [thread:$0]  %s1, 128, %s37, [#allocation7]
    $region9: #{tpu_custom_call.1} parent=1 // pred_fallthru
      _
    // Predicated region
    $region10: #{tpu_custom_call.1} parent=1 // pred_check
      _
    $region11: #{tpu_custom_call.1} parent=1 // pred_check_branch
      %41 = sbr.rel (0) target = $region13
    $region12: #{tpu_custom_call.1} parent=1 // pred_region
      _
    $region13: #{tpu_custom_call.1} parent=1 // pred_fallthru
      _
    // Predicated region
    $region14: #{tpu_custom_call.1} parent=1 // pred_check
      _
    $region15: #{tpu_custom_call.1} parent=1 // pred_check_branch
      %43 = sbr.rel (0) target = $region17
    $region16: #{tpu_custom_call.1} parent=1 // pred_region
      %s45 = ssub.s32 256, 256
      %46 = vsyncadd [#allocation7], %s45
      %s47 = sshll.u32 [#allocation8], 4
      %s48 = int_to_ptr.vmem [resolvable:$true] %s47
      %53 = dma.hbm_to_vmem [thread:$0]  %s3, 256, %s48, [#allocation7], 128, 128, 8
    $region17: #{tpu_custom_call.1} parent=1 // pred_fallthru
      _
    // Predicated region
    $region18: #{tpu_custom_call.1} parent=1 // pred_check
      _
    $region19: #{tpu_custom_call.1} parent=1 // pred_check_branch
      %55 = sbr.rel (0) target = $region21
    $region20: #{tpu_custom_call.1} parent=1 // pred_region
      _
    $region21: #{tpu_custom_call.1} parent=1 // pred_fallthru
      _
    // Predicated region
    $region22: #{tpu_custom_call.1} parent=1 // pred_check
      _
    $region23: #{tpu_custom_call.1} parent=1 // pred_check_branch
      %57 = sbr.rel (0) target = $region25
    $region24: #{tpu_custom_call.1} parent=1 // pred_region
      _
    $region25: #{tpu_custom_call.1} parent=1 // pred_fallthru
      _
    // Predicated region
    $region26: #{tpu_custom_call.1} parent=1 // pred_check
      _
    $region27: #{tpu_custom_call.1} parent=1 // pred_check_branch
      %59 = sbr.rel (0) target = $region29
    $region28: #{tpu_custom_call.1} parent=1 // pred_region
      _
    $region29: #{tpu_custom_call.1} parent=1 // pred_fallthru
      _
    // Predicated region
    $region30: #{tpu_custom_call.1} parent=1 // pred_check
      _
    $region31: #{tpu_custom_call.1} parent=1 // pred_check_branch
      %61 = sbr.rel (0) target = $region33
    $region32: #{tpu_custom_call.1} parent=1 // pred_region
      _
    $region33: #{tpu_custom_call.1} parent=1 // pred_fallthru
      _
    // Predicated region
    $region34: #{tpu_custom_call.1} parent=1 // pred_check
      _
    $region35: #{tpu_custom_call.1} parent=1 // pred_check_branch
      %63 = sbr.rel (0) target = $region37
    $region36: #{tpu_custom_call.1} parent=1 // pred_region
      %64 = dma.done [#allocation4], 128
    $region37: #{tpu_custom_call.1} parent=1 // pred_fallthru
      _
    // Predicated region
    $region38: #{tpu_custom_call.1} parent=1 // pred_check
      _
    $region39: #{tpu_custom_call.1} parent=1 // pred_check_branch
      %66 = sbr.rel (0) target = $region41
    $region40: #{tpu_custom_call.1} parent=1 // pred_region
      %67 = dma.done [#allocation7], 128
    $region41: #{tpu_custom_call.1} parent=1 // pred_fallthru
      _
    // Predicated region
    $region42: #{tpu_custom_call.1} parent=1 // pred_check
      _
    $region43: #{tpu_custom_call.1} parent=1 // pred_check_branch
      %69 = sbr.rel (0) target = $region45
    $region44: #{tpu_custom_call.1} parent=1 // pred_region
      %70 = dma.done [#allocation7], 256
    $region45: #{tpu_custom_call.1} parent=1 // pred_fallthru
      _
    %v72 = vld [vmem:[#allocation3] sm:$0xff]
    %v73 = vld [vmem:[#allocation6] sm:$0xff]
    %v74 = vld [vmem:[#allocation8] sm:$0xff]
    %v75 = vld [vmem:[%s4] sm:$0xf]
    %v76 = vld [vmem:[%s4 + $0x4] sm:$0xf]
    %v77 = vld [vmem:[%s4 + $0x8] sm:$0xf]
    %v78 = vld [vmem:[%s4 + $0xc] sm:$0xf]
    %v79 = vld [vmem:[%s5] sm:$0xf]
    %v80 = vld [vmem:[%s5 + $0x4] sm:$0xf]
    %v81 = vld [vmem:[%s5 + $0x8] sm:$0xf]
    %v82 = vld [vmem:[%s5 + $0xc] sm:$0xf]
    %v83 = vld [vmem:[%s6] sm:$0xf]
    %v84 = vld [vmem:[%s6 + $0x4] sm:$0xf]
    %v85 = vld [vmem:[%s6 + $0x8] sm:$0xf]
    %v86 = vld [vmem:[%s6 + $0xc] sm:$0xf]
    %v87 = vld [vmem:[%s7] sm:$0xf]
    %v88 = vld [vmem:[%s7 + $0x4] sm:$0xf]
    %v89 = vld [vmem:[%s7 + $0x8] sm:$0xf]
    %v90 = vld [vmem:[%s7 + $0xc] sm:$0xf]
    %v91 = vld [vmem:[%s7 + $0x10] sm:$0xf]
    %v92 = vld [vmem:[%s7 + $0x14] sm:$0xf]
    %v93 = vld [vmem:[%s7 + $0x18] sm:$0xf]
    %v94 = vld [vmem:[%s7 + $0x1c] sm:$0xf]
    %vm95 = vcmask 261120
    %v96 = vsel %vm95, %v72, 0.0
    %97 = vadd.xlane.f32.xlu0 %v96
    %v98 = vpop.xlane.xlu0 %97
    %v99 = vrcp.pop 32.0
    %v100 = vmul.f32 %v98, %v99
    %v101 = vsub.f32 %v72, %v100
    %v102 = vmul.f32 %v101, %v101
    %v103 = vsel %vm95, %v102, 0.0
    %104 = vadd.xlane.f32.xlu0 %v103
    %v105 = vpop.xlane.xlu0 %104
    %v106 = vmul.f32 %v105, %v99
    %v107 = vadd.f32 %v106, 1e-05
    %v108 = vrsqrt.pop %v107
    %v109 = vmul.f32 %v101, %v108
    %v110 = vlaneseq
    %v111 = vshrl.u32 %v110, 7
    %v112 = vsub.s32 0, %v111
    %v113 = vrot.slane %v74, %v112
    %v114 = vmul.f32 %v109, %v113
    %v115 = vlaneseq
    %v116 = vshrl.u32 %v115, 7
    %v117 = vsub.s32 1, %v116
    %v118 = vrot.slane %v74, %v117
    %v119 = vadd.f32 %v114, %v118
    %v120 = vpack.c.bf16 %v119, %v119
    %v121 = vlaneseq
    %v122 = vshrl.u32 %v121, 7
    %v123 = vsub.s32 7, %v122
    %v124 = vrot.slane %v74, %v123
    %v129 = vunpack.c.l.b16 %v75
    %v130 = vunpack.c.l.b16 %v76
    %v131 = vunpack.c.l.b16 %v77
    %v132 = vunpack.c.l.b16 %v78
    %v133 = vpack.c.b16 %v130, %v129
    %v134 = vpack.c.b16 %v132, %v131
    %v138 = vsel %vm95, %v120, 0
    %140 = vmatprep.subr.bf16.mxu0 0
    %141 = vmatpush1.bf16.msra.mxu0 %v133
    %142 = vmatprep.subr.bf16.mxu0 0
    %143 = vmatpush1.bf16.msra.mxu0 %v134
    %144 = vmatprep.subr.bf16.mxu0 0
    %145 = vmatpush1.bf16.msra.mxu0 0
    %146 = vmatprep.subr.bf16.mxu0 0
    %147 = vmatpush1.bf16.msra.mxu0 0
    %148 = vmatprep.subr.bf16.mxu0 0
    %149 = vmatpush1.bf16.msra.mxu0 0
    %150 = vmatprep.subr.bf16.mxu0 0
    %151 = vmatpush1.bf16.msra.mxu0 0
    %152 = vmatprep.subr.bf16.mxu0 0
    %153 = vmatpush1.bf16.msra.mxu0 0
    %154 = vmatprep.subr.bf16.mxu0 0
    %155 = vmatpush1.bf16.msra.mxu0 0
    %156 = vmatprep.subr.bf16.mxu0 0
    %157 = vmatpush1.bf16.msra.mxu0 0
    %158 = vmatprep.subr.bf16.mxu0 0
    %159 = vmatpush1.bf16.msra.mxu0 0
    %160 = vmatprep.subr.bf16.mxu0 0
    %161 = vmatpush1.bf16.msra.mxu0 0
    %162 = vmatprep.subr.bf16.mxu0 0
    %163 = vmatpush1.bf16.msra.mxu0 0
    %164 = vmatprep.subr.bf16.mxu0 0
    %165 = vmatpush1.bf16.msra.mxu0 0
    %166 = vmatprep.subr.bf16.mxu0 0
    %167 = vmatpush1.bf16.msra.mxu0 0
    %168 = vmatprep.subr.bf16.mxu0 0
    %169 = vmatpush1.bf16.msra.mxu0 0
    %170 = vmatprep.subr.bf16.mxu0 0
    %171 = vmatpush1.bf16.msra.mxu0 0
    %172 = vmatprep.mubr.bf16.mxu0 0
    %173 = vmatmul.mubr.bf16.gmra.mrb[0].mxu0 %v138
    %v174 = vpop.f32.mrb[0].mxu0
    %v175 = vadd.f32 %v124, %v174
    %v176 = vpop.f32.mrb[0].mxu0
    %v177 = vpop.f32.mrb[0].mxu0
    %v178 = vpop.f32.mrb[0].mxu0
    %179 = vdwg.mxu0
    %181 = vrot.lane.b32.xlu0 %v175, 96
    %v182 = vpop.permute.xlu0 %181
    %vm183 = vcmask 64512
    %v184 = vsel %vm183, %v175, 0
    %v186 = vsel %vm183, %v182, 0
    %188 = vmatprep.subr.mxu0 0.0
    %189 = vmatpush1.xpose.msra.mxu0 %v186
    %190 = vmatprep.subr.mxu0 0.0
    %191 = vmatpush1.xpose.msra.mxu0 0.0
    %192 = vmatprep.subr.mxu0 0.0
    %193 = vmatpush1.xpose.msra.mxu0 0.0
    %194 = vmatprep.subr.mxu0 0.0
    %195 = vmatpush1.xpose.msra.mxu0 0.0
    %196 = vmatprep.subr.mxu0 0.0
    %197 = vmatpush1.xpose.msra.mxu0 0.0
    %198 = vmatprep.subr.mxu0 0.0
    %199 = vmatpush1.xpose.msra.mxu0 0.0
    %200 = vmatprep.subr.mxu0 0.0
    %201 = vmatpush1.xpose.msra.mxu0 0.0
    %202 = vmatprep.subr.mxu0 0.0
    %203 = vmatpush1.xpose.msra.mxu0 0.0
    %204 = vmatprep.subr.mxu0 0.0
    %205 = vmatpush1.xpose.msra.mxu0 0.0
    %206 = vmatprep.subr.mxu0 0.0
    %207 = vmatpush1.xpose.msra.mxu0 0.0
    %208 = vmatprep.subr.mxu0 0.0
    %209 = vmatpush1.xpose.msra.mxu0 0.0
    %210 = vmatprep.subr.mxu0 0.0
    %211 = vmatpush1.xpose.msra.mxu0 0.0
    %212 = vmatprep.subr.mxu0 0.0
    %213 = vmatpush1.xpose.msra.mxu0 0.0
    %214 = vmatprep.subr.mxu0 0.0
    %215 = vmatpush1.xpose.msra.mxu0 0.0
    %216 = vmatprep.subr.mxu0 0.0
    %217 = vmatpush1.xpose.msra.mxu0 0.0
    %218 = vmatprep.subr.mxu0 0.0
    %219 = vmatpush1.xpose.msra.mxu0 0.0
    %220 = vmatprep.subr.mxu0 0.0
    %221 = vmatpush1.xpose.msra.mxu0 0.0
    %222 = vmatprep.subr.mxu0 0.0
    %223 = vmatpush1.xpose.msra.mxu0 0.0
    %224 = vmatprep.subr.mxu0 0.0
    %225 = vmatpush1.xpose.msra.mxu0 0.0
    %226 = vmatprep.subr.mxu0 0.0
    %227 = vmatpush1.xpose.msra.mxu0 0.0
    %228 = vmatprep.subr.mxu0 0.0
    %229 = vmatpush1.xpose.msra.mxu0 0.0
    %230 = vmatprep.subr.mxu0 0.0
    %231 = vmatpush1.xpose.msra.mxu0 0.0
    %232 = vmatprep.subr.mxu0 0.0
    %233 = vmatpush1.xpose.msra.mxu0 0.0
    %234 = vmatprep.subr.mxu0 0.0
    %235 = vmatpush1.xpose.msra.mxu0 0.0
    %236 = vmatprep.subr.mxu0 0.0
    %237 = vmatpush1.xpose.msra.mxu0 0.0
    %238 = vmatprep.subr.mxu0 0.0
    %239 = vmatpush1.xpose.msra.mxu0 0.0
    %240 = vmatprep.subr.mxu0 0.0
    %241 = vmatpush1.xpose.msra.mxu0 0.0
    %242 = vmatprep.subr.mxu0 0.0
    %243 = vmatpush1.xpose.msra.mxu0 0.0
    %244 = vmatprep.subr.mxu0 0.0
    %245 = vmatpush1.xpose.msra.mxu0 0.0
    %246 = vmatprep.subr.mxu0 0.0
    %247 = vmatpush1.xpose.msra.mxu0 0.0
    %248 = vmatprep.subr.mxu0 0.0
    %249 = vmatpush1.xpose.msra.mxu0 0.0
    %250 = vmatprep.subr.mxu0 0.0
    %251 = vmatpush1.xpose.msra.mxu0 0.0
    %252 = vmatprep.mubr.f32.mxu0 0.0
    %253 = vmatmul.mubr.f32.gmra.mrb[0].mxu0 %v184
    %v254 = vpop.f32.mrb[0].mxu0
    %v255 = vadd.f32 %v73, %v254
    %v256 = vpop.f32.mrb[0].mxu0
    %257 = vdwg.mxu0
    %v258 = vsel %vm183, %v255, -inf
    %259 = vmax.xlane.f32.xlu0 %v258
    %v260 = vpop.xlane.xlu0 %259
    %v261 = vsub.f32 %v255, %v260
    %v262 = vmul.f32 %v261, 1.442695
    %v263 = vpow.pop %v262
    %v264 = vsel %vm183, %v263, 0.0
    %265 = vadd.xlane.f32.xlu0 %v264
    %v266 = vpop.xlane.xlu0 %265
    %v267 = vrcp.pop %v266
    %v268 = vmul.f32 %v263, %v267
    %269 = vst.msk [vmem:[#allocation10] sm:$0xff] %vm183, %v268
    %270 = vrot.lane.b32.xlu0 %v175, 64
    %v271 = vpop.permute.xlu0 %270
    %v274 = vsel %vm183, %v268, 0
    %276 = vmatprep.subr.mxu0 0.0
    %277 = vmatpush1.msra.mxu0 %v271
    %278 = vmatprep.subr.mxu0 0.0
    %279 = vmatpush1.msra.mxu0 0.0
    %280 = vmatprep.subr.mxu0 0.0
    %281 = vmatpush1.msra.mxu0 0.0
    %282 = vmatprep.subr.mxu0 0.0
    %283 = vmatpush1.msra.mxu0 0.0
    %284 = vmatprep.subr.mxu0 0.0
    %285 = vmatpush1.msra.mxu0 0.0
    %286 = vmatprep.subr.mxu0 0.0
    %287 = vmatpush1.msra.mxu0 0.0
    %288 = vmatprep.subr.mxu0 0.0
    %289 = vmatpush1.msra.mxu0 0.0
    %290 = vmatprep.subr.mxu0 0.0
    %291 = vmatpush1.msra.mxu0 0.0
    %292 = vmatprep.subr.mxu0 0.0
    %293 = vmatpush1.msra.mxu0 0.0
    %294 = vmatprep.subr.mxu0 0.0
    %295 = vmatpush1.msra.mxu0 0.0
    %296 = vmatprep.subr.mxu0 0.0
    %297 = vmatpush1.msra.mxu0 0.0
    %298 = vmatprep.subr.mxu0 0.0
    %299 = vmatpush1.msra.mxu0 0.0
    %300 = vmatprep.subr.mxu0 0.0
    %301 = vmatpush1.msra.mxu0 0.0
    %302 = vmatprep.subr.mxu0 0.0
    %303 = vmatpush1.msra.mxu0 0.0
    %304 = vmatprep.subr.mxu0 0.0
    %305 = vmatpush1.msra.mxu0 0.0
    %306 = vmatprep.subr.mxu0 0.0
    %307 = vmatpush1.msra.mxu0 0.0
    %308 = vmatprep.subr.mxu0 0.0
    %309 = vmatpush1.msra.mxu0 0.0
    %310 = vmatprep.subr.mxu0 0.0
    %311 = vmatpush1.msra.mxu0 0.0
    %312 = vmatprep.subr.mxu0 0.0
    %313 = vmatpush1.msra.mxu0 0.0
    %314 = vmatprep.subr.mxu0 0.0
    %315 = vmatpush1.msra.mxu0 0.0
    %316 = vmatprep.subr.mxu0 0.0
    %317 = vmatpush1.msra.mxu0 0.0
    %318 = vmatprep.subr.mxu0 0.0
    %319 = vmatpush1.msra.mxu0 0.0
    %320 = vmatprep.subr.mxu0 0.0
    %321 = vmatpush1.msra.mxu0 0.0
    %322 = vmatprep.subr.mxu0 0.0
    %323 = vmatpush1.msra.mxu0 0.0
    %324 = vmatprep.subr.mxu0 0.0
    %325 = vmatpush1.msra.mxu0 0.0
    %326 = vmatprep.subr.mxu0 0.0
    %327 = vmatpush1.msra.mxu0 0.0
    %328 = vmatprep.subr.mxu0 0.0
    %329 = vmatpush1.msra.mxu0 0.0
    %330 = vmatprep.subr.mxu0 0.0
    %331 = vmatpush1.msra.mxu0 0.0
    %332 = vmatprep.subr.mxu0 0.0
    %333 = vmatpush1.msra.mxu0 0.0
    %334 = vmatprep.subr.mxu0 0.0
    %335 = vmatpush1.msra.mxu0 0.0
    %336 = vmatprep.subr.mxu0 0.0
    %337 = vmatpush1.msra.mxu0 0.0
    %338 = vmatprep.subr.mxu0 0.0
    %339 = vmatpush1.msra.mxu0 0.0
    %340 = vmatprep.mubr.f32.mxu0 0.0
    %341 = vmatmul.mubr.f32.gmra.mrb[0].mxu0 %v274
    %v342 = vpop.f32.mrb[0].mxu0
    %v343 = vadd.f32 0.0, %v342
    %v344 = vpop.f32.mrb[0].mxu0
    %345 = vdwg.mxu0
    %346 = vst.msk [vmem:[#allocation2] sm:$0xff] %vm183, %v343
    %347 = vrot.lane.b32.xlu0 %v175, 120
    %v348 = vpop.permute.xlu0 %347
    %349 = vrot.lane.b32.xlu0 %v175, 88
    %v350 = vpop.permute.xlu0 %349
    %v351 = vsel %vm183, %v348, 0
    %v353 = vsel %vm183, %v350, 0
    %355 = vmatprep.subr.mxu0 0.0
    %356 = vmatpush1.xpose.msra.mxu0 %v353
    %357 = vmatprep.subr.mxu0 0.0
    %358 = vmatpush1.xpose.msra.mxu0 0.0
    %359 = vmatprep.subr.mxu0 0.0
    %360 = vmatpush1.xpose.msra.mxu0 0.0
    %361 = vmatprep.subr.mxu0 0.0
    %362 = vmatpush1.xpose.msra.mxu0 0.0
    %363 = vmatprep.subr.mxu0 0.0
    %364 = vmatpush1.xpose.msra.mxu0 0.0
    %365 = vmatprep.subr.mxu0 0.0
    %366 = vmatpush1.xpose.msra.mxu0 0.0
    %367 = vmatprep.subr.mxu0 0.0
    %368 = vmatpush1.xpose.msra.mxu0 0.0
    %369 = vmatprep.subr.mxu0 0.0
    %370 = vmatpush1.xpose.msra.mxu0 0.0
    %371 = vmatprep.subr.mxu0 0.0
    %372 = vmatpush1.xpose.msra.mxu0 0.0
    %373 = vmatprep.subr.mxu0 0.0
    %374 = vmatpush1.xpose.msra.mxu0 0.0
    %375 = vmatprep.subr.mxu0 0.0
    %376 = vmatpush1.xpose.msra.mxu0 0.0
    %377 = vmatprep.subr.mxu0 0.0
    %378 = vmatpush1.xpose.msra.mxu0 0.0
    %379 = vmatprep.subr.mxu0 0.0
    %380 = vmatpush1.xpose.msra.mxu0 0.0
    %381 = vmatprep.subr.mxu0 0.0
    %382 = vmatpush1.xpose.msra.mxu0 0.0
    %383 = vmatprep.subr.mxu0 0.0
    %384 = vmatpush1.xpose.msra.mxu0 0.0
    %385 = vmatprep.subr.mxu0 0.0
    %386 = vmatpush1.xpose.msra.mxu0 0.0
    %387 = vmatprep.subr.mxu0 0.0
    %388 = vmatpush1.xpose.msra.mxu0 0.0
    %389 = vmatprep.subr.mxu0 0.0
    %390 = vmatpush1.xpose.msra.mxu0 0.0
    %391 = vmatprep.subr.mxu0 0.0
    %392 = vmatpush1.xpose.msra.mxu0 0.0
    %393 = vmatprep.subr.mxu0 0.0
    %394 = vmatpush1.xpose.msra.mxu0 0.0
    %395 = vmatprep.subr.mxu0 0.0
    %396 = vmatpush1.xpose.msra.mxu0 0.0
    %397 = vmatprep.subr.mxu0 0.0
    %398 = vmatpush1.xpose.msra.mxu0 0.0
    %399 = vmatprep.subr.mxu0 0.0
    %400 = vmatpush1.xpose.msra.mxu0 0.0
    %401 = vmatprep.subr.mxu0 0.0
    %402 = vmatpush1.xpose.msra.mxu0 0.0
    %403 = vmatprep.subr.mxu0 0.0
    %404 = vmatpush1.xpose.msra.mxu0 0.0
    %405 = vmatprep.subr.mxu0 0.0
    %406 = vmatpush1.xpose.msra.mxu0 0.0
    %407 = vmatprep.subr.mxu0 0.0
    %408 = vmatpush1.xpose.msra.mxu0 0.0
    %409 = vmatprep.subr.mxu0 0.0
    %410 = vmatpush1.xpose.msra.mxu0 0.0
    %411 = vmatprep.subr.mxu0 0.0
    %412 = vmatpush1.xpose.msra.mxu0 0.0
    %413 = vmatprep.subr.mxu0 0.0
    %414 = vmatpush1.xpose.msra.mxu0 0.0
    %415 = vmatprep.subr.mxu0 0.0
    %416 = vmatpush1.xpose.msra.mxu0 0.0
    %417 = vmatprep.subr.mxu0 0.0
    %418 = vmatpush1.xpose.msra.mxu0 0.0
    %419 = vmatprep.mubr.f32.mxu0 0.0
    %420 = vmatmul.mubr.f32.gmra.mrb[0].mxu0 %v351
    %v421 = vpop.f32.mrb[0].mxu0
    %v422 = vadd.f32 %v73, %v421
    %v423 = vpop.f32.mrb[0].mxu0
    %424 = vdwg.mxu0
    %v425 = vsel %vm183, %v422, -inf
    %426 = vmax.xlane.f32.xlu0 %v425
    %v427 = vpop.xlane.xlu0 %426
    %v428 = vsub.f32 %v422, %v427
    %v429 = vmul.f32 %v428, 1.442695
    %v430 = vpow.pop %v429
    %v431 = vsel %vm183, %v430, 0.0
    %432 = vadd.xlane.f32.xlu0 %v431
    %v433 = vpop.xlane.xlu0 %432
    %v434 = vrcp.pop %v433
    %v435 = vmul.f32 %v430, %v434
    %s436 = scalar_lea.vmem [#allocation10], 8
    %437 = vst.msk [vmem:[%s436] sm:$0xff] %vm183, %v435
    %438 = vrot.lane.b32.xlu0 %v175, 56
    %v439 = vpop.permute.xlu0 %438
    %v442 = vsel %vm183, %v435, 0
    %444 = vmatprep.subr.mxu0 0.0
    %445 = vmatpush1.msra.mxu0 %v439
    %446 = vmatprep.subr.mxu0 0.0
    %447 = vmatpush1.msra.mxu0 0.0
    %448 = vmatprep.subr.mxu0 0.0
    %449 = vmatpush1.msra.mxu0 0.0
    %450 = vmatprep.subr.mxu0 0.0
    %451 = vmatpush1.msra.mxu0 0.0
    %452 = vmatprep.subr.mxu0 0.0
    %453 = vmatpush1.msra.mxu0 0.0
    %454 = vmatprep.subr.mxu0 0.0
    %455 = vmatpush1.msra.mxu0 0.0
    %456 = vmatprep.subr.mxu0 0.0
    %457 = vmatpush1.msra.mxu0 0.0
    %458 = vmatprep.subr.mxu0 0.0
    %459 = vmatpush1.msra.mxu0 0.0
    %460 = vmatprep.subr.mxu0 0.0
    %461 = vmatpush1.msra.mxu0 0.0
    %462 = vmatprep.subr.mxu0 0.0
    %463 = vmatpush1.msra.mxu0 0.0
    %464 = vmatprep.subr.mxu0 0.0
    %465 = vmatpush1.msra.mxu0 0.0
    %466 = vmatprep.subr.mxu0 0.0
    %467 = vmatpush1.msra.mxu0 0.0
    %468 = vmatprep.subr.mxu0 0.0
    %469 = vmatpush1.msra.mxu0 0.0
    %470 = vmatprep.subr.mxu0 0.0
    %471 = vmatpush1.msra.mxu0 0.0
    %472 = vmatprep.subr.mxu0 0.0
    %473 = vmatpush1.msra.mxu0 0.0
    %474 = vmatprep.subr.mxu0 0.0
    %475 = vmatpush1.msra.mxu0 0.0
    %476 = vmatprep.subr.mxu0 0.0
    %477 = vmatpush1.msra.mxu0 0.0
    %478 = vmatprep.subr.mxu0 0.0
    %479 = vmatpush1.msra.mxu0 0.0
    %480 = vmatprep.subr.mxu0 0.0
    %481 = vmatpush1.msra.mxu0 0.0
    %482 = vmatprep.subr.mxu0 0.0
    %483 = vmatpush1.msra.mxu0 0.0
    %484 = vmatprep.subr.mxu0 0.0
    %485 = vmatpush1.msra.mxu0 0.0
    %486 = vmatprep.subr.mxu0 0.0
    %487 = vmatpush1.msra.mxu0 0.0
    %488 = vmatprep.subr.mxu0 0.0
    %489 = vmatpush1.msra.mxu0 0.0
    %490 = vmatprep.subr.mxu0 0.0
    %491 = vmatpush1.msra.mxu0 0.0
    %492 = vmatprep.subr.mxu0 0.0
    %493 = vmatpush1.msra.mxu0 0.0
    %494 = vmatprep.subr.mxu0 0.0
    %495 = vmatpush1.msra.mxu0 0.0
    %496 = vmatprep.subr.mxu0 0.0
    %497 = vmatpush1.msra.mxu0 0.0
    %498 = vmatprep.subr.mxu0 0.0
    %499 = vmatpush1.msra.mxu0 0.0
    %500 = vmatprep.subr.mxu0 0.0
    %501 = vmatpush1.msra.mxu0 0.0
    %502 = vmatprep.subr.mxu0 0.0
    %503 = vmatpush1.msra.mxu0 0.0
    %504 = vmatprep.subr.mxu0 0.0
    %505 = vmatpush1.msra.mxu0 0.0
    %506 = vmatprep.subr.mxu0 0.0
    %507 = vmatpush1.msra.mxu0 0.0
    %508 = vmatprep.mubr.f32.mxu0 0.0
    %509 = vmatmul.mubr.f32.gmra.mrb[0].mxu0 %v442
    %v510 = vpop.f32.mrb[0].mxu0
    %v511 = vadd.f32 0.0, %v510
    %v512 = vpop.f32.mrb[0].mxu0
    %513 = vdwg.mxu0
    %515 = vrot.lane.b32.xlu0 %v511, 8
    %v516 = vpop.permute.xlu0 %515
    %vm518 = vcmask 130112
    %519 = vst.msk [vmem:[#allocation2] sm:$0xff] %vm518, %v516
    %520 = vrot.lane.b32.xlu0 %v175, 112
    %v521 = vpop.permute.xlu0 %520
    %522 = vrot.lane.b32.xlu0 %v175, 80
    %v523 = vpop.permute.xlu0 %522
    %v524 = vsel %vm183, %v521, 0
    %v526 = vsel %vm183, %v523, 0
    %528 = vmatprep.subr.mxu0 0.0
    %529 = vmatpush1.xpose.msra.mxu0 %v526
    %530 = vmatprep.subr.mxu0 0.0
    %531 = vmatpush1.xpose.msra.mxu0 0.0
    %532 = vmatprep.subr.mxu0 0.0
    %533 = vmatpush1.xpose.msra.mxu0 0.0
    %534 = vmatprep.subr.mxu0 0.0
    %535 = vmatpush1.xpose.msra.mxu0 0.0
    %536 = vmatprep.subr.mxu0 0.0
    %537 = vmatpush1.xpose.msra.mxu0 0.0
    %538 = vmatprep.subr.mxu0 0.0
    %539 = vmatpush1.xpose.msra.mxu0 0.0
    %540 = vmatprep.subr.mxu0 0.0
    %541 = vmatpush1.xpose.msra.mxu0 0.0
    %542 = vmatprep.subr.mxu0 0.0
    %543 = vmatpush1.xpose.msra.mxu0 0.0
    %544 = vmatprep.subr.mxu0 0.0
    %545 = vmatpush1.xpose.msra.mxu0 0.0
    %546 = vmatprep.subr.mxu0 0.0
    %547 = vmatpush1.xpose.msra.mxu0 0.0
    %548 = vmatprep.subr.mxu0 0.0
    %549 = vmatpush1.xpose.msra.mxu0 0.0
    %550 = vmatprep.subr.mxu0 0.0
    %551 = vmatpush1.xpose.msra.mxu0 0.0
    %552 = vmatprep.subr.mxu0 0.0
    %553 = vmatpush1.xpose.msra.mxu0 0.0
    %554 = vmatprep.subr.mxu0 0.0
    %555 = vmatpush1.xpose.msra.mxu0 0.0
    %556 = vmatprep.subr.mxu0 0.0
    %557 = vmatpush1.xpose.msra.mxu0 0.0
    %558 = vmatprep.subr.mxu0 0.0
    %559 = vmatpush1.xpose.msra.mxu0 0.0
    %560 = vmatprep.subr.mxu0 0.0
    %561 = vmatpush1.xpose.msra.mxu0 0.0
    %562 = vmatprep.subr.mxu0 0.0
    %563 = vmatpush1.xpose.msra.mxu0 0.0
    %564 = vmatprep.subr.mxu0 0.0
    %565 = vmatpush1.xpose.msra.mxu0 0.0
    %566 = vmatprep.subr.mxu0 0.0
    %567 = vmatpush1.xpose.msra.mxu0 0.0
    %568 = vmatprep.subr.mxu0 0.0
    %569 = vmatpush1.xpose.msra.mxu0 0.0
    %570 = vmatprep.subr.mxu0 0.0
    %571 = vmatpush1.xpose.msra.mxu0 0.0
    %572 = vmatprep.subr.mxu0 0.0
    %573 = vmatpush1.xpose.msra.mxu0 0.0
    %574 = vmatprep.subr.mxu0 0.0
    %575 = vmatpush1.xpose.msra.mxu0 0.0
    %576 = vmatprep.subr.mxu0 0.0
    %577 = vmatpush1.xpose.msra.mxu0 0.0
    %578 = vmatprep.subr.mxu0 0.0
    %579 = vmatpush1.xpose.msra.mxu0 0.0
    %580 = vmatprep.subr.mxu0 0.0
    %581 = vmatpush1.xpose.msra.mxu0 0.0
    %582 = vmatprep.subr.mxu0 0.0
    %583 = vmatpush1.xpose.msra.mxu0 0.0
    %584 = vmatprep.subr.mxu0 0.0
    %585 = vmatpush1.xpose.msra.mxu0 0.0
    %586 = vmatprep.subr.mxu0 0.0
    %587 = vmatpush1.xpose.msra.mxu0 0.0
    %588 = vmatprep.subr.mxu0 0.0
    %589 = vmatpush1.xpose.msra.mxu0 0.0
    %590 = vmatprep.subr.mxu0 0.0
    %591 = vmatpush1.xpose.msra.mxu0 0.0
    %592 = vmatprep.mubr.f32.mxu0 0.0
    %593 = vmatmul.mubr.f32.gmra.mrb[0].mxu0 %v524
    %v594 = vpop.f32.mrb[0].mxu0
    %v595 = vadd.f32 %v73, %v594
    %v596 = vpop.f32.mrb[0].mxu0
    %597 = vdwg.mxu0
    %v598 = vsel %vm183, %v595, -inf
    %599 = vmax.xlane.f32.xlu0 %v598
    %v600 = vpop.xlane.xlu0 %599
    %v601 = vsub.f32 %v595, %v600
    %v602 = vmul.f32 %v601, 1.442695
    %v603 = vpow.pop %v602
    %v604 = vsel %vm183, %v603, 0.0
    %605 = vadd.xlane.f32.xlu0 %v604
    %v606 = vpop.xlane.xlu0 %605
    %v607 = vrcp.pop %v606
    %v608 = vmul.f32 %v603, %v607
    %s609 = scalar_lea.vmem [#allocation10], 16
    %610 = vst.msk [vmem:[%s609] sm:$0xff] %vm183, %v608
    %611 = vrot.lane.b32.xlu0 %v175, 48
    %v612 = vpop.permute.xlu0 %611
    %v615 = vsel %vm183, %v608, 0
    %617 = vmatprep.subr.mxu0 0.0
    %618 = vmatpush1.msra.mxu0 %v612
    %619 = vmatprep.subr.mxu0 0.0
    %620 = vmatpush1.msra.mxu0 0.0
    %621 = vmatprep.subr.mxu0 0.0
    %622 = vmatpush1.msra.mxu0 0.0
    %623 = vmatprep.subr.mxu0 0.0
    %624 = vmatpush1.msra.mxu0 0.0
    %625 = vmatprep.subr.mxu0 0.0
    %626 = vmatpush1.msra.mxu0 0.0
    %627 = vmatprep.subr.mxu0 0.0
    %628 = vmatpush1.msra.mxu0 0.0
    %629 = vmatprep.subr.mxu0 0.0
    %630 = vmatpush1.msra.mxu0 0.0
    %631 = vmatprep.subr.mxu0 0.0
    %632 = vmatpush1.msra.mxu0 0.0
    %633 = vmatprep.subr.mxu0 0.0
    %634 = vmatpush1.msra.mxu0 0.0
    %635 = vmatprep.subr.mxu0 0.0
    %636 = vmatpush1.msra.mxu0 0.0
    %637 = vmatprep.subr.mxu0 0.0
    %638 = vmatpush1.msra.mxu0 0.0
    %639 = vmatprep.subr.mxu0 0.0
    %640 = vmatpush1.msra.mxu0 0.0
    %641 = vmatprep.subr.mxu0 0.0
    %642 = vmatpush1.msra.mxu0 0.0
    %643 = vmatprep.subr.mxu0 0.0
    %644 = vmatpush1.msra.mxu0 0.0
    %645 = vmatprep.subr.mxu0 0.0
    %646 = vmatpush1.msra.mxu0 0.0
    %647 = vmatprep.subr.mxu0 0.0
    %648 = vmatpush1.msra.mxu0 0.0
    %649 = vmatprep.subr.mxu0 0.0
    %650 = vmatpush1.msra.mxu0 0.0
    %651 = vmatprep.subr.mxu0 0.0
    %652 = vmatpush1.msra.mxu0 0.0
    %653 = vmatprep.subr.mxu0 0.0
    %654 = vmatpush1.msra.mxu0 0.0
    %655 = vmatprep.subr.mxu0 0.0
    %656 = vmatpush1.msra.mxu0 0.0
    %657 = vmatprep.subr.mxu0 0.0
    %658 = vmatpush1.msra.mxu0 0.0
    %659 = vmatprep.subr.mxu0 0.0
    %660 = vmatpush1.msra.mxu0 0.0
    %661 = vmatprep.subr.mxu0 0.0
    %662 = vmatpush1.msra.mxu0 0.0
    %663 = vmatprep.subr.mxu0 0.0
    %664 = vmatpush1.msra.mxu0 0.0
    %665 = vmatprep.subr.mxu0 0.0
    %666 = vmatpush1.msra.mxu0 0.0
    %667 = vmatprep.subr.mxu0 0.0
    %668 = vmatpush1.msra.mxu0 0.0
    %669 = vmatprep.subr.mxu0 0.0
    %670 = vmatpush1.msra.mxu0 0.0
    %671 = vmatprep.subr.mxu0 0.0
    %672 = vmatpush1.msra.mxu0 0.0
    %673 = vmatprep.subr.mxu0 0.0
    %674 = vmatpush1.msra.mxu0 0.0
    %675 = vmatprep.subr.mxu0 0.0
    %676 = vmatpush1.msra.mxu0 0.0
    %677 = vmatprep.subr.mxu0 0.0
    %678 = vmatpush1.msra.mxu0 0.0
    %679 = vmatprep.subr.mxu0 0.0
    %680 = vmatpush1.msra.mxu0 0.0
    %681 = vmatprep.mubr.f32.mxu0 0.0
    %682 = vmatmul.mubr.f32.gmra.mrb[0].mxu0 %v615
    %v683 = vpop.f32.mrb[0].mxu0
    %v684 = vadd.f32 0.0, %v683
    %v685 = vpop.f32.mrb[0].mxu0
    %686 = vdwg.mxu0
    %688 = vrot.lane.b32.xlu0 %v684, 16
    %v689 = vpop.permute.xlu0 %688
    %vm691 = vcmask 195712
    %692 = vst.msk [vmem:[#allocation2] sm:$0xff] %vm691, %v689
    %693 = vrot.lane.b32.xlu0 %v175, 104
    %v694 = vpop.permute.xlu0 %693
    %695 = vrot.lane.b32.xlu0 %v175, 72
    %v696 = vpop.permute.xlu0 %695
    %v697 = vsel %vm183, %v694, 0
    %v699 = vsel %vm183, %v696, 0
    %701 = vmatprep.subr.mxu0 0.0
    %702 = vmatpush1.xpose.msra.mxu0 %v699
    %703 = vmatprep.subr.mxu0 0.0
    %704 = vmatpush1.xpose.msra.mxu0 0.0
    %705 = vmatprep.subr.mxu0 0.0
    %706 = vmatpush1.xpose.msra.mxu0 0.0
    %707 = vmatprep.subr.mxu0 0.0
    %708 = vmatpush1.xpose.msra.mxu0 0.0
    %709 = vmatprep.subr.mxu0 0.0
    %710 = vmatpush1.xpose.msra.mxu0 0.0
    %711 = vmatprep.subr.mxu0 0.0
    %712 = vmatpush1.xpose.msra.mxu0 0.0
    %713 = vmatprep.subr.mxu0 0.0
    %714 = vmatpush1.xpose.msra.mxu0 0.0
    %715 = vmatprep.subr.mxu0 0.0
    %716 = vmatpush1.xpose.msra.mxu0 0.0
    %717 = vmatprep.subr.mxu0 0.0
    %718 = vmatpush1.xpose.msra.mxu0 0.0
    %719 = vmatprep.subr.mxu0 0.0
    %720 = vmatpush1.xpose.msra.mxu0 0.0
    %721 = vmatprep.subr.mxu0 0.0
    %722 = vmatpush1.xpose.msra.mxu0 0.0
    %723 = vmatprep.subr.mxu0 0.0
    %724 = vmatpush1.xpose.msra.mxu0 0.0
    %725 = vmatprep.subr.mxu0 0.0
    %726 = vmatpush1.xpose.msra.mxu0 0.0
    %727 = vmatprep.subr.mxu0 0.0
    %728 = vmatpush1.xpose.msra.mxu0 0.0
    %729 = vmatprep.subr.mxu0 0.0
    %730 = vmatpush1.xpose.msra.mxu0 0.0
    %731 = vmatprep.subr.mxu0 0.0
    %732 = vmatpush1.xpose.msra.mxu0 0.0
    %733 = vmatprep.subr.mxu0 0.0
    %734 = vmatpush1.xpose.msra.mxu0 0.0
    %735 = vmatprep.subr.mxu0 0.0
    %736 = vmatpush1.xpose.msra.mxu0 0.0
    %737 = vmatprep.subr.mxu0 0.0
    %738 = vmatpush1.xpose.msra.mxu0 0.0
    %739 = vmatprep.subr.mxu0 0.0
    %740 = vmatpush1.xpose.msra.mxu0 0.0
    %741 = vmatprep.subr.mxu0 0.0
    %742 = vmatpush1.xpose.msra.mxu0 0.0
    %743 = vmatprep.subr.mxu0 0.0
    %744 = vmatpush1.xpose.msra.mxu0 0.0
    %745 = vmatprep.subr.mxu0 0.0
    %746 = vmatpush1.xpose.msra.mxu0 0.0
    %747 = vmatprep.subr.mxu0 0.0
    %748 = vmatpush1.xpose.msra.mxu0 0.0
    %749 = vmatprep.subr.mxu0 0.0
    %750 = vmatpush1.xpose.msra.mxu0 0.0
    %751 = vmatprep.subr.mxu0 0.0
    %752 = vmatpush1.xpose.msra.mxu0 0.0
    %753 = vmatprep.subr.mxu0 0.0
    %754 = vmatpush1.xpose.msra.mxu0 0.0
    %755 = vmatprep.subr.mxu0 0.0
    %756 = vmatpush1.xpose.msra.mxu0 0.0
    %757 = vmatprep.subr.mxu0 0.0
    %758 = vmatpush1.xpose.msra.mxu0 0.0
    %759 = vmatprep.subr.mxu0 0.0
    %760 = vmatpush1.xpose.msra.mxu0 0.0
    %761 = vmatprep.subr.mxu0 0.0
    %762 = vmatpush1.xpose.msra.mxu0 0.0
    %763 = vmatprep.subr.mxu0 0.0
    %764 = vmatpush1.xpose.msra.mxu0 0.0
    %765 = vmatprep.mubr.f32.mxu0 0.0
    %766 = vmatmul.mubr.f32.gmra.mrb[0].mxu0 %v697
    %v767 = vpop.f32.mrb[0].mxu0
    %v768 = vadd.f32 %v73, %v767
    %v769 = vpop.f32.mrb[0].mxu0
    %770 = vdwg.mxu0
    %v771 = vsel %vm183, %v768, -inf
    %772 = vmax.xlane.f32.xlu0 %v771
    %v773 = vpop.xlane.xlu0 %772
    %v774 = vsub.f32 %v768, %v773
    %v775 = vmul.f32 %v774, 1.442695
    %v776 = vpow.pop %v775
    %v777 = vsel %vm183, %v776, 0.0
    %778 = vadd.xlane.f32.xlu0 %v777
    %v779 = vpop.xlane.xlu0 %778
    %v780 = vrcp.pop %v779
    %v781 = vmul.f32 %v776, %v780
    %s782 = scalar_lea.vmem [#allocation10], 24
    %783 = vst.msk [vmem:[%s782] sm:$0xff] %vm183, %v781
    %784 = vrot.lane.b32.xlu0 %v175, 40
    %v785 = vpop.permute.xlu0 %784
    %v788 = vsel %vm183, %v781, 0
    %790 = vmatprep.subr.mxu0 0.0
    %791 = vmatpush1.msra.mxu0 %v785
    %792 = vmatprep.subr.mxu0 0.0
    %793 = vmatpush1.msra.mxu0 0.0
    %794 = vmatprep.subr.mxu0 0.0
    %795 = vmatpush1.msra.mxu0 0.0
    %796 = vmatprep.subr.mxu0 0.0
    %797 = vmatpush1.msra.mxu0 0.0
    %798 = vmatprep.subr.mxu0 0.0
    %799 = vmatpush1.msra.mxu0 0.0
    %800 = vmatprep.subr.mxu0 0.0
    %801 = vmatpush1.msra.mxu0 0.0
    %802 = vmatprep.subr.mxu0 0.0
    %803 = vmatpush1.msra.mxu0 0.0
    %804 = vmatprep.subr.mxu0 0.0
    %805 = vmatpush1.msra.mxu0 0.0
    %806 = vmatprep.subr.mxu0 0.0
    %807 = vmatpush1.msra.mxu0 0.0
    %808 = vmatprep.subr.mxu0 0.0
    %809 = vmatpush1.msra.mxu0 0.0
    %810 = vmatprep.subr.mxu0 0.0
    %811 = vmatpush1.msra.mxu0 0.0
    %812 = vmatprep.subr.mxu0 0.0
    %813 = vmatpush1.msra.mxu0 0.0
    %814 = vmatprep.subr.mxu0 0.0
    %815 = vmatpush1.msra.mxu0 0.0
    %816 = vmatprep.subr.mxu0 0.0
    %817 = vmatpush1.msra.mxu0 0.0
    %818 = vmatprep.subr.mxu0 0.0
    %819 = vmatpush1.msra.mxu0 0.0
    %820 = vmatprep.subr.mxu0 0.0
    %821 = vmatpush1.msra.mxu0 0.0
    %822 = vmatprep.subr.mxu0 0.0
    %823 = vmatpush1.msra.mxu0 0.0
    %824 = vmatprep.subr.mxu0 0.0
    %825 = vmatpush1.msra.mxu0 0.0
    %826 = vmatprep.subr.mxu0 0.0
    %827 = vmatpush1.msra.mxu0 0.0
    %828 = vmatprep.subr.mxu0 0.0
    %829 = vmatpush1.msra.mxu0 0.0
    %830 = vmatprep.subr.mxu0 0.0
    %831 = vmatpush1.msra.mxu0 0.0
    %832 = vmatprep.subr.mxu0 0.0
    %833 = vmatpush1.msra.mxu0 0.0
    %834 = vmatprep.subr.mxu0 0.0
    %835 = vmatpush1.msra.mxu0 0.0
    %836 = vmatprep.subr.mxu0 0.0
    %837 = vmatpush1.msra.mxu0 0.0
    %838 = vmatprep.subr.mxu0 0.0
    %839 = vmatpush1.msra.mxu0 0.0
    %840 = vmatprep.subr.mxu0 0.0
    %841 = vmatpush1.msra.mxu0 0.0
    %842 = vmatprep.subr.mxu0 0.0
    %843 = vmatpush1.msra.mxu0 0.0
    %844 = vmatprep.subr.mxu0 0.0
    %845 = vmatpush1.msra.mxu0 0.0
    %846 = vmatprep.subr.mxu0 0.0
    %847 = vmatpush1.msra.mxu0 0.0
    %848 = vmatprep.subr.mxu0 0.0
    %849 = vmatpush1.msra.mxu0 0.0
    %850 = vmatprep.subr.mxu0 0.0
    %851 = vmatpush1.msra.mxu0 0.0
    %852 = vmatprep.subr.mxu0 0.0
    %853 = vmatpush1.msra.mxu0 0.0
    %854 = vmatprep.mubr.f32.mxu0 0.0
    %855 = vmatmul.mubr.f32.gmra.mrb[0].mxu0 %v788
    %v856 = vpop.f32.mrb[0].mxu0
    %v857 = vadd.f32 0.0, %v856
    %v858 = vpop.f32.mrb[0].mxu0
    %859 = vdwg.mxu0
    %861 = vrot.lane.b32.xlu0 %v857, 24
    %v862 = vpop.permute.xlu0 %861
    %vm864 = vcmask 261312
    %865 = vst.msk [vmem:[#allocation2] sm:$0xff] %vm864, %v862
    %v866 = vld [vmem:[#allocation2] sm:$0xff]
    %v867 = vpack.c.bf16 %v866, %v866
    %v868 = vlaneseq
    %v869 = vshrl.u32 %v868, 7
    %v870 = vsub.s32 4, %v869
    %v871 = vrot.slane %v74, %v870
    %v876 = vunpack.c.l.b16 %v79
    %v877 = vunpack.c.l.b16 %v80
    %v878 = vunpack.c.l.b16 %v81
    %v879 = vunpack.c.l.b16 %v82
    %v880 = vpack.c.b16 %v877, %v876
    %v881 = vpack.c.b16 %v879, %v878
    %v885 = vsel %vm95, %v867, 0
    %887 = vmatprep.subr.bf16.mxu0 0
    %888 = vmatpush1.bf16.msra.mxu0 %v880
    %889 = vmatprep.subr.bf16.mxu0 0
    %890 = vmatpush1.bf16.msra.mxu0 %v881
    %891 = vmatprep.subr.bf16.mxu0 0
    %892 = vmatpush1.bf16.msra.mxu0 0
    %893 = vmatprep.subr.bf16.mxu0 0
    %894 = vmatpush1.bf16.msra.mxu0 0
    %895 = vmatprep.subr.bf16.mxu0 0
    %896 = vmatpush1.bf16.msra.mxu0 0
    %897 = vmatprep.subr.bf16.mxu0 0
    %898 = vmatpush1.bf16.msra.mxu0 0
    %899 = vmatprep.subr.bf16.mxu0 0
    %900 = vmatpush1.bf16.msra.mxu0 0
    %901 = vmatprep.subr.bf16.mxu0 0
    %902 = vmatpush1.bf16.msra.mxu0 0
    %903 = vmatprep.subr.bf16.mxu0 0
    %904 = vmatpush1.bf16.msra.mxu0 0
    %905 = vmatprep.subr.bf16.mxu0 0
    %906 = vmatpush1.bf16.msra.mxu0 0
    %907 = vmatprep.subr.bf16.mxu0 0
    %908 = vmatpush1.bf16.msra.mxu0 0
    %909 = vmatprep.subr.bf16.mxu0 0
    %910 = vmatpush1.bf16.msra.mxu0 0
    %911 = vmatprep.subr.bf16.mxu0 0
    %912 = vmatpush1.bf16.msra.mxu0 0
    %913 = vmatprep.subr.bf16.mxu0 0
    %914 = vmatpush1.bf16.msra.mxu0 0
    %915 = vmatprep.subr.bf16.mxu0 0
    %916 = vmatpush1.bf16.msra.mxu0 0
    %917 = vmatprep.subr.bf16.mxu0 0
    %918 = vmatpush1.bf16.msra.mxu0 0
    %919 = vmatprep.mubr.bf16.mxu0 0
    %920 = vmatmul.mubr.bf16.gmra.mrb[0].mxu0 %v885
    %v921 = vpop.f32.mrb[0].mxu0
    %v922 = vadd.f32 %v871, %v921
    %v923 = vpop.f32.mrb[0].mxu0
    %v924 = vpop.f32.mrb[0].mxu0
    %v925 = vpop.f32.mrb[0].mxu0
    %926 = vdwg.mxu0
    %v927 = vadd.f32 %v72, %v922
    %v928 = vsel %vm95, %v927, 0.0
    %929 = vadd.xlane.f32.xlu0 %v928
    %v930 = vpop.xlane.xlu0 %929
    %v931 = vmul.f32 %v930, %v99
    %v932 = vsub.f32 %v927, %v931
    %v933 = vmul.f32 %v932, %v932
    %v934 = vsel %vm95, %v933, 0.0
    %935 = vadd.xlane.f32.xlu0 %v934
    %v936 = vpop.xlane.xlu0 %935
    %v937 = vmul.f32 %v936, %v99
    %v938 = vadd.f32 %v937, 1e-05
    %v939 = vrsqrt.pop %v938
    %v940 = vmul.f32 %v932, %v939
    %v941 = vlaneseq
    %v942 = vshrl.u32 %v941, 7
    %v943 = vsub.s32 2, %v942
    %v944 = vrot.slane %v74, %v943
    %v945 = vmul.f32 %v940, %v944
    %v946 = vlaneseq
    %v947 = vshrl.u32 %v946, 7
    %v948 = vsub.s32 3, %v947
    %v949 = vrot.slane %v74, %v948
    %v950 = vadd.f32 %v945, %v949
    %v951 = vpack.c.bf16 %v950, %v950
    %v952 = vlaneseq
    %v953 = vshrl.u32 %v952, 7
    %v954 = vsub.s32 6, %v953
    %v955 = vrot.slane %v74, %v954
    %v960 = vunpack.c.l.b16 %v83
    %v961 = vunpack.c.l.b16 %v84
    %v962 = vunpack.c.l.b16 %v85
    %v963 = vunpack.c.l.b16 %v86
    %v964 = vpack.c.b16 %v961, %v960
    %v965 = vpack.c.b16 %v963, %v962
    %v969 = vsel %vm95, %v951, 0
    %971 = vmatprep.subr.bf16.mxu0 0
    %972 = vmatpush1.bf16.msra.mxu0 %v964
    %973 = vmatprep.subr.bf16.mxu0 0
    %974 = vmatpush1.bf16.msra.mxu0 %v965
    %975 = vmatprep.subr.bf16.mxu0 0
    %976 = vmatpush1.bf16.msra.mxu0 0
    %977 = vmatprep.subr.bf16.mxu0 0
    %978 = vmatpush1.bf16.msra.mxu0 0
    %979 = vmatprep.subr.bf16.mxu0 0
    %980 = vmatpush1.bf16.msra.mxu0 0
    %981 = vmatprep.subr.bf16.mxu0 0
    %982 = vmatpush1.bf16.msra.mxu0 0
    %983 = vmatprep.subr.bf16.mxu0 0
    %984 = vmatpush1.bf16.msra.mxu0 0
    %985 = vmatprep.subr.bf16.mxu0 0
    %986 = vmatpush1.bf16.msra.mxu0 0
    %987 = vmatprep.subr.bf16.mxu0 0
    %988 = vmatpush1.bf16.msra.mxu0 0
    %989 = vmatprep.subr.bf16.mxu0 0
    %990 = vmatpush1.bf16.msra.mxu0 0
    %991 = vmatprep.subr.bf16.mxu0 0
    %992 = vmatpush1.bf16.msra.mxu0 0
    %993 = vmatprep.subr.bf16.mxu0 0
    %994 = vmatpush1.bf16.msra.mxu0 0
    %995 = vmatprep.subr.bf16.mxu0 0
    %996 = vmatpush1.bf16.msra.mxu0 0
    %997 = vmatprep.subr.bf16.mxu0 0
    %998 = vmatpush1.bf16.msra.mxu0 0
    %999 = vmatprep.subr.bf16.mxu0 0
    %1000 = vmatpush1.bf16.msra.mxu0 0
    %1001 = vmatprep.subr.bf16.mxu0 0
    %1002 = vmatpush1.bf16.msra.mxu0 0
    %1003 = vmatprep.mubr.bf16.mxu0 0
    %1004 = vmatmul.mubr.bf16.gmra.mrb[0].mxu0 %v969
    %v1005 = vpop.f32.mrb[0].mxu0
    %v1006 = vadd.f32 %v955, %v1005
    %v1007 = vpop.f32.mrb[0].mxu0
    %v1008 = vpop.f32.mrb[0].mxu0
    %v1009 = vpop.f32.mrb[0].mxu0
    %1010 = vdwg.mxu0
    %v1011 = vmul.f32 %v1006, 1.702
    %v1012 = vxor.u32 %v1011, 2147483648
    %v1013 = vmul.f32 %v1012, 1.442695
    %v1014 = vpow.pop %v1013
    %v1015 = vadd.f32 %v1014, 1.0
    %v1016 = vrcp.pop %v1015
    %v1017 = vmul.f32 1.0, %v1016
    %v1018 = vmul.f32 %v1006, %v1017
    %v1019 = vpack.c.bf16 %v1018, %v1018
    %v1020 = vlaneseq
    %v1021 = vshrl.u32 %v1020, 7
    %v1022 = vsub.s32 5, %v1021
    %v1023 = vrot.slane %v74, %v1022
    %v1032 = vunpack.c.l.b16 %v87
    %v1033 = vunpack.c.l.b16 %v88
    %v1034 = vunpack.c.l.b16 %v89
    %v1035 = vunpack.c.l.b16 %v90
    %v1036 = vunpack.c.l.b16 %v91
    %v1037 = vunpack.c.l.b16 %v92
    %v1038 = vunpack.c.l.b16 %v93
    %v1039 = vunpack.c.l.b16 %v94
    %v1040 = vpack.c.b16 %v1033, %v1032
    %v1041 = vpack.c.b16 %v1035, %v1034
    %v1042 = vpack.c.b16 %v1037, %v1036
    %v1043 = vpack.c.b16 %v1039, %v1038
    %vm1048 = vcmask 523264
    %v1050 = vsel %vm1048, %v1019, 0
    %1052 = vmatprep.subr.bf16.mxu0 0
    %1053 = vmatpush1.bf16.msra.mxu0 %v1040
    %1054 = vmatprep.subr.bf16.mxu0 0
    %1055 = vmatpush1.bf16.msra.mxu0 %v1041
    %1056 = vmatprep.subr.bf16.mxu0 0
    %1057 = vmatpush1.bf16.msra.mxu0 %v1042
    %1058 = vmatprep.subr.bf16.mxu0 0
    %1059 = vmatpush1.bf16.msra.mxu0 %v1043
    %1060 = vmatprep.subr.bf16.mxu0 0
    %1061 = vmatpush1.bf16.msra.mxu0 0
    %1062 = vmatprep.subr.bf16.mxu0 0
    %1063 = vmatpush1.bf16.msra.mxu0 0
    %1064 = vmatprep.subr.bf16.mxu0 0
    %1065 = vmatpush1.bf16.msra.mxu0 0
    %1066 = vmatprep.subr.bf16.mxu0 0
    %1067 = vmatpush1.bf16.msra.mxu0 0
    %1068 = vmatprep.subr.bf16.mxu0 0
    %1069 = vmatpush1.bf16.msra.mxu0 0
    %1070 = vmatprep.subr.bf16.mxu0 0
    %1071 = vmatpush1.bf16.msra.mxu0 0
    %1072 = vmatprep.subr.bf16.mxu0 0
    %1073 = vmatpush1.bf16.msra.mxu0 0
    %1074 = vmatprep.subr.bf16.mxu0 0
    %1075 = vmatpush1.bf16.msra.mxu0 0
    %1076 = vmatprep.subr.bf16.mxu0 0
    %1077 = vmatpush1.bf16.msra.mxu0 0
    %1078 = vmatprep.subr.bf16.mxu0 0
    %1079 = vmatpush1.bf16.msra.mxu0 0
    %1080 = vmatprep.subr.bf16.mxu0 0
    %1081 = vmatpush1.bf16.msra.mxu0 0
    %1082 = vmatprep.subr.bf16.mxu0 0
    %1083 = vmatpush1.bf16.msra.mxu0 0
    %1084 = vmatprep.mubr.bf16.mxu0 0
    %1085 = vmatmul.mubr.bf16.gmra.mrb[0].mxu0 %v1050
    %v1086 = vpop.f32.mrb[0].mxu0
    %v1087 = vadd.f32 %v1023, %v1086
    %v1088 = vpop.f32.mrb[0].mxu0
    %v1089 = vpop.f32.mrb[0].mxu0
    %v1090 = vpop.f32.mrb[0].mxu0
    %1091 = vdwg.mxu0
    %v1092 = vadd.f32 %v927, %v1087
    %1093 = vst.msk [vmem:[#allocation9] sm:$0xff] %vm95, %v1092
    %s1094 = scalar_lea.vmem [#allocation8], 8
    %v1095 = vld [vmem:[%s1094] sm:$0xff]
    %s1096 = scalar_lea.vmem %s4, 16
    %v1097 = vld [vmem:[%s1096] sm:$0xf]
    %v1098 = vld [vmem:[%s1096 + $0x4] sm:$0xf]
    %v1099 = vld [vmem:[%s1096 + $0x8] sm:$0xf]
    %v1100 = vld [vmem:[%s1096 + $0xc] sm:$0xf]
    %s1101 = scalar_lea.vmem %s5, 16
    %v1102 = vld [vmem:[%s1101] sm:$0xf]
    %v1103 = vld [vmem:[%s1101 + $0x4] sm:$0xf]
    %v1104 = vld [vmem:[%s1101 + $0x8] sm:$0xf]
    %v1105 = vld [vmem:[%s1101 + $0xc] sm:$0xf]
    %s1106 = scalar_lea.vmem %s6, 16
    %v1107 = vld [vmem:[%s1106] sm:$0xf]
    %v1108 = vld [vmem:[%s1106 + $0x4] sm:$0xf]
    %v1109 = vld [vmem:[%s1106 + $0x8] sm:$0xf]
    %v1110 = vld [vmem:[%s1106 + $0xc] sm:$0xf]
    %s1111 = scalar_lea.vmem %s7, 32
    %v1112 = vld [vmem:[%s1111] sm:$0xf]
    %v1113 = vld [vmem:[%s1111 + $0x4] sm:$0xf]
    %v1114 = vld [vmem:[%s1111 + $0x8] sm:$0xf]
    %v1115 = vld [vmem:[%s1111 + $0xc] sm:$0xf]
    %v1116 = vld [vmem:[%s1111 + $0x10] sm:$0xf]
    %v1117 = vld [vmem:[%s1111 + $0x14] sm:$0xf]
    %v1118 = vld [vmem:[%s1111 + $0x18] sm:$0xf]
    %v1119 = vld [vmem:[%s1111 + $0x1c] sm:$0xf]
    %v1120 = vsel %vm95, %v1092, 0.0
    %1121 = vadd.xlane.f32.xlu0 %v1120
    %v1122 = vpop.xlane.xlu0 %1121
    %v1123 = vmul.f32 %v1122, %v99
    %v1124 = vsub.f32 %v1092, %v1123
    %v1125 = vmul.f32 %v1124, %v1124
    %v1126 = vsel %vm95, %v1125, 0.0
    %1127 = vadd.xlane.f32.xlu0 %v1126
    %v1128 = vpop.xlane.xlu0 %1127
    %v1129 = vmul.f32 %v1128, %v99
    %v1130 = vadd.f32 %v1129, 1e-05
    %v1131 = vrsqrt.pop %v1130
    %v1132 = vmul.f32 %v1124, %v1131
    %v1133 = vlaneseq
    %v1134 = vshrl.u32 %v1133, 7
    %v1135 = vsub.s32 0, %v1134
    %v1136 = vrot.slane %v1095, %v1135
    %v1137 = vmul.f32 %v1132, %v1136
    %v1138 = vlaneseq
    %v1139 = vshrl.u32 %v1138, 7
    %v1140 = vsub.s32 1, %v1139
    %v1141 = vrot.slane %v1095, %v1140
    %v1142 = vadd.f32 %v1137, %v1141
    %v1143 = vpack.c.bf16 %v1142, %v1142
    %v1144 = vlaneseq
    %v1145 = vshrl.u32 %v1144, 7
    %v1146 = vsub.s32 7, %v1145
    %v1147 = vrot.slane %v1095, %v1146
    %v1152 = vunpack.c.l.b16 %v1097
    %v1153 = vunpack.c.l.b16 %v1098
    %v1154 = vunpack.c.l.b16 %v1099
    %v1155 = vunpack.c.l.b16 %v1100
    %v1156 = vpack.c.b16 %v1153, %v1152
    %v1157 = vpack.c.b16 %v1155, %v1154
    %v1161 = vsel %vm95, %v1143, 0
    %1163 = vmatprep.subr.bf16.mxu0 0
    %1164 = vmatpush1.bf16.msra.mxu0 %v1156
    %1165 = vmatprep.subr.bf16.mxu0 0
    %1166 = vmatpush1.bf16.msra.mxu0 %v1157
    %1167 = vmatprep.subr.bf16.mxu0 0
    %1168 = vmatpush1.bf16.msra.mxu0 0
    %1169 = vmatprep.subr.bf16.mxu0 0
    %1170 = vmatpush1.bf16.msra.mxu0 0
    %1171 = vmatprep.subr.bf16.mxu0 0
    %1172 = vmatpush1.bf16.msra.mxu0 0
    %1173 = vmatprep.subr.bf16.mxu0 0
    %1174 = vmatpush1.bf16.msra.mxu0 0
    %1175 = vmatprep.subr.bf16.mxu0 0
    %1176 = vmatpush1.bf16.msra.mxu0 0
    %1177 = vmatprep.subr.bf16.mxu0 0
    %1178 = vmatpush1.bf16.msra.mxu0 0
    %1179 = vmatprep.subr.bf16.mxu0 0
    %1180 = vmatpush1.bf16.msra.mxu0 0
    %1181 = vmatprep.subr.bf16.mxu0 0
    %1182 = vmatpush1.bf16.msra.mxu0 0
    %1183 = vmatprep.subr.bf16.mxu0 0
    %1184 = vmatpush1.bf16.msra.mxu0 0
    %1185 = vmatprep.subr.bf16.mxu0 0
    %1186 = vmatpush1.bf16.msra.mxu0 0
    %1187 = vmatprep.subr.bf16.mxu0 0
    %1188 = vmatpush1.bf16.msra.mxu0 0
    %1189 = vmatprep.subr.bf16.mxu0 0
    %1190 = vmatpush1.bf16.msra.mxu0 0
    %1191 = vmatprep.subr.bf16.mxu0 0
    %1192 = vmatpush1.bf16.msra.mxu0 0
    %1193 = vmatprep.subr.bf16.mxu0 0
    %1194 = vmatpush1.bf16.msra.mxu0 0
    %1195 = vmatprep.mubr.bf16.mxu0 0
    %1196 = vmatmul.mubr.bf16.gmra.mrb[0].mxu0 %v1161
    %v1197 = vpop.f32.mrb[0].mxu0
    %v1198 = vadd.f32 %v1147, %v1197
    %v1199 = vpop.f32.mrb[0].mxu0
    %v1200 = vpop.f32.mrb[0].mxu0
    %v1201 = vpop.f32.mrb[0].mxu0
    %1202 = vdwg.mxu0
    %1204 = vrot.lane.b32.xlu0 %v1198, 96
    %v1205 = vpop.permute.xlu0 %1204
    %v1206 = vsel %vm183, %v1198, 0
    %v1208 = vsel %vm183, %v1205, 0
    %1210 = vmatprep.subr.mxu0 0.0
    %1211 = vmatpush1.xpose.msra.mxu0 %v1208
    %1212 = vmatprep.subr.mxu0 0.0
    %1213 = vmatpush1.xpose.msra.mxu0 0.0
    %1214 = vmatprep.subr.mxu0 0.0
    %1215 = vmatpush1.xpose.msra.mxu0 0.0
    %1216 = vmatprep.subr.mxu0 0.0
    %1217 = vmatpush1.xpose.msra.mxu0 0.0
    %1218 = vmatprep.subr.mxu0 0.0
    %1219 = vmatpush1.xpose.msra.mxu0 0.0
    %1220 = vmatprep.subr.mxu0 0.0
    %1221 = vmatpush1.xpose.msra.mxu0 0.0
    %1222 = vmatprep.subr.mxu0 0.0
    %1223 = vmatpush1.xpose.msra.mxu0 0.0
    %1224 = vmatprep.subr.mxu0 0.0
    %1225 = vmatpush1.xpose.msra.mxu0 0.0
    %1226 = vmatprep.subr.mxu0 0.0
    %1227 = vmatpush1.xpose.msra.mxu0 0.0
    %1228 = vmatprep.subr.mxu0 0.0
    %1229 = vmatpush1.xpose.msra.mxu0 0.0
    %1230 = vmatprep.subr.mxu0 0.0
    %1231 = vmatpush1.xpose.msra.mxu0 0.0
    %1232 = vmatprep.subr.mxu0 0.0
    %1233 = vmatpush1.xpose.msra.mxu0 0.0
    %1234 = vmatprep.subr.mxu0 0.0
    %1235 = vmatpush1.xpose.msra.mxu0 0.0
    %1236 = vmatprep.subr.mxu0 0.0
    %1237 = vmatpush1.xpose.msra.mxu0 0.0
    %1238 = vmatprep.subr.mxu0 0.0
    %1239 = vmatpush1.xpose.msra.mxu0 0.0
    %1240 = vmatprep.subr.mxu0 0.0
    %1241 = vmatpush1.xpose.msra.mxu0 0.0
    %1242 = vmatprep.subr.mxu0 0.0
    %1243 = vmatpush1.xpose.msra.mxu0 0.0
    %1244 = vmatprep.subr.mxu0 0.0
    %1245 = vmatpush1.xpose.msra.mxu0 0.0
    %1246 = vmatprep.subr.mxu0 0.0
    %1247 = vmatpush1.xpose.msra.mxu0 0.0
    %1248 = vmatprep.subr.mxu0 0.0
    %1249 = vmatpush1.xpose.msra.mxu0 0.0
    %1250 = vmatprep.subr.mxu0 0.0
    %1251 = vmatpush1.xpose.msra.mxu0 0.0
    %1252 = vmatprep.subr.mxu0 0.0
    %1253 = vmatpush1.xpose.msra.mxu0 0.0
    %1254 = vmatprep.subr.mxu0 0.0
    %1255 = vmatpush1.xpose.msra.mxu0 0.0
    %1256 = vmatprep.subr.mxu0 0.0
    %1257 = vmatpush1.xpose.msra.mxu0 0.0
    %1258 = vmatprep.subr.mxu0 0.0
    %1259 = vmatpush1.xpose.msra.mxu0 0.0
    %1260 = vmatprep.subr.mxu0 0.0
    %1261 = vmatpush1.xpose.msra.mxu0 0.0
    %1262 = vmatprep.subr.mxu0 0.0
    %1263 = vmatpush1.xpose.msra.mxu0 0.0
    %1264 = vmatprep.subr.mxu0 0.0
    %1265 = vmatpush1.xpose.msra.mxu0 0.0
    %1266 = vmatprep.subr.mxu0 0.0
    %1267 = vmatpush1.xpose.msra.mxu0 0.0
    %1268 = vmatprep.subr.mxu0 0.0
    %1269 = vmatpush1.xpose.msra.mxu0 0.0
    %1270 = vmatprep.subr.mxu0 0.0
    %1271 = vmatpush1.xpose.msra.mxu0 0.0
    %1272 = vmatprep.subr.mxu0 0.0
    %1273 = vmatpush1.xpose.msra.mxu0 0.0
    %1274 = vmatprep.mubr.f32.mxu0 0.0
    %1275 = vmatmul.mubr.f32.gmra.mrb[0].mxu0 %v1206
    %v1276 = vpop.f32.mrb[0].mxu0
    %v1277 = vadd.f32 %v73, %v1276
    %v1278 = vpop.f32.mrb[0].mxu0
    %1279 = vdwg.mxu0
    %v1280 = vsel %vm183, %v1277, -inf
    %1281 = vmax.xlane.f32.xlu0 %v1280
    %v1282 = vpop.xlane.xlu0 %1281
    %v1283 = vsub.f32 %v1277, %v1282
    %v1284 = vmul.f32 %v1283, 1.442695
    %v1285 = vpow.pop %v1284
    %v1286 = vsel %vm183, %v1285, 0.0
    %1287 = vadd.xlane.f32.xlu0 %v1286
    %v1288 = vpop.xlane.xlu0 %1287
    %v1289 = vrcp.pop %v1288
    %v1290 = vmul.f32 %v1285, %v1289
    %s1291 = scalar_lea.vmem [#allocation10], 32
    %1292 = vst.msk [vmem:[%s1291] sm:$0xff] %vm183, %v1290
    %1293 = vrot.lane.b32.xlu0 %v1198, 64
    %v1294 = vpop.permute.xlu0 %1293
    %v1297 = vsel %vm183, %v1290, 0
    %1299 = vmatprep.subr.mxu0 0.0
    %1300 = vmatpush1.msra.mxu0 %v1294
    %1301 = vmatprep.subr.mxu0 0.0
    %1302 = vmatpush1.msra.mxu0 0.0
    %1303 = vmatprep.subr.mxu0 0.0
    %1304 = vmatpush1.msra.mxu0 0.0
    %1305 = vmatprep.subr.mxu0 0.0
    %1306 = vmatpush1.msra.mxu0 0.0
    %1307 = vmatprep.subr.mxu0 0.0
    %1308 = vmatpush1.msra.mxu0 0.0
    %1309 = vmatprep.subr.mxu0 0.0
    %1310 = vmatpush1.msra.mxu0 0.0
    %1311 = vmatprep.subr.mxu0 0.0
    %1312 = vmatpush1.msra.mxu0 0.0
    %1313 = vmatprep.subr.mxu0 0.0
    %1314 = vmatpush1.msra.mxu0 0.0
    %1315 = vmatprep.subr.mxu0 0.0
    %1316 = vmatpush1.msra.mxu0 0.0
    %1317 = vmatprep.subr.mxu0 0.0
    %1318 = vmatpush1.msra.mxu0 0.0
    %1319 = vmatprep.subr.mxu0 0.0
    %1320 = vmatpush1.msra.mxu0 0.0
    %1321 = vmatprep.subr.mxu0 0.0
    %1322 = vmatpush1.msra.mxu0 0.0
    %1323 = vmatprep.subr.mxu0 0.0
    %1324 = vmatpush1.msra.mxu0 0.0
    %1325 = vmatprep.subr.mxu0 0.0
    %1326 = vmatpush1.msra.mxu0 0.0
    %1327 = vmatprep.subr.mxu0 0.0
    %1328 = vmatpush1.msra.mxu0 0.0
    %1329 = vmatprep.subr.mxu0 0.0
    %1330 = vmatpush1.msra.mxu0 0.0
    %1331 = vmatprep.subr.mxu0 0.0
    %1332 = vmatpush1.msra.mxu0 0.0
    %1333 = vmatprep.subr.mxu0 0.0
    %1334 = vmatpush1.msra.mxu0 0.0
    %1335 = vmatprep.subr.mxu0 0.0
    %1336 = vmatpush1.msra.mxu0 0.0
    %1337 = vmatprep.subr.mxu0 0.0
    %1338 = vmatpush1.msra.mxu0 0.0
    %1339 = vmatprep.subr.mxu0 0.0
    %1340 = vmatpush1.msra.mxu0 0.0
    %1341 = vmatprep.subr.mxu0 0.0
    %1342 = vmatpush1.msra.mxu0 0.0
    %1343 = vmatprep.subr.mxu0 0.0
    %1344 = vmatpush1.msra.mxu0 0.0
    %1345 = vmatprep.subr.mxu0 0.0
    %1346 = vmatpush1.msra.mxu0 0.0
    %1347 = vmatprep.subr.mxu0 0.0
    %1348 = vmatpush1.msra.mxu0 0.0
    %1349 = vmatprep.subr.mxu0 0.0
    %1350 = vmatpush1.msra.mxu0 0.0
    %1351 = vmatprep.subr.mxu0 0.0
    %1352 = vmatpush1.msra.mxu0 0.0
    %1353 = vmatprep.subr.mxu0 0.0
    %1354 = vmatpush1.msra.mxu0 0.0
    %1355 = vmatprep.subr.mxu0 0.0
    %1356 = vmatpush1.msra.mxu0 0.0
    %1357 = vmatprep.subr.mxu0 0.0
    %1358 = vmatpush1.msra.mxu0 0.0
    %1359 = vmatprep.subr.mxu0 0.0
    %1360 = vmatpush1.msra.mxu0 0.0
    %1361 = vmatprep.subr.mxu0 0.0
    %1362 = vmatpush1.msra.mxu0 0.0
    %1363 = vmatprep.mubr.f32.mxu0 0.0
    %1364 = vmatmul.mubr.f32.gmra.mrb[0].mxu0 %v1297
    %v1365 = vpop.f32.mrb[0].mxu0
    %v1366 = vadd.f32 0.0, %v1365
    %v1367 = vpop.f32.mrb[0].mxu0
    %1368 = vdwg.mxu0
    %1369 = vst.msk [vmem:[#allocation2] sm:$0xff] %vm183, %v1366
    %1370 = vrot.lane.b32.xlu0 %v1198, 120
    %v1371 = vpop.permute.xlu0 %1370
    %1372 = vrot.lane.b32.xlu0 %v1198, 88
    %v1373 = vpop.permute.xlu0 %1372
    %v1374 = vsel %vm183, %v1371, 0
    %v1376 = vsel %vm183, %v1373, 0
    %1378 = vmatprep.subr.mxu0 0.0
    %1379 = vmatpush1.xpose.msra.mxu0 %v1376
    %1380 = vmatprep.subr.mxu0 0.0
    %1381 = vmatpush1.xpose.msra.mxu0 0.0
    %1382 = vmatprep.subr.mxu0 0.0
    %1383 = vmatpush1.xpose.msra.mxu0 0.0
    %1384 = vmatprep.subr.mxu0 0.0
    %1385 = vmatpush1.xpose.msra.mxu0 0.0
    %1386 = vmatprep.subr.mxu0 0.0
    %1387 = vmatpush1.xpose.msra.mxu0 0.0
    %1388 = vmatprep.subr.mxu0 0.0
    %1389 = vmatpush1.xpose.msra.mxu0 0.0
    %1390 = vmatprep.subr.mxu0 0.0
    %1391 = vmatpush1.xpose.msra.mxu0 0.0
    %1392 = vmatprep.subr.mxu0 0.0
    %1393 = vmatpush1.xpose.msra.mxu0 0.0
    %1394 = vmatprep.subr.mxu0 0.0
    %1395 = vmatpush1.xpose.msra.mxu0 0.0
    %1396 = vmatprep.subr.mxu0 0.0
    %1397 = vmatpush1.xpose.msra.mxu0 0.0
    %1398 = vmatprep.subr.mxu0 0.0
    %1399 = vmatpush1.xpose.msra.mxu0 0.0
    %1400 = vmatprep.subr.mxu0 0.0
    %1401 = vmatpush1.xpose.msra.mxu0 0.0
    %1402 = vmatprep.subr.mxu0 0.0
    %1403 = vmatpush1.xpose.msra.mxu0 0.0
    %1404 = vmatprep.subr.mxu0 0.0
    %1405 = vmatpush1.xpose.msra.mxu0 0.0
    %1406 = vmatprep.subr.mxu0 0.0
    %1407 = vmatpush1.xpose.msra.mxu0 0.0
    %1408 = vmatprep.subr.mxu0 0.0
    %1409 = vmatpush1.xpose.msra.mxu0 0.0
    %1410 = vmatprep.subr.mxu0 0.0
    %1411 = vmatpush1.xpose.msra.mxu0 0.0
    %1412 = vmatprep.subr.mxu0 0.0
    %1413 = vmatpush1.xpose.msra.mxu0 0.0
    %1414 = vmatprep.subr.mxu0 0.0
    %1415 = vmatpush1.xpose.msra.mxu0 0.0
    %1416 = vmatprep.subr.mxu0 0.0
    %1417 = vmatpush1.xpose.msra.mxu0 0.0
    %1418 = vmatprep.subr.mxu0 0.0
    %1419 = vmatpush1.xpose.msra.mxu0 0.0
    %1420 = vmatprep.subr.mxu0 0.0
    %1421 = vmatpush1.xpose.msra.mxu0 0.0
    %1422 = vmatprep.subr.mxu0 0.0
    %1423 = vmatpush1.xpose.msra.mxu0 0.0
    %1424 = vmatprep.subr.mxu0 0.0
    %1425 = vmatpush1.xpose.msra.mxu0 0.0
    %1426 = vmatprep.subr.mxu0 0.0
    %1427 = vmatpush1.xpose.msra.mxu0 0.0
    %1428 = vmatprep.subr.mxu0 0.0
    %1429 = vmatpush1.xpose.msra.mxu0 0.0
    %1430 = vmatprep.subr.mxu0 0.0
    %1431 = vmatpush1.xpose.msra.mxu0 0.0
    %1432 = vmatprep.subr.mxu0 0.0
    %1433 = vmatpush1.xpose.msra.mxu0 0.0
    %1434 = vmatprep.subr.mxu0 0.0
    %1435 = vmatpush1.xpose.msra.mxu0 0.0
    %1436 = vmatprep.subr.mxu0 0.0
    %1437 = vmatpush1.xpose.msra.mxu0 0.0
    %1438 = vmatprep.subr.mxu0 0.0
    %1439 = vmatpush1.xpose.msra.mxu0 0.0
    %1440 = vmatprep.subr.mxu0 0.0
    %1441 = vmatpush1.xpose.msra.mxu0 0.0
    %1442 = vmatprep.mubr.f32.mxu0 0.0
    %1443 = vmatmul.mubr.f32.gmra.mrb[0].mxu0 %v1374
    %v1444 = vpop.f32.mrb[0].mxu0
    %v1445 = vadd.f32 %v73, %v1444
    %v1446 = vpop.f32.mrb[0].mxu0
    %1447 = vdwg.mxu0
    %v1448 = vsel %vm183, %v1445, -inf
    %1449 = vmax.xlane.f32.xlu0 %v1448
    %v1450 = vpop.xlane.xlu0 %1449
    %v1451 = vsub.f32 %v1445, %v1450
    %v1452 = vmul.f32 %v1451, 1.442695
    %v1453 = vpow.pop %v1452
    %v1454 = vsel %vm183, %v1453, 0.0
    %1455 = vadd.xlane.f32.xlu0 %v1454
    %v1456 = vpop.xlane.xlu0 %1455
    %v1457 = vrcp.pop %v1456
    %v1458 = vmul.f32 %v1453, %v1457
    %s1459 = scalar_lea.vmem [#allocation10], 40
    %1460 = vst.msk [vmem:[%s1459] sm:$0xff] %vm183, %v1458
    %1461 = vrot.lane.b32.xlu0 %v1198, 56
    %v1462 = vpop.permute.xlu0 %1461
    %v1465 = vsel %vm183, %v1458, 0
    %1467 = vmatprep.subr.mxu0 0.0
    %1468 = vmatpush1.msra.mxu0 %v1462
    %1469 = vmatprep.subr.mxu0 0.0
    %1470 = vmatpush1.msra.mxu0 0.0
    %1471 = vmatprep.subr.mxu0 0.0
    %1472 = vmatpush1.msra.mxu0 0.0
    %1473 = vmatprep.subr.mxu0 0.0
    %1474 = vmatpush1.msra.mxu0 0.0
    %1475 = vmatprep.subr.mxu0 0.0
    %1476 = vmatpush1.msra.mxu0 0.0
    %1477 = vmatprep.subr.mxu0 0.0
    %1478 = vmatpush1.msra.mxu0 0.0
    %1479 = vmatprep.subr.mxu0 0.0
    %1480 = vmatpush1.msra.mxu0 0.0
    %1481 = vmatprep.subr.mxu0 0.0
    %1482 = vmatpush1.msra.mxu0 0.0
    %1483 = vmatprep.subr.mxu0 0.0
    %1484 = vmatpush1.msra.mxu0 0.0
    %1485 = vmatprep.subr.mxu0 0.0
    %1486 = vmatpush1.msra.mxu0 0.0
    %1487 = vmatprep.subr.mxu0 0.0
    %1488 = vmatpush1.msra.mxu0 0.0
    %1489 = vmatprep.subr.mxu0 0.0
    %1490 = vmatpush1.msra.mxu0 0.0
    %1491 = vmatprep.subr.mxu0 0.0
    %1492 = vmatpush1.msra.mxu0 0.0
    %1493 = vmatprep.subr.mxu0 0.0
    %1494 = vmatpush1.msra.mxu0 0.0
    %1495 = vmatprep.subr.mxu0 0.0
    %1496 = vmatpush1.msra.mxu0 0.0
    %1497 = vmatprep.subr.mxu0 0.0
    %1498 = vmatpush1.msra.mxu0 0.0
    %1499 = vmatprep.subr.mxu0 0.0
    %1500 = vmatpush1.msra.mxu0 0.0
    %1501 = vmatprep.subr.mxu0 0.0
    %1502 = vmatpush1.msra.mxu0 0.0
    %1503 = vmatprep.subr.mxu0 0.0
    %1504 = vmatpush1.msra.mxu0 0.0
    %1505 = vmatprep.subr.mxu0 0.0
    %1506 = vmatpush1.msra.mxu0 0.0
    %1507 = vmatprep.subr.mxu0 0.0
    %1508 = vmatpush1.msra.mxu0 0.0
    %1509 = vmatprep.subr.mxu0 0.0
    %1510 = vmatpush1.msra.mxu0 0.0
    %1511 = vmatprep.subr.mxu0 0.0
    %1512 = vmatpush1.msra.mxu0 0.0
    %1513 = vmatprep.subr.mxu0 0.0
    %1514 = vmatpush1.msra.mxu0 0.0
    %1515 = vmatprep.subr.mxu0 0.0
    %1516 = vmatpush1.msra.mxu0 0.0
    %1517 = vmatprep.subr.mxu0 0.0
    %1518 = vmatpush1.msra.mxu0 0.0
    %1519 = vmatprep.subr.mxu0 0.0
    %1520 = vmatpush1.msra.mxu0 0.0
    %1521 = vmatprep.subr.mxu0 0.0
    %1522 = vmatpush1.msra.mxu0 0.0
    %1523 = vmatprep.subr.mxu0 0.0
    %1524 = vmatpush1.msra.mxu0 0.0
    %1525 = vmatprep.subr.mxu0 0.0
    %1526 = vmatpush1.msra.mxu0 0.0
    %1527 = vmatprep.subr.mxu0 0.0
    %1528 = vmatpush1.msra.mxu0 0.0
    %1529 = vmatprep.subr.mxu0 0.0
    %1530 = vmatpush1.msra.mxu0 0.0
    %1531 = vmatprep.mubr.f32.mxu0 0.0
    %1532 = vmatmul.mubr.f32.gmra.mrb[0].mxu0 %v1465
    %v1533 = vpop.f32.mrb[0].mxu0
    %v1534 = vadd.f32 0.0, %v1533
    %v1535 = vpop.f32.mrb[0].mxu0
    %1536 = vdwg.mxu0
    %1538 = vrot.lane.b32.xlu0 %v1534, 8
    %v1539 = vpop.permute.xlu0 %1538
    %1541 = vst.msk [vmem:[#allocation2] sm:$0xff] %vm518, %v1539
    %1542 = vrot.lane.b32.xlu0 %v1198, 112
    %v1543 = vpop.permute.xlu0 %1542
    %1544 = vrot.lane.b32.xlu0 %v1198, 80
    %v1545 = vpop.permute.xlu0 %1544
    %v1546 = vsel %vm183, %v1543, 0
    %v1548 = vsel %vm183, %v1545, 0
    %1550 = vmatprep.subr.mxu0 0.0
    %1551 = vmatpush1.xpose.msra.mxu0 %v1548
    %1552 = vmatprep.subr.mxu0 0.0
    %1553 = vmatpush1.xpose.msra.mxu0 0.0
    %1554 = vmatprep.subr.mxu0 0.0
    %1555 = vmatpush1.xpose.msra.mxu0 0.0
    %1556 = vmatprep.subr.mxu0 0.0
    %1557 = vmatpush1.xpose.msra.mxu0 0.0
    %1558 = vmatprep.subr.mxu0 0.0
    %1559 = vmatpush1.xpose.msra.mxu0 0.0
    %1560 = vmatprep.subr.mxu0 0.0
    %1561 = vmatpush1.xpose.msra.mxu0 0.0
    %1562 = vmatprep.subr.mxu0 0.0
    %1563 = vmatpush1.xpose.msra.mxu0 0.0
    %1564 = vmatprep.subr.mxu0 0.0
    %1565 = vmatpush1.xpose.msra.mxu0 0.0
    %1566 = vmatprep.subr.mxu0 0.0
    %1567 = vmatpush1.xpose.msra.mxu0 0.0
    %1568 = vmatprep.subr.mxu0 0.0
    %1569 = vmatpush1.xpose.msra.mxu0 0.0
    %1570 = vmatprep.subr.mxu0 0.0
    %1571 = vmatpush1.xpose.msra.mxu0 0.0
    %1572 = vmatprep.subr.mxu0 0.0
    %1573 = vmatpush1.xpose.msra.mxu0 0.0
    %1574 = vmatprep.subr.mxu0 0.0
    %1575 = vmatpush1.xpose.msra.mxu0 0.0
    %1576 = vmatprep.subr.mxu0 0.0
    %1577 = vmatpush1.xpose.msra.mxu0 0.0
    %1578 = vmatprep.subr.mxu0 0.0
    %1579 = vmatpush1.xpose.msra.mxu0 0.0
    %1580 = vmatprep.subr.mxu0 0.0
    %1581 = vmatpush1.xpose.msra.mxu0 0.0
    %1582 = vmatprep.subr.mxu0 0.0
    %1583 = vmatpush1.xpose.msra.mxu0 0.0
    %1584 = vmatprep.subr.mxu0 0.0
    %1585 = vmatpush1.xpose.msra.mxu0 0.0
    %1586 = vmatprep.subr.mxu0 0.0
    %1587 = vmatpush1.xpose.msra.mxu0 0.0
    %1588 = vmatprep.subr.mxu0 0.0
    %1589 = vmatpush1.xpose.msra.mxu0 0.0
    %1590 = vmatprep.subr.mxu0 0.0
    %1591 = vmatpush1.xpose.msra.mxu0 0.0
    %1592 = vmatprep.subr.mxu0 0.0
    %1593 = vmatpush1.xpose.msra.mxu0 0.0
    %1594 = vmatprep.subr.mxu0 0.0
    %1595 = vmatpush1.xpose.msra.mxu0 0.0
    %1596 = vmatprep.subr.mxu0 0.0
    %1597 = vmatpush1.xpose.msra.mxu0 0.0
    %1598 = vmatprep.subr.mxu0 0.0
    %1599 = vmatpush1.xpose.msra.mxu0 0.0
    %1600 = vmatprep.subr.mxu0 0.0
    %1601 = vmatpush1.xpose.msra.mxu0 0.0
    %1602 = vmatprep.subr.mxu0 0.0
    %1603 = vmatpush1.xpose.msra.mxu0 0.0
    %1604 = vmatprep.subr.mxu0 0.0
    %1605 = vmatpush1.xpose.msra.mxu0 0.0
    %1606 = vmatprep.subr.mxu0 0.0
    %1607 = vmatpush1.xpose.msra.mxu0 0.0
    %1608 = vmatprep.subr.mxu0 0.0
    %1609 = vmatpush1.xpose.msra.mxu0 0.0
    %1610 = vmatprep.subr.mxu0 0.0
    %1611 = vmatpush1.xpose.msra.mxu0 0.0
    %1612 = vmatprep.subr.mxu0 0.0
    %1613 = vmatpush1.xpose.msra.mxu0 0.0
    %1614 = vmatprep.mubr.f32.mxu0 0.0
    %1615 = vmatmul.mubr.f32.gmra.mrb[0].mxu0 %v1546
    %v1616 = vpop.f32.mrb[0].mxu0
    %v1617 = vadd.f32 %v73, %v1616
    %v1618 = vpop.f32.mrb[0].mxu0
    %1619 = vdwg.mxu0
    %v1620 = vsel %vm183, %v1617, -inf
    %1621 = vmax.xlane.f32.xlu0 %v1620
    %v1622 = vpop.xlane.xlu0 %1621
    %v1623 = vsub.f32 %v1617, %v1622
    %v1624 = vmul.f32 %v1623, 1.442695
    %v1625 = vpow.pop %v1624
    %v1626 = vsel %vm183, %v1625, 0.0
    %1627 = vadd.xlane.f32.xlu0 %v1626
    %v1628 = vpop.xlane.xlu0 %1627
    %v1629 = vrcp.pop %v1628
    %v1630 = vmul.f32 %v1625, %v1629
    %s1631 = scalar_lea.vmem [#allocation10], 48
    %1632 = vst.msk [vmem:[%s1631] sm:$0xff] %vm183, %v1630
    %1633 = vrot.lane.b32.xlu0 %v1198, 48
    %v1634 = vpop.permute.xlu0 %1633
    %v1637 = vsel %vm183, %v1630, 0
    %1639 = vmatprep.subr.mxu0 0.0
    %1640 = vmatpush1.msra.mxu0 %v1634
    %1641 = vmatprep.subr.mxu0 0.0
    %1642 = vmatpush1.msra.mxu0 0.0
    %1643 = vmatprep.subr.mxu0 0.0
    %1644 = vmatpush1.msra.mxu0 0.0
    %1645 = vmatprep.subr.mxu0 0.0
    %1646 = vmatpush1.msra.mxu0 0.0
    %1647 = vmatprep.subr.mxu0 0.0
    %1648 = vmatpush1.msra.mxu0 0.0
    %1649 = vmatprep.subr.mxu0 0.0
    %1650 = vmatpush1.msra.mxu0 0.0
    %1651 = vmatprep.subr.mxu0 0.0
    %1652 = vmatpush1.msra.mxu0 0.0
    %1653 = vmatprep.subr.mxu0 0.0
    %1654 = vmatpush1.msra.mxu0 0.0
    %1655 = vmatprep.subr.mxu0 0.0
    %1656 = vmatpush1.msra.mxu0 0.0
    %1657 = vmatprep.subr.mxu0 0.0
    %1658 = vmatpush1.msra.mxu0 0.0
    %1659 = vmatprep.subr.mxu0 0.0
    %1660 = vmatpush1.msra.mxu0 0.0
    %1661 = vmatprep.subr.mxu0 0.0
    %1662 = vmatpush1.msra.mxu0 0.0
    %1663 = vmatprep.subr.mxu0 0.0
    %1664 = vmatpush1.msra.mxu0 0.0
    %1665 = vmatprep.subr.mxu0 0.0
    %1666 = vmatpush1.msra.mxu0 0.0
    %1667 = vmatprep.subr.mxu0 0.0
    %1668 = vmatpush1.msra.mxu0 0.0
    %1669 = vmatprep.subr.mxu0 0.0
    %1670 = vmatpush1.msra.mxu0 0.0
    %1671 = vmatprep.subr.mxu0 0.0
    %1672 = vmatpush1.msra.mxu0 0.0
    %1673 = vmatprep.subr.mxu0 0.0
    %1674 = vmatpush1.msra.mxu0 0.0
    %1675 = vmatprep.subr.mxu0 0.0
    %1676 = vmatpush1.msra.mxu0 0.0
    %1677 = vmatprep.subr.mxu0 0.0
    %1678 = vmatpush1.msra.mxu0 0.0
    %1679 = vmatprep.subr.mxu0 0.0
    %1680 = vmatpush1.msra.mxu0 0.0
    %1681 = vmatprep.subr.mxu0 0.0
    %1682 = vmatpush1.msra.mxu0 0.0
    %1683 = vmatprep.subr.mxu0 0.0
    %1684 = vmatpush1.msra.mxu0 0.0
    %1685 = vmatprep.subr.mxu0 0.0
    %1686 = vmatpush1.msra.mxu0 0.0
    %1687 = vmatprep.subr.mxu0 0.0
    %1688 = vmatpush1.msra.mxu0 0.0
    %1689 = vmatprep.subr.mxu0 0.0
    %1690 = vmatpush1.msra.mxu0 0.0
    %1691 = vmatprep.subr.mxu0 0.0
    %1692 = vmatpush1.msra.mxu0 0.0
    %1693 = vmatprep.subr.mxu0 0.0
    %1694 = vmatpush1.msra.mxu0 0.0
    %1695 = vmatprep.subr.mxu0 0.0
    %1696 = vmatpush1.msra.mxu0 0.0
    %1697 = vmatprep.subr.mxu0 0.0
    %1698 = vmatpush1.msra.mxu0 0.0
    %1699 = vmatprep.subr.mxu0 0.0
    %1700 = vmatpush1.msra.mxu0 0.0
    %1701 = vmatprep.subr.mxu0 0.0
    %1702 = vmatpush1.msra.mxu0 0.0
    %1703 = vmatprep.mubr.f32.mxu0 0.0
    %1704 = vmatmul.mubr.f32.gmra.mrb[0].mxu0 %v1637
    %v1705 = vpop.f32.mrb[0].mxu0
    %v1706 = vadd.f32 0.0, %v1705
    %v1707 = vpop.f32.mrb[0].mxu0
    %1708 = vdwg.mxu0
    %1710 = vrot.lane.b32.xlu0 %v1706, 16
    %v1711 = vpop.permute.xlu0 %1710
    %1713 = vst.msk [vmem:[#allocation2] sm:$0xff] %vm691, %v1711
    %1714 = vrot.lane.b32.xlu0 %v1198, 104
    %v1715 = vpop.permute.xlu0 %1714
    %1716 = vrot.lane.b32.xlu0 %v1198, 72
    %v1717 = vpop.permute.xlu0 %1716
    %v1718 = vsel %vm183, %v1715, 0
    %v1720 = vsel %vm183, %v1717, 0
    %1722 = vmatprep.subr.mxu0 0.0
    %1723 = vmatpush1.xpose.msra.mxu0 %v1720
    %1724 = vmatprep.subr.mxu0 0.0
    %1725 = vmatpush1.xpose.msra.mxu0 0.0
    %1726 = vmatprep.subr.mxu0 0.0
    %1727 = vmatpush1.xpose.msra.mxu0 0.0
    %1728 = vmatprep.subr.mxu0 0.0
    %1729 = vmatpush1.xpose.msra.mxu0 0.0
    %1730 = vmatprep.subr.mxu0 0.0
    %1731 = vmatpush1.xpose.msra.mxu0 0.0
    %1732 = vmatprep.subr.mxu0 0.0
    %1733 = vmatpush1.xpose.msra.mxu0 0.0
    %1734 = vmatprep.subr.mxu0 0.0
    %1735 = vmatpush1.xpose.msra.mxu0 0.0
    %1736 = vmatprep.subr.mxu0 0.0
    %1737 = vmatpush1.xpose.msra.mxu0 0.0
    %1738 = vmatprep.subr.mxu0 0.0
    %1739 = vmatpush1.xpose.msra.mxu0 0.0
    %1740 = vmatprep.subr.mxu0 0.0
    %1741 = vmatpush1.xpose.msra.mxu0 0.0
    %1742 = vmatprep.subr.mxu0 0.0
    %1743 = vmatpush1.xpose.msra.mxu0 0.0
    %1744 = vmatprep.subr.mxu0 0.0
    %1745 = vmatpush1.xpose.msra.mxu0 0.0
    %1746 = vmatprep.subr.mxu0 0.0
    %1747 = vmatpush1.xpose.msra.mxu0 0.0
    %1748 = vmatprep.subr.mxu0 0.0
    %1749 = vmatpush1.xpose.msra.mxu0 0.0
    %1750 = vmatprep.subr.mxu0 0.0
    %1751 = vmatpush1.xpose.msra.mxu0 0.0
    %1752 = vmatprep.subr.mxu0 0.0
    %1753 = vmatpush1.xpose.msra.mxu0 0.0
    %1754 = vmatprep.subr.mxu0 0.0
    %1755 = vmatpush1.xpose.msra.mxu0 0.0
    %1756 = vmatprep.subr.mxu0 0.0
    %1757 = vmatpush1.xpose.msra.mxu0 0.0
    %1758 = vmatprep.subr.mxu0 0.0
    %1759 = vmatpush1.xpose.msra.mxu0 0.0
    %1760 = vmatprep.subr.mxu0 0.0
    %1761 = vmatpush1.xpose.msra.mxu0 0.0
    %1762 = vmatprep.subr.mxu0 0.0
    %1763 = vmatpush1.xpose.msra.mxu0 0.0
    %1764 = vmatprep.subr.mxu0 0.0
    %1765 = vmatpush1.xpose.msra.mxu0 0.0
    %1766 = vmatprep.subr.mxu0 0.0
    %1767 = vmatpush1.xpose.msra.mxu0 0.0
    %1768 = vmatprep.subr.mxu0 0.0
    %1769 = vmatpush1.xpose.msra.mxu0 0.0
    %1770 = vmatprep.subr.mxu0 0.0
    %1771 = vmatpush1.xpose.msra.mxu0 0.0
    %1772 = vmatprep.subr.mxu0 0.0
    %1773 = vmatpush1.xpose.msra.mxu0 0.0
    %1774 = vmatprep.subr.mxu0 0.0
    %1775 = vmatpush1.xpose.msra.mxu0 0.0
    %1776 = vmatprep.subr.mxu0 0.0
    %1777 = vmatpush1.xpose.msra.mxu0 0.0
    %1778 = vmatprep.subr.mxu0 0.0
    %1779 = vmatpush1.xpose.msra.mxu0 0.0
    %1780 = vmatprep.subr.mxu0 0.0
    %1781 = vmatpush1.xpose.msra.mxu0 0.0
    %1782 = vmatprep.subr.mxu0 0.0
    %1783 = vmatpush1.xpose.msra.mxu0 0.0
    %1784 = vmatprep.subr.mxu0 0.0
    %1785 = vmatpush1.xpose.msra.mxu0 0.0
    %1786 = vmatprep.mubr.f32.mxu0 0.0
    %1787 = vmatmul.mubr.f32.gmra.mrb[0].mxu0 %v1718
    %v1788 = vpop.f32.mrb[0].mxu0
    %v1789 = vadd.f32 %v73, %v1788
    %v1790 = vpop.f32.mrb[0].mxu0
    %1791 = vdwg.mxu0
    %v1792 = vsel %vm183, %v1789, -inf
    %1793 = vmax.xlane.f32.xlu0 %v1792
    %v1794 = vpop.xlane.xlu0 %1793
    %v1795 = vsub.f32 %v1789, %v1794
    %v1796 = vmul.f32 %v1795, 1.442695
    %v1797 = vpow.pop %v1796
    %v1798 = vsel %vm183, %v1797, 0.0
    %1799 = vadd.xlane.f32.xlu0 %v1798
    %v1800 = vpop.xlane.xlu0 %1799
    %v1801 = vrcp.pop %v1800
    %v1802 = vmul.f32 %v1797, %v1801
    %s1803 = scalar_lea.vmem [#allocation10], 56
    %1804 = vst.msk [vmem:[%s1803] sm:$0xff] %vm183, %v1802
    %1805 = vrot.lane.b32.xlu0 %v1198, 40
    %v1806 = vpop.permute.xlu0 %1805
    %v1809 = vsel %vm183, %v1802, 0
    %1811 = vmatprep.subr.mxu0 0.0
    %1812 = vmatpush1.msra.mxu0 %v1806
    %1813 = vmatprep.subr.mxu0 0.0
    %1814 = vmatpush1.msra.mxu0 0.0
    %1815 = vmatprep.subr.mxu0 0.0
    %1816 = vmatpush1.msra.mxu0 0.0
    %1817 = vmatprep.subr.mxu0 0.0
    %1818 = vmatpush1.msra.mxu0 0.0
    %1819 = vmatprep.subr.mxu0 0.0
    %1820 = vmatpush1.msra.mxu0 0.0
    %1821 = vmatprep.subr.mxu0 0.0
    %1822 = vmatpush1.msra.mxu0 0.0
    %1823 = vmatprep.subr.mxu0 0.0
    %1824 = vmatpush1.msra.mxu0 0.0
    %1825 = vmatprep.subr.mxu0 0.0
    %1826 = vmatpush1.msra.mxu0 0.0
    %1827 = vmatprep.subr.mxu0 0.0
    %1828 = vmatpush1.msra.mxu0 0.0
    %1829 = vmatprep.subr.mxu0 0.0
    %1830 = vmatpush1.msra.mxu0 0.0
    %1831 = vmatprep.subr.mxu0 0.0
    %1832 = vmatpush1.msra.mxu0 0.0
    %1833 = vmatprep.subr.mxu0 0.0
    %1834 = vmatpush1.msra.mxu0 0.0
    %1835 = vmatprep.subr.mxu0 0.0
    %1836 = vmatpush1.msra.mxu0 0.0
    %1837 = vmatprep.subr.mxu0 0.0
    %1838 = vmatpush1.msra.mxu0 0.0
    %1839 = vmatprep.subr.mxu0 0.0
    %1840 = vmatpush1.msra.mxu0 0.0
    %1841 = vmatprep.subr.mxu0 0.0
    %1842 = vmatpush1.msra.mxu0 0.0
    %1843 = vmatprep.subr.mxu0 0.0
    %1844 = vmatpush1.msra.mxu0 0.0
    %1845 = vmatprep.subr.mxu0 0.0
    %1846 = vmatpush1.msra.mxu0 0.0
    %1847 = vmatprep.subr.mxu0 0.0
    %1848 = vmatpush1.msra.mxu0 0.0
    %1849 = vmatprep.subr.mxu0 0.0
    %1850 = vmatpush1.msra.mxu0 0.0
    %1851 = vmatprep.subr.mxu0 0.0
    %1852 = vmatpush1.msra.mxu0 0.0
    %1853 = vmatprep.subr.mxu0 0.0
    %1854 = vmatpush1.msra.mxu0 0.0
    %1855 = vmatprep.subr.mxu0 0.0
    %1856 = vmatpush1.msra.mxu0 0.0
    %1857 = vmatprep.subr.mxu0 0.0
    %1858 = vmatpush1.msra.mxu0 0.0
    %1859 = vmatprep.subr.mxu0 0.0
    %1860 = vmatpush1.msra.mxu0 0.0
    %1861 = vmatprep.subr.mxu0 0.0
    %1862 = vmatpush1.msra.mxu0 0.0
    %1863 = vmatprep.subr.mxu0 0.0
    %1864 = vmatpush1.msra.mxu0 0.0
    %1865 = vmatprep.subr.mxu0 0.0
    %1866 = vmatpush1.msra.mxu0 0.0
    %1867 = vmatprep.subr.mxu0 0.0
    %1868 = vmatpush1.msra.mxu0 0.0
    %1869 = vmatprep.subr.mxu0 0.0
    %1870 = vmatpush1.msra.mxu0 0.0
    %1871 = vmatprep.subr.mxu0 0.0
    %1872 = vmatpush1.msra.mxu0 0.0
    %1873 = vmatprep.subr.mxu0 0.0
    %1874 = vmatpush1.msra.mxu0 0.0
    %1875 = vmatprep.mubr.f32.mxu0 0.0
    %1876 = vmatmul.mubr.f32.gmra.mrb[0].mxu0 %v1809
    %v1877 = vpop.f32.mrb[0].mxu0
    %v1878 = vadd.f32 0.0, %v1877
    %v1879 = vpop.f32.mrb[0].mxu0
    %1880 = vdwg.mxu0
    %1882 = vrot.lane.b32.xlu0 %v1878, 24
    %v1883 = vpop.permute.xlu0 %1882
    %1885 = vst.msk [vmem:[#allocation2] sm:$0xff] %vm864, %v1883
    %v1886 = vld [vmem:[#allocation2] sm:$0xff]
    %v1887 = vpack.c.bf16 %v1886, %v1886
    %v1888 = vlaneseq
    %v1889 = vshrl.u32 %v1888, 7
    %v1890 = vsub.s32 4, %v1889
    %v1891 = vrot.slane %v1095, %v1890
    %v1896 = vunpack.c.l.b16 %v1102
    %v1897 = vunpack.c.l.b16 %v1103
    %v1898 = vunpack.c.l.b16 %v1104
    %v1899 = vunpack.c.l.b16 %v1105
    %v1900 = vpack.c.b16 %v1897, %v1896
    %v1901 = vpack.c.b16 %v1899, %v1898
    %v1905 = vsel %vm95, %v1887, 0
    %1907 = vmatprep.subr.bf16.mxu0 0
    %1908 = vmatpush1.bf16.msra.mxu0 %v1900
    %1909 = vmatprep.subr.bf16.mxu0 0
    %1910 = vmatpush1.bf16.msra.mxu0 %v1901
    %1911 = vmatprep.subr.bf16.mxu0 0
    %1912 = vmatpush1.bf16.msra.mxu0 0
    %1913 = vmatprep.subr.bf16.mxu0 0
    %1914 = vmatpush1.bf16.msra.mxu0 0
    %1915 = vmatprep.subr.bf16.mxu0 0
    %1916 = vmatpush1.bf16.msra.mxu0 0
    %1917 = vmatprep.subr.bf16.mxu0 0
    %1918 = vmatpush1.bf16.msra.mxu0 0
    %1919 = vmatprep.subr.bf16.mxu0 0
    %1920 = vmatpush1.bf16.msra.mxu0 0
    %1921 = vmatprep.subr.bf16.mxu0 0
    %1922 = vmatpush1.bf16.msra.mxu0 0
    %1923 = vmatprep.subr.bf16.mxu0 0
    %1924 = vmatpush1.bf16.msra.mxu0 0
    %1925 = vmatprep.subr.bf16.mxu0 0
    %1926 = vmatpush1.bf16.msra.mxu0 0
    %1927 = vmatprep.subr.bf16.mxu0 0
    %1928 = vmatpush1.bf16.msra.mxu0 0
    %1929 = vmatprep.subr.bf16.mxu0 0
    %1930 = vmatpush1.bf16.msra.mxu0 0
    %1931 = vmatprep.subr.bf16.mxu0 0
    %1932 = vmatpush1.bf16.msra.mxu0 0
    %1933 = vmatprep.subr.bf16.mxu0 0
    %1934 = vmatpush1.bf16.msra.mxu0 0
    %1935 = vmatprep.subr.bf16.mxu0 0
    %1936 = vmatpush1.bf16.msra.mxu0 0
    %1937 = vmatprep.subr.bf16.mxu0 0
    %1938 = vmatpush1.bf16.msra.mxu0 0
    %1939 = vmatprep.mubr.bf16.mxu0 0
    %1940 = vmatmul.mubr.bf16.gmra.mrb[0].mxu0 %v1905
    %v1941 = vpop.f32.mrb[0].mxu0
    %v1942 = vadd.f32 %v1891, %v1941
    %v1943 = vpop.f32.mrb[0].mxu0
    %v1944 = vpop.f32.mrb[0].mxu0
    %v1945 = vpop.f32.mrb[0].mxu0
    %1946 = vdwg.mxu0
    %v1947 = vadd.f32 %v1092, %v1942
    %v1948 = vsel %vm95, %v1947, 0.0
    %1949 = vadd.xlane.f32.xlu0 %v1948
    %v1950 = vpop.xlane.xlu0 %1949
    %v1951 = vmul.f32 %v1950, %v99
    %v1952 = vsub.f32 %v1947, %v1951
    %v1953 = vmul.f32 %v1952, %v1952
    %v1954 = vsel %vm95, %v1953, 0.0
    %1955 = vadd.xlane.f32.xlu0 %v1954
    %v1956 = vpop.xlane.xlu0 %1955
    %v1957 = vmul.f32 %v1956, %v99
    %v1958 = vadd.f32 %v1957, 1e-05
    %v1959 = vrsqrt.pop %v1958
    %v1960 = vmul.f32 %v1952, %v1959
    %v1961 = vlaneseq
    %v1962 = vshrl.u32 %v1961, 7
    %v1963 = vsub.s32 2, %v1962
    %v1964 = vrot.slane %v1095, %v1963
    %v1965 = vmul.f32 %v1960, %v1964
    %v1966 = vlaneseq
    %v1967 = vshrl.u32 %v1966, 7
    %v1968 = vsub.s32 3, %v1967
    %v1969 = vrot.slane %v1095, %v1968
    %v1970 = vadd.f32 %v1965, %v1969
    %v1971 = vpack.c.bf16 %v1970, %v1970
    %v1972 = vlaneseq
    %v1973 = vshrl.u32 %v1972, 7
    %v1974 = vsub.s32 6, %v1973
    %v1975 = vrot.slane %v1095, %v1974
    %v1980 = vunpack.c.l.b16 %v1107
    %v1981 = vunpack.c.l.b16 %v1108
    %v1982 = vunpack.c.l.b16 %v1109
    %v1983 = vunpack.c.l.b16 %v1110
    %v1984 = vpack.c.b16 %v1981, %v1980
    %v1985 = vpack.c.b16 %v1983, %v1982
    %v1989 = vsel %vm95, %v1971, 0
    %1991 = vmatprep.subr.bf16.mxu0 0
    %1992 = vmatpush1.bf16.msra.mxu0 %v1984
    %1993 = vmatprep.subr.bf16.mxu0 0
    %1994 = vmatpush1.bf16.msra.mxu0 %v1985
    %1995 = vmatprep.subr.bf16.mxu0 0
    %1996 = vmatpush1.bf16.msra.mxu0 0
    %1997 = vmatprep.subr.bf16.mxu0 0
    %1998 = vmatpush1.bf16.msra.mxu0 0
    %1999 = vmatprep.subr.bf16.mxu0 0
    %2000 = vmatpush1.bf16.msra.mxu0 0
    %2001 = vmatprep.subr.bf16.mxu0 0
    %2002 = vmatpush1.bf16.msra.mxu0 0
    %2003 = vmatprep.subr.bf16.mxu0 0
    %2004 = vmatpush1.bf16.msra.mxu0 0
    %2005 = vmatprep.subr.bf16.mxu0 0
    %2006 = vmatpush1.bf16.msra.mxu0 0
    %2007 = vmatprep.subr.bf16.mxu0 0
    %2008 = vmatpush1.bf16.msra.mxu0 0
    %2009 = vmatprep.subr.bf16.mxu0 0
    %2010 = vmatpush1.bf16.msra.mxu0 0
    %2011 = vmatprep.subr.bf16.mxu0 0
    %2012 = vmatpush1.bf16.msra.mxu0 0
    %2013 = vmatprep.subr.bf16.mxu0 0
    %2014 = vmatpush1.bf16.msra.mxu0 0
    %2015 = vmatprep.subr.bf16.mxu0 0
    %2016 = vmatpush1.bf16.msra.mxu0 0
    %2017 = vmatprep.subr.bf16.mxu0 0
    %2018 = vmatpush1.bf16.msra.mxu0 0
    %2019 = vmatprep.subr.bf16.mxu0 0
    %2020 = vmatpush1.bf16.msra.mxu0 0
    %2021 = vmatprep.subr.bf16.mxu0 0
    %2022 = vmatpush1.bf16.msra.mxu0 0
    %2023 = vmatprep.mubr.bf16.mxu0 0
    %2024 = vmatmul.mubr.bf16.gmra.mrb[0].mxu0 %v1989
    %v2025 = vpop.f32.mrb[0].mxu0
    %v2026 = vadd.f32 %v1975, %v2025
    %v2027 = vpop.f32.mrb[0].mxu0
    %v2028 = vpop.f32.mrb[0].mxu0
    %v2029 = vpop.f32.mrb[0].mxu0
    %2030 = vdwg.mxu0
    %v2031 = vmul.f32 %v2026, 1.702
    %v2032 = vxor.u32 %v2031, 2147483648
    %v2033 = vmul.f32 %v2032, 1.442695
    %v2034 = vpow.pop %v2033
    %v2035 = vadd.f32 %v2034, 1.0
    %v2036 = vrcp.pop %v2035
    %v2037 = vmul.f32 1.0, %v2036
    %v2038 = vmul.f32 %v2026, %v2037
    %v2039 = vpack.c.bf16 %v2038, %v2038
    %v2040 = vlaneseq
    %v2041 = vshrl.u32 %v2040, 7
    %v2042 = vsub.s32 5, %v2041
    %v2043 = vrot.slane %v1095, %v2042
    %v2052 = vunpack.c.l.b16 %v1112
    %v2053 = vunpack.c.l.b16 %v1113
    %v2054 = vunpack.c.l.b16 %v1114
    %v2055 = vunpack.c.l.b16 %v1115
    %v2056 = vunpack.c.l.b16 %v1116
    %v2057 = vunpack.c.l.b16 %v1117
    %v2058 = vunpack.c.l.b16 %v1118
    %v2059 = vunpack.c.l.b16 %v1119
    %v2060 = vpack.c.b16 %v2053, %v2052
    %v2061 = vpack.c.b16 %v2055, %v2054
    %v2062 = vpack.c.b16 %v2057, %v2056
    %v2063 = vpack.c.b16 %v2059, %v2058
    %v2069 = vsel %vm1048, %v2039, 0
    %2071 = vmatprep.subr.bf16.mxu0 0
    %2072 = vmatpush1.bf16.msra.mxu0 %v2060
    %2073 = vmatprep.subr.bf16.mxu0 0
    %2074 = vmatpush1.bf16.msra.mxu0 %v2061
    %2075 = vmatprep.subr.bf16.mxu0 0
    %2076 = vmatpush1.bf16.msra.mxu0 %v2062
    %2077 = vmatprep.subr.bf16.mxu0 0
    %2078 = vmatpush1.bf16.msra.mxu0 %v2063
    %2079 = vmatprep.subr.bf16.mxu0 0
    %2080 = vmatpush1.bf16.msra.mxu0 0
    %2081 = vmatprep.subr.bf16.mxu0 0
    %2082 = vmatpush1.bf16.msra.mxu0 0
    %2083 = vmatprep.subr.bf16.mxu0 0
    %2084 = vmatpush1.bf16.msra.mxu0 0
    %2085 = vmatprep.subr.bf16.mxu0 0
    %2086 = vmatpush1.bf16.msra.mxu0 0
    %2087 = vmatprep.subr.bf16.mxu0 0
    %2088 = vmatpush1.bf16.msra.mxu0 0
    %2089 = vmatprep.subr.bf16.mxu0 0
    %2090 = vmatpush1.bf16.msra.mxu0 0
    %2091 = vmatprep.subr.bf16.mxu0 0
    %2092 = vmatpush1.bf16.msra.mxu0 0
    %2093 = vmatprep.subr.bf16.mxu0 0
    %2094 = vmatpush1.bf16.msra.mxu0 0
    %2095 = vmatprep.subr.bf16.mxu0 0
    %2096 = vmatpush1.bf16.msra.mxu0 0
    %2097 = vmatprep.subr.bf16.mxu0 0
    %2098 = vmatpush1.bf16.msra.mxu0 0
    %2099 = vmatprep.subr.bf16.mxu0 0
    %2100 = vmatpush1.bf16.msra.mxu0 0
    %2101 = vmatprep.subr.bf16.mxu0 0
    %2102 = vmatpush1.bf16.msra.mxu0 0
    %2103 = vmatprep.mubr.bf16.mxu0 0
    %2104 = vmatmul.mubr.bf16.gmra.mrb[0].mxu0 %v2069
    %v2105 = vpop.f32.mrb[0].mxu0
    %v2106 = vadd.f32 %v2043, %v2105
    %v2107 = vpop.f32.mrb[0].mxu0
    %v2108 = vpop.f32.mrb[0].mxu0
    %v2109 = vpop.f32.mrb[0].mxu0
    %2110 = vdwg.mxu0
    %v2111 = vadd.f32 %v1947, %v2106
    %s2112 = scalar_lea.vmem [#allocation9], 8
    %2113 = vst.msk [vmem:[%s2112] sm:$0xff] %vm95, %v2111
    %v2114 = vld [vmem:[%s2] sm:$0x1]
    %v2115 = vld [vmem:[%s2 + $0x1] sm:$0x1]
    %v2116 = vsel %vm95, %v2111, 0.0
    %2117 = vadd.xlane.f32.xlu0 %v2116
    %v2118 = vpop.xlane.xlu0 %2117
    %v2119 = vmul.f32 %v2118, %v99
    %v2120 = vsub.f32 %v2111, %v2119
    %v2121 = vmul.f32 %v2120, %v2120
    %v2122 = vsel %vm95, %v2121, 0.0
    %2123 = vadd.xlane.f32.xlu0 %v2122
    %v2124 = vpop.xlane.xlu0 %2123
    %v2125 = vmul.f32 %v2124, %v99
    %v2126 = vadd.f32 %v2125, 1e-05
    %v2127 = vrsqrt.pop %v2126
    %v2128 = vmul.f32 %v2120, %v2127
    %v2129 = vlaneseq
    %v2130 = vshrl.u32 %v2129, 7
    %v2131 = vsub.s32 0, %v2130
    %v2132 = vrot.slane %v2114, %v2131
    %v2133 = vmul.f32 %v2128, %v2132
    %v2134 = vlaneseq
    %v2135 = vshrl.u32 %v2134, 7
    %v2136 = vsub.s32 0, %v2135
    %v2137 = vrot.slane %v2115, %v2136
    %v2138 = vadd.f32 %v2133, %v2137
    %2139 = vst.msk [vmem:[#allocation12] sm:$0xff] %vm95, %v2138
    // Predicated region
    $region46: #{tpu_custom_call.1} parent=1 // pred_check
      _
    $region47: #{tpu_custom_call.1} parent=1 // pred_check_branch
      %2141 = sbr.rel (0) target = $region49
    $region48: #{tpu_custom_call.1} parent=1 // pred_region
      %s2143 = ssub.s32 256, 256
      %2144 = vsyncadd [#allocation5], %s2143
      %s2145 = sshll.u32 [#allocation9], 4
      %s2146 = int_to_ptr.vmem [resolvable:$true] %s2145
      %2151 = dma.vmem_to_hbm [thread:$0]  %s2146, 256, %s8, [#allocation5], 128, 128, 8
    $region49: #{tpu_custom_call.1} parent=1 // pred_fallthru
      _
    // Predicated region
    $region50: #{tpu_custom_call.1} parent=1 // pred_check
      _
    $region51: #{tpu_custom_call.1} parent=1 // pred_check_branch
      %2153 = sbr.rel (0) target = $region53
    $region52: #{tpu_custom_call.1} parent=1 // pred_region
      %s2155 = ssub.s32 1024, 1024
      %2156 = vsyncadd [#allocation11], %s2155
      %s2157 = sshll.u32 [#allocation10], 4
      %s2158 = int_to_ptr.vmem [resolvable:$true] %s2157
      %2163 = dma.vmem_to_hbm [thread:$0]  %s2158, 1024, %s9, [#allocation11], 128, 128, 8
    $region53: #{tpu_custom_call.1} parent=1 // pred_fallthru
      _
    // Predicated region
    $region54: #{tpu_custom_call.1} parent=1 // pred_check
      _
    $region55: #{tpu_custom_call.1} parent=1 // pred_check_branch
      %2165 = sbr.rel (0) target = $region57
    $region56: #{tpu_custom_call.1} parent=1 // pred_region
      %s2167 = ssub.s32 128, 128
      %2168 = vsyncadd [#allocation11], %s2167
      %s2170 = sshll.u32 [#allocation12], 4
      %s2171 = int_to_ptr.vmem [resolvable:$true] %s2170
      %2173 = dma.vmem_to_hbm [thread:$0]  %s2171, 128, %s10, [#allocation11]
    $region57: #{tpu_custom_call.1} parent=1 // pred_fallthru
      _
    // Predicated region
    $region58: #{tpu_custom_call.1} parent=1 // pred_check
      _
    $region59: #{tpu_custom_call.1} parent=1 // pred_check_branch
      %2175 = sbr.rel (0) target = $region61
    $region60: #{tpu_custom_call.1} parent=1 // pred_region
      %2176 = dma.done [#allocation5], 256
    $region61: #{tpu_custom_call.1} parent=1 // pred_fallthru
      _
    // Predicated region
    $region62: #{tpu_custom_call.1} parent=1 // pred_check
      _
    $region63: #{tpu_custom_call.1} parent=1 // pred_check_branch
      %2178 = sbr.rel (0) target = $region65
    $region64: #{tpu_custom_call.1} parent=1 // pred_region
      %2179 = dma.done [#allocation11], 1024
    $region65: #{tpu_custom_call.1} parent=1 // pred_fallthru
      _
    // Predicated region
    $region66: #{tpu_custom_call.1} parent=1 // pred_check
      _
    $region67: #{tpu_custom_call.1} parent=1 // pred_check_branch
      %2181 = sbr.rel (0) target = $region69
    $region68: #{tpu_custom_call.1} parent=1 // pred_region
      %2182 = dma.done [#allocation11], 128
    $region69: #{tpu_custom_call.1} parent=1 // pred_fallthru
      _
    %2183 = vsyncpa [#allocation4], 1
    %2184 = vsyncpa [#allocation7], 1
    %2185 = vsyncpa [#allocation5], 1
    %2186 = vsyncpa [#allocation11], 1

</llo_original>
